<compile_context>
chip_gen: v7x
topology: tpu7x:2x2x1
jax: 0.10.0
libtpu: 0.0.40
codegen_flags: <defaults>
</compile_context>

<pallas_src>
import numpy as np
import jax
import jax.numpy as jnp
from jax.experimental import pallas as pl
from jax.experimental.pallas import tpu as pltpu  # noqa: F401  (kept for future CompilerParams)

# ---------------- problem sizes (small but consistent with the module) ----------------
B = 8                  # batch
L = 11                 # seq length   (embed_output_dim = 11 * 56 * E)
F = 56                 # fields
E = 16                 # embed_dim
D = L * F * E          # 9856 = 77 * 128 (flattened embedding dim)
MLP_DIMS = (16, 16)
BN_EPS = 1e-5
FIELD_DIMS = [10] * F
VOCAB = sum(FIELD_DIMS)


# ---------------------------------- Pallas kernel -------------------------------------
def _wd_kernel(emb_ref, w_big_ref, w_small_ref, bias_ref, lin_ref, out_ref):
    """Single invocation.  emb_ref is the STACKED (2B, D) bf16 embedding slab
    (rows 0:B = shared embedding, rows B:2B = domain embedding)."""
    # ---- one big matmul for both streams: (2B, D) @ (D, 64) ----
    # cols 0:32 of w_big = shared layer W, cols 32:64 = domain layer W.
    res = jnp.dot(emb_ref[...], w_big_ref[...],
                  preferred_element_type=jnp.float32)                 # (2B, 64)

    bias = bias_ref[...]                                              # (8, 128) f32, lane-0 rows
    shared_term = res[0:B, 0:32] + bias[0:1, 0:32]                    # (B, 32)
    dom_term = res[B:2 * B, 32:64] + bias[1:2, 0:32]                  # (B, 32)

    # ---- attention gating, both streams stacked: (2B, 32) @ (32, 128) ----
    terms2 = jnp.concatenate([dom_term, shared_term], axis=0)         # (2B, 32)
    W = w_small_ref[...]                                              # (32, 128) f32
    gate_full = jnp.dot(terms2, W, preferred_element_type=jnp.float32)  # (2B, 128)
    K = gate_full[:, 0:32] + bias[2:3, 0:32]
    Q = gate_full[:, 32:64] + bias[3:4, 0:32]
    V = gate_full[:, 64:96] + bias[4:5, 0:32]
    # matches torch: exp(sum(K*Q, 1, keepdim=True) / 6); written as a stable 2-way softmax
    x = jnp.sum(K * Q, axis=1, keepdims=True) * (1.0 / 6.0)           # (2B, 1)
    x_dom, x_sh = x[0:B], x[B:2 * B]
    V_dom, V_sh = V[0:B], V[B:2 * B]
    m = jnp.maximum(x_dom, x_sh)
    e_dom = jnp.exp(x_dom - m)
    e_sh = jnp.exp(x_sh - m)
    inv = pl.reciprocal(e_dom + e_sh, approx=False)
    term = e_dom * inv * V_dom + e_sh * inv * V_sh                    # (B, 32)

    # ---- MLP head (eval-mode BatchNorm folded into w0/w1/b0/b1 at pack time; dropout = id) ----
    w0 = W[:, 96:112]                                                 # (32, 16)  BN0-folded
    w1 = W[0:16, 112:128]                                             # (16, 16)  BN1-folded
    b0 = bias[5:6, 0:16]
    b1 = bias[6:7, 0:16]
    w2_row = bias[7:8, 0:16]                                          # mlp_w2[:, 0]

    h = jnp.maximum(jnp.dot(term, w0, preferred_element_type=jnp.float32) + b0, 0.0)
    h = jnp.maximum(jnp.dot(h, w1, preferred_element_type=jnp.float32) + b1, 0.0)
    mlp_out = jnp.sum(h * w2_row, axis=1, keepdims=True)              # (B, 1); mlp_b2 folded into lin

    result = lin_ref[...] + mlp_out                                   # (B, 1)
    prob = 1.0 / (1.0 + jnp.exp(-result))

    # ---- single merged (B, 128) output slab: term in lanes 0:32, prob in lane 32 ----
    out_ref[...] = jnp.concatenate(
        [term, prob, jnp.zeros((B, 128 - 33), jnp.float32)], axis=1)


def _run_kernel(emb_stacked, lin_plus, w_big, w_small, bias_slab):
    # No grid: single invocation, all operands (< 2 MiB) resident in VMEM.
    out_shape = jax.ShapeDtypeStruct((B, 128), jnp.float32)
    return pl.pallas_call(_wd_kernel, out_shape=out_shape)(
        emb_stacked, w_big, w_small, bias_slab, lin_plus)


# ------------------------------------ glue (JAX) ---------------------------------------
def _features_embedding_stacked(table2, offsets, ids, values, out_dtype=jnp.bfloat16):
    """One fused gather from the stacked (2, VOCAB, E) table -> (2B, D) slab.
    Rows 0:B = table2[0] (shared), rows B:2B = table2[1] (domain)."""
    idx = ids + offsets[None, None, :]                                # (B, L, F)
    emb = table2[:, idx] * values[None, :, :, :, None]                # (2, B, L, F, E)
    return emb.reshape(2 * ids.shape[0], -1).astype(out_dtype)        # (2B, D)


def _features_embedding(table, offsets, ids, values, out_dtype=jnp.float32):
    idx = ids + offsets[None, None, :]
    emb = table[idx] * values[..., None]
    return emb.reshape(ids.shape[0], -1).astype(out_dtype)


def _features_linear(fc_table, fc_bias, offsets, ids_last):
    idx = ids_last + offsets[None, :]                                 # (B, F)
    return jnp.sum(fc_table[idx], axis=1) + fc_bias                   # (B, 1)


def wide_and_deep_forward(params, ids, values, seq_lengths, seq_mask, dlabel):
    """Mirrors WideAndDeepModel.forward. seq_lengths / seq_mask are unused (as in the reference)."""
    del seq_lengths, seq_mask
    assert dlabel in ("src", "tgt")
    offsets = params["offsets"]
    emb_stacked = _features_embedding_stacked(
        params[f"emb_stacked_{dlabel}"], offsets, ids, values)        # (2B, D) bf16
    lin_term = _features_linear(params["lin_fc"], params["lin_bias"], offsets, ids[:, -1, :])
    lin_plus = lin_term + params["mlp_b2"][0, 0]                      # fold final MLP bias
    out = _run_kernel(emb_stacked, lin_plus,
                      params[f"w_big_{dlabel}"],
                      params[f"w_small_{dlabel}"],
                      params[f"bias_slab_{dlabel}"])
    prob = out[:, 32]                                                 # sigmoid(result.squeeze(1))
    term = out[:, 0:32]                                               # (B, 32)
    return prob, term


# ---------------------- pure-JAX reference (f32) for correctness -----------------------
def _reference(params, ids, values, dlabel):
    offsets = params["offsets"]
    shared_emb = _features_embedding(params["emb_shared"], offsets, ids, values, jnp.float32)
    dom_emb = _features_embedding(params[f"emb_{dlabel}"], offsets, ids, values, jnp.float32)
    shared_term = shared_emb @ params["w_layer"] + params["b_layer"]
    dom_term = dom_emb @ params[f"w_{dlabel}_layer"] + params[f"b_{dlabel}_layer"]

    def gate(t):
        K = t @ params[f"{dlabel}_K_w"] + params[f"{dlabel}_K_b"]
        Q = t @ params[f"{dlabel}_Q_w"] + params[f"{dlabel}_Q_b"]
        V = t @ params[f"{dlabel}_V_w"] + params[f"{dlabel}_V_b"]
        return jnp.exp(jnp.sum(K * Q, axis=1, keepdims=True) / 6.0), V

    da, dV = gate(dom_term)
    sa, sV = gate(shared_term)
    term = da / (da + sa) * dV + sa / (da + sa) * sV
    bn_scale = 1.0 / np.sqrt(1.0 + BN_EPS)   # eval-mode BN: mean=0, var=1, affine identity
    h = jnp.maximum((term @ params["mlp_w0"] + params["mlp_b0"]) * bn_scale, 0.0)
    h = jnp.maximum((h @ params["mlp_w1"] + params["mlp_b1"]) * bn_scale, 0.0)
    mlp_out = h @ params["mlp_w2"] + params["mlp_b2"]
    lin_term = _features_linear(params["lin_fc"], params["lin_bias"], offsets, ids[:, -1, :])
    return jax.nn.sigmoid(lin_term + mlp_out)[:, 0], term


# ---------------------------------- parameter packing ----------------------------------
def _pack_domain(p, dom):
    """Per-domain kernel operands: (D,64) bf16 big-weight slab [W_shared | W_dom],
    (32,128) f32 small-weight slab [wK|wQ|wV|w0_bnfold|w1_bnfold(pad)], and an (8,128) f32
    bias slab with every segment lane-0 aligned in its own sublane row."""
    w_big = jnp.concatenate([p["w_layer"], p[f"w_{dom}_layer"]], axis=1).astype(jnp.bfloat16)

    bn_scale = float(1.0 / np.sqrt(1.0 + BN_EPS))   # eval-mode BN defaults (mean=0, var=1, id affine)
    w0f = p["mlp_w0"] * bn_scale                                       # (32, 16)
    w1f = p["mlp_w1"] * bn_scale                                       # (16, 16)
    w1p = jnp.zeros((32, MLP_DIMS[1]), jnp.float32).at[:MLP_DIMS[0], :].set(w1f)
    w_small = jnp.concatenate(
        [p[f"{dom}_K_w"], p[f"{dom}_Q_w"], p[f"{dom}_V_w"], w0f, w1p], axis=1)   # (32, 128)

    bias = jnp.zeros((8, 128), jnp.float32)
    bias = bias.at[0, 0:32].set(p["b_layer"][0])                       # shared layer bias
    bias = bias.at[1, 0:32].set(p[f"b_{dom}_layer"][0])                # domain layer bias
    bias = bias.at[2, 0:32].set(p[f"{dom}_K_b"][0])
    bias = bias.at[3, 0:32].set(p[f"{dom}_Q_b"][0])
    bias = bias.at[4, 0:32].set(p[f"{dom}_V_b"][0])
    bias = bias.at[5, 0:16].set(p["mlp_b0"][0] * bn_scale)             # BN0-folded bias (shift=0)
    bias = bias.at[6, 0:16].set(p["mlp_b1"][0] * bn_scale)             # BN1-folded bias (shift=0)
    bias = bias.at[7, 0:16].set(p["mlp_w2"][:, 0])                     # final-layer weight row
    return w_big, w_small, bias


def init_params(key):
    cnt = [0]

    def r(shape, s=0.02):
        cnt[0] += 1
        return jax.random.normal(jax.random.fold_in(key, cnt[0]), shape, jnp.float32) * s

    offsets = jnp.asarray(np.concatenate([[0], np.cumsum(FIELD_DIMS)[:-1]]), jnp.int32)
    p = {
        "offsets": offsets,
        "emb_shared": r((VOCAB, E)), "emb_src": r((VOCAB, E)), "emb_tgt": r((VOCAB, E)),
        "lin_fc": r((VOCAB, 1)), "lin_bias": r((1,)),
        "w_layer": r((D, 32)), "b_layer": r((1, 32)),
        "w_src_layer": r((D, 32)), "b_src_layer": r((1, 32)),
        "w_tgt_layer": r((D, 32)), "b_tgt_layer": r((1, 32)),
        "mlp_w0": r((32, MLP_DIMS[0])), "mlp_b0": r((1, MLP_DIMS[0])),
        "mlp_w1": r((MLP_DIMS[0], MLP_DIMS[1])), "mlp_b1": r((1, MLP_DIMS[1])),
        "mlp_w2": r((MLP_DIMS[1], 1)), "mlp_b2": r((1, 1)),
    }
    for dom in ("src", "tgt"):
        for nm in ("K", "Q", "V"):
            p[f"{dom}_{nm}_w"] = r((32, 32))
            p[f"{dom}_{nm}_b"] = r((1, 32))
    # pre-packed kernel operands (per domain)
    for dom in ("src", "tgt"):
        w_big, w_small, bias_slab = _pack_domain(p, dom)
        p[f"w_big_{dom}"] = w_big
        p[f"w_small_{dom}"] = w_small
        p[f"bias_slab_{dom}"] = bias_slab
        p[f"emb_stacked_{dom}"] = jnp.stack([p["emb_shared"], p[f"emb_{dom}"]], axis=0)
    return p


# --------------------------------------- main -------------------------------------------
if __name__ == "__main__":
    key = jax.random.PRNGKey(0)
    kp, ki, kv = jax.random.split(key, 3)
    params = init_params(kp)

    ids = jax.random.randint(ki, (B, L, F), 0, FIELD_DIMS[0], dtype=jnp.int32)
    values = jax.random.uniform(kv, (B, L, F), jnp.float32)
    seq_lengths = jnp.full((B, 1), L, jnp.int32)
    seq_mask = jnp.ones((B, L), jnp.float32)

    ok = True
    for dlabel in ("src", "tgt"):
        prob, term = wide_and_deep_forward(params, ids, values, seq_lengths, seq_mask, dlabel)
        jax.block_until_ready((prob, term))
        prob_ref, term_ref = _reference(params, ids, values, dlabel)
        ok &= bool(jnp.allclose(prob, prob_ref, rtol=2e-3, atol=2e-3))
        ok &= bool(jnp.allclose(term, term_ref, rtol=2e-3, atol=2e-3))

    print("KERNEL_OK" if ok else "KERNEL_MISMATCH")
</pallas_src>

<mosaic_0001>
module attributes {stable_mosaic.version = 11 : i64} {
  func.func @_wd_kernel(%arg0: memref<16x9856xbf16, #tpu.memory_space<vmem>>, %arg1: memref<9856x64xbf16, #tpu.memory_space<vmem>>, %arg2: memref<32x128xf32, #tpu.memory_space<vmem>>, %arg3: memref<8x128xf32, #tpu.memory_space<vmem>>, %arg4: memref<8x1xf32, #tpu.memory_space<vmem>>, %arg5: memref<8x128xf32, #tpu.memory_space<vmem>>) attributes {dimension_semantics = [], scalar_prefetch = 0 : i64, scratch_operands = 0 : i64, tpu.core_type = #tpu.core_type<tc>} {
    %c0 = arith.constant 0 : index
    %c0_0 = arith.constant 0 : index
    %0 = vector.load %arg0[%c0, %c0_0] : memref<16x9856xbf16, #tpu.memory_space<vmem>>, vector<16x9856xbf16>
    %c0_1 = arith.constant 0 : index
    %c0_2 = arith.constant 0 : index
    %1 = vector.load %arg1[%c0_1, %c0_2] : memref<9856x64xbf16, #tpu.memory_space<vmem>>, vector<9856x64xbf16>
    %cst = arith.constant dense<0.000000e+00> : vector<16x64xf32>
    %2 = tpu.matmul %0, %1, %cst {dimension_numbers = #tpu.dot_dimension_numbers<[1], [0], [0], [1], [0, 0, 1, 1], [], []>} : vector<16x9856xbf16>, vector<9856x64xbf16>, vector<16x64xf32> -> vector<16x64xf32>
    %c0_3 = arith.constant 0 : index
    %c0_4 = arith.constant 0 : index
    %3 = vector.load %arg3[%c0_3, %c0_4] : memref<8x128xf32, #tpu.memory_space<vmem>>, vector<8x128xf32>
    %4 = vector.extract_strided_slice %2 {offsets = [0, 0], sizes = [8, 32], strides = [1, 1]} : vector<16x64xf32> to vector<8x32xf32>
    %5 = vector.extract_strided_slice %3 {offsets = [0, 0], sizes = [1, 32], strides = [1, 1]} : vector<8x128xf32> to vector<1x32xf32>
    %6 = vector.broadcast %5 : vector<1x32xf32> to vector<8x32xf32>
    %7 = arith.addf %4, %6 : vector<8x32xf32>
    %8 = vector.extract_strided_slice %2 {offsets = [8, 32], sizes = [8, 32], strides = [1, 1]} : vector<16x64xf32> to vector<8x32xf32>
    %9 = vector.extract_strided_slice %3 {offsets = [1, 0], sizes = [1, 32], strides = [1, 1]} : vector<8x128xf32> to vector<1x32xf32>
    %10 = vector.broadcast %9 : vector<1x32xf32> to vector<8x32xf32>
    %11 = arith.addf %8, %10 : vector<8x32xf32>
    %12 = tpu.concatenate %11, %7 in 0 : vector<8x32xf32>, vector<8x32xf32> -> vector<16x32xf32>
    %c0_5 = arith.constant 0 : index
    %c0_6 = arith.constant 0 : index
    %13 = vector.load %arg2[%c0_5, %c0_6] : memref<32x128xf32, #tpu.memory_space<vmem>>, vector<32x128xf32>
    %cst_7 = arith.constant dense<0.000000e+00> : vector<16x128xf32>
    %14 = tpu.matmul %12, %13, %cst_7 {dimension_numbers = #tpu.dot_dimension_numbers<[1], [0], [0], [1], [0, 0, 1, 1], [], []>} : vector<16x32xf32>, vector<32x128xf32>, vector<16x128xf32> -> vector<16x128xf32>
    %15 = vector.extract_strided_slice %14 {offsets = [0, 0], sizes = [16, 32], strides = [1, 1]} : vector<16x128xf32> to vector<16x32xf32>
    %16 = vector.extract_strided_slice %3 {offsets = [2, 0], sizes = [1, 32], strides = [1, 1]} : vector<8x128xf32> to vector<1x32xf32>
    %17 = vector.broadcast %16 : vector<1x32xf32> to vector<16x32xf32>
    %18 = arith.addf %15, %17 : vector<16x32xf32>
    %19 = vector.extract_strided_slice %14 {offsets = [0, 32], sizes = [16, 32], strides = [1, 1]} : vector<16x128xf32> to vector<16x32xf32>
    %20 = vector.extract_strided_slice %3 {offsets = [3, 0], sizes = [1, 32], strides = [1, 1]} : vector<8x128xf32> to vector<1x32xf32>
    %21 = vector.broadcast %20 : vector<1x32xf32> to vector<16x32xf32>
    %22 = arith.addf %19, %21 : vector<16x32xf32>
    %23 = vector.extract_strided_slice %14 {offsets = [0, 64], sizes = [16, 32], strides = [1, 1]} : vector<16x128xf32> to vector<16x32xf32>
    %24 = vector.extract_strided_slice %3 {offsets = [4, 0], sizes = [1, 32], strides = [1, 1]} : vector<8x128xf32> to vector<1x32xf32>
    %25 = vector.broadcast %24 : vector<1x32xf32> to vector<16x32xf32>
    %26 = arith.addf %23, %25 : vector<16x32xf32>
    %27 = arith.mulf %18, %22 : vector<16x32xf32>
    %cst_8 = arith.constant dense<0.000000e+00> : vector<16xf32>
    %28 = vector.multi_reduction <add>, %27, %cst_8 [1] : vector<16x32xf32> to vector<16xf32>
    %29 = vector.shape_cast %28 : vector<16xf32> to vector<16x1xf32>
    %cst_9 = arith.constant 0.166666672 : f32
    %30 = vector.broadcast %cst_9 : f32 to vector<16x1xf32>
    %31 = arith.mulf %29, %30 : vector<16x1xf32>
    %32 = vector.extract_strided_slice %31 {offsets = [0, 0], sizes = [8, 1], strides = [1, 1]} : vector<16x1xf32> to vector<8x1xf32>
    %33 = vector.extract_strided_slice %31 {offsets = [8, 0], sizes = [8, 1], strides = [1, 1]} : vector<16x1xf32> to vector<8x1xf32>
    %34 = vector.extract_strided_slice %26 {offsets = [0, 0], sizes = [8, 32], strides = [1, 1]} : vector<16x32xf32> to vector<8x32xf32>
    %35 = vector.extract_strided_slice %26 {offsets = [8, 0], sizes = [8, 32], strides = [1, 1]} : vector<16x32xf32> to vector<8x32xf32>
    %36 = arith.maximumf %32, %33 : vector<8x1xf32>
    %37 = arith.subf %32, %36 : vector<8x1xf32>
    %38 = math.exp %37 : vector<8x1xf32>
    %39 = arith.subf %33, %36 : vector<8x1xf32>
    %40 = math.exp %39 : vector<8x1xf32>
    %41 = arith.addf %38, %40 : vector<8x1xf32>
    %42 = tpu.reciprocal %41 : vector<8x1xf32> -> vector<8x1xf32>
    %43 = arith.mulf %38, %42 : vector<8x1xf32>
    %44 = vector.broadcast %43 : vector<8x1xf32> to vector<8x32xf32>
    %45 = arith.mulf %44, %34 : vector<8x32xf32>
    %46 = arith.mulf %40, %42 : vector<8x1xf32>
    %47 = vector.broadcast %46 : vector<8x1xf32> to vector<8x32xf32>
    %48 = arith.mulf %47, %35 : vector<8x32xf32>
    %49 = arith.addf %45, %48 : vector<8x32xf32>
    %50 = vector.extract_strided_slice %13 {offsets = [0, 96], sizes = [32, 16], strides = [1, 1]} : vector<32x128xf32> to vector<32x16xf32>
    %51 = vector.extract_strided_slice %13 {offsets = [0, 112], sizes = [16, 16], strides = [1, 1]} : vector<32x128xf32> to vector<16x16xf32>
    %52 = vector.extract_strided_slice %3 {offsets = [5, 0], sizes = [1, 16], strides = [1, 1]} : vector<8x128xf32> to vector<1x16xf32>
    %53 = vector.extract_strided_slice %3 {offsets = [6, 0], sizes = [1, 16], strides = [1, 1]} : vector<8x128xf32> to vector<1x16xf32>
    %54 = vector.extract_strided_slice %3 {offsets = [7, 0], sizes = [1, 16], strides = [1, 1]} : vector<8x128xf32> to vector<1x16xf32>
    %cst_10 = arith.constant dense<0.000000e+00> : vector<8x16xf32>
    %55 = tpu.matmul %49, %50, %cst_10 {dimension_numbers = #tpu.dot_dimension_numbers<[1], [0], [0], [1], [0, 0, 1, 1], [], []>} : vector<8x32xf32>, vector<32x16xf32>, vector<8x16xf32> -> vector<8x16xf32>
    %56 = vector.broadcast %52 : vector<1x16xf32> to vector<8x16xf32>
    %57 = arith.addf %55, %56 : vector<8x16xf32>
    %cst_11 = arith.constant 0.000000e+00 : f32
    %58 = vector.broadcast %cst_11 : f32 to vector<8x16xf32>
    %59 = arith.maximumf %57, %58 : vector<8x16xf32>
    %cst_12 = arith.constant dense<0.000000e+00> : vector<8x16xf32>
    %60 = tpu.matmul %59, %51, %cst_12 {dimension_numbers = #tpu.dot_dimension_numbers<[1], [0], [0], [1], [0, 0, 1, 1], [], []>} : vector<8x16xf32>, vector<16x16xf32>, vector<8x16xf32> -> vector<8x16xf32>
    %61 = vector.broadcast %53 : vector<1x16xf32> to vector<8x16xf32>
    %62 = arith.addf %60, %61 : vector<8x16xf32>
    %cst_13 = arith.constant 0.000000e+00 : f32
    %63 = vector.broadcast %cst_13 : f32 to vector<8x16xf32>
    %64 = arith.maximumf %62, %63 : vector<8x16xf32>
    %65 = vector.broadcast %54 : vector<1x16xf32> to vector<8x16xf32>
    %66 = arith.mulf %64, %65 : vector<8x16xf32>
    %cst_14 = arith.constant dense<0.000000e+00> : vector<8xf32>
    %67 = vector.multi_reduction <add>, %66, %cst_14 [1] : vector<8x16xf32> to vector<8xf32>
    %68 = vector.shape_cast %67 : vector<8xf32> to vector<8x1xf32>
    %c0_15 = arith.constant 0 : index
    %c0_16 = arith.constant 0 : index
    %69 = vector.load %arg4[%c0_15, %c0_16] : memref<8x1xf32, #tpu.memory_space<vmem>>, vector<8x1xf32>
    %70 = arith.addf %69, %68 : vector<8x1xf32>
    %cst_17 = arith.constant 0.000000e+00 : f32
    %71 = vector.broadcast %cst_17 : f32 to vector<8x1xf32>
    %72 = arith.subf %71, %70 : vector<8x1xf32>
    %73 = math.exp %72 : vector<8x1xf32>
    %cst_18 = arith.constant 1.000000e+00 : f32
    %74 = vector.broadcast %cst_18 : f32 to vector<8x1xf32>
    %75 = arith.addf %74, %73 : vector<8x1xf32>
    %cst_19 = arith.constant 1.000000e+00 : f32
    %76 = vector.broadcast %cst_19 : f32 to vector<8x1xf32>
    %77 = arith.divf %76, %75 : vector<8x1xf32>
    %cst_20 = arith.constant 0.000000e+00 : f32
    %78 = vector.broadcast %cst_20 : f32 to vector<8x95xf32>
    %79 = tpu.concatenate %49, %77, %78 in 1 : vector<8x32xf32>, vector<8x1xf32>, vector<8x95xf32> -> vector<8x128xf32>
    %c0_21 = arith.constant 0 : index
    %c0_22 = arith.constant 0 : index
    %80 = vector.load %arg5[%c0_21, %c0_22] : memref<8x128xf32, #tpu.memory_space<vmem>>, vector<8x128xf32>
    tpu.vector_store %arg5[%c0_21, %c0_22], %79 {strides = array<i32>} : memref<8x128xf32, #tpu.memory_space<vmem>>, vector<8x128xf32>,
    return
  }
}

</mosaic_0001>

<llo_original>
// kernel: tpu_custom_call.1
$region0: #{tpu_custom_call.1}
  #allocation0 [shape = 'u32[]', space=smem, size = 0x4, offset = 0x4, fixed_abs, tag = 'smem constant byte address 0x4 - core index']
  #allocation1 [shape = 'u32[144,128]{1,0:T(1,128)}', space=vmem, size = 0x12000, scoped, tag = 'internal scratch']
  %s0 = inlined_call_operand.vmem [shape: bf16[16,9856], index: 0, kind: input, shape index: {}]
  %s1 = inlined_call_operand.vmem [shape: bf16[9856,64], index: 1, kind: input, shape index: {}]
  %s2 = inlined_call_operand.vmem [shape: f32[32,128], index: 2, kind: input, shape index: {}]
  %s3 = inlined_call_operand.vmem [shape: f32[8,128], index: 3, kind: input, shape index: {}]
  %s4 = inlined_call_operand.vmem [shape: f32[8,1], index: 4, kind: input, shape index: {}]
  %s5 = inlined_call_operand.hbm [shape: f32[8,128], index: 5, kind: output, shape index: {}]
  %s6 = sld [smem:[#allocation0]]
  $region30: #{tpu_custom_call.1} parent=0
    _
  %s8 = ssub.s32 1, %s6
  %s9 = scalar_select 0, %s8, %s6
  $region1: #{tpu_custom_call.1} parent=0
    #allocation2 [shape = 'u8[4096]{0}', space=vmem, size = 0x1000, scoped, tag = 'output window, operand 0, single buffered']
    #allocation3 [shape = 's32[1]{0}', space=sflag, size = 0x4, scoped, tag = 'scoped memory for tpu_custom_call.1']
    %10 = vsyncpa [#allocation3], 0
    // Predicated region
    $region2: #{tpu_custom_call.1} parent=1 // pred_check
      _
    $region3: #{tpu_custom_call.1} parent=1 // pred_check_branch
      %12 = sbr.rel (0) target = $region5
    $region4: #{tpu_custom_call.1} parent=1 // pred_region
      _
    $region5: #{tpu_custom_call.1} parent=1 // pred_fallthru
      _
    // Predicated region
    $region6: #{tpu_custom_call.1} parent=1 // pred_check
      _
    $region7: #{tpu_custom_call.1} parent=1 // pred_check_branch
      %14 = sbr.rel (0) target = $region9
    $region8: #{tpu_custom_call.1} parent=1 // pred_region
      _
    $region9: #{tpu_custom_call.1} parent=1 // pred_fallthru
      _
    // Predicated region
    $region10: #{tpu_custom_call.1} parent=1 // pred_check
      _
    $region11: #{tpu_custom_call.1} parent=1 // pred_check_branch
      %16 = sbr.rel (0) target = $region13
    $region12: #{tpu_custom_call.1} parent=1 // pred_region
      _
    $region13: #{tpu_custom_call.1} parent=1 // pred_fallthru
      _
    // Predicated region
    $region14: #{tpu_custom_call.1} parent=1 // pred_check
      _
    $region15: #{tpu_custom_call.1} parent=1 // pred_check_branch
      %18 = sbr.rel (0) target = $region17
    $region16: #{tpu_custom_call.1} parent=1 // pred_region
      _
    $region17: #{tpu_custom_call.1} parent=1 // pred_fallthru
      _
    // Predicated region
    $region18: #{tpu_custom_call.1} parent=1 // pred_check
      _
    $region19: #{tpu_custom_call.1} parent=1 // pred_check_branch
      %20 = sbr.rel (0) target = $region21
    $region20: #{tpu_custom_call.1} parent=1 // pred_region
      _
    $region21: #{tpu_custom_call.1} parent=1 // pred_fallthru
      _
    %v22 = vld [vmem:[%s0] sm:$0xff]
    %v23 = vld [vmem:[%s0 + $0x8] sm:$0xff]
    %v24 = vld [vmem:[%s0 + $0x10] sm:$0xff]
    %v25 = vld [vmem:[%s0 + $0x18] sm:$0xff]
    %v26 = vld [vmem:[%s0 + $0x20] sm:$0xff]
    %v27 = vld [vmem:[%s0 + $0x28] sm:$0xff]
    %v28 = vld [vmem:[%s0 + $0x30] sm:$0xff]
    %v29 = vld [vmem:[%s0 + $0x38] sm:$0xff]
    %v30 = vld [vmem:[%s0 + $0x40] sm:$0xff]
    %v31 = vld [vmem:[%s0 + $0x48] sm:$0xff]
    %v32 = vld [vmem:[%s0 + $0x50] sm:$0xff]
    %v33 = vld [vmem:[%s0 + $0x58] sm:$0xff]
    %v34 = vld [vmem:[%s0 + $0x60] sm:$0xff]
    %v35 = vld [vmem:[%s0 + $0x68] sm:$0xff]
    %v36 = vld [vmem:[%s0 + $0x70] sm:$0xff]
    %v37 = vld [vmem:[%s0 + $0x78] sm:$0xff]
    %v38 = vld [vmem:[%s0 + $0x80] sm:$0xff]
    %v39 = vld [vmem:[%s0 + $0x88] sm:$0xff]
    %v40 = vld [vmem:[%s0 + $0x90] sm:$0xff]
    %v41 = vld [vmem:[%s0 + $0x98] sm:$0xff]
    %v42 = vld [vmem:[%s0 + $0xa0] sm:$0xff]
    %v43 = vld [vmem:[%s0 + $0xa8] sm:$0xff]
    %v44 = vld [vmem:[%s0 + $0xb0] sm:$0xff]
    %v45 = vld [vmem:[%s0 + $0xb8] sm:$0xff]
    %v46 = vld [vmem:[%s0 + $0xc0] sm:$0xff]
    %v47 = vld [vmem:[%s0 + $0xc8] sm:$0xff]
    %v48 = vld [vmem:[%s0 + $0xd0] sm:$0xff]
    %v49 = vld [vmem:[%s0 + $0xd8] sm:$0xff]
    %v50 = vld [vmem:[%s0 + $0xe0] sm:$0xff]
    %v51 = vld [vmem:[%s0 + $0xe8] sm:$0xff]
    %v52 = vld [vmem:[%s0 + $0xf0] sm:$0xff]
    %v53 = vld [vmem:[%s0 + $0xf8] sm:$0xff]
    %v54 = vld [vmem:[%s0 + $0x100] sm:$0xff]
    %v55 = vld [vmem:[%s0 + $0x108] sm:$0xff]
    %v56 = vld [vmem:[%s0 + $0x110] sm:$0xff]
    %v57 = vld [vmem:[%s0 + $0x118] sm:$0xff]
    %v58 = vld [vmem:[%s0 + $0x120] sm:$0xff]
    %v59 = vld [vmem:[%s0 + $0x128] sm:$0xff]
    %v60 = vld [vmem:[%s0 + $0x130] sm:$0xf]
    %v61 = vld [vmem:[%s0 + $0x134] sm:$0xff]
    %v62 = vld [vmem:[%s0 + $0x13c] sm:$0xff]
    %v63 = vld [vmem:[%s0 + $0x144] sm:$0xff]
    %v64 = vld [vmem:[%s0 + $0x14c] sm:$0xff]
    %v65 = vld [vmem:[%s0 + $0x154] sm:$0xff]
    %v66 = vld [vmem:[%s0 + $0x15c] sm:$0xff]
    %v67 = vld [vmem:[%s0 + $0x164] sm:$0xff]
    %v68 = vld [vmem:[%s0 + $0x16c] sm:$0xff]
    %v69 = vld [vmem:[%s0 + $0x174] sm:$0xff]
    %v70 = vld [vmem:[%s0 + $0x17c] sm:$0xff]
    %v71 = vld [vmem:[%s0 + $0x184] sm:$0xff]
    %v72 = vld [vmem:[%s0 + $0x18c] sm:$0xff]
    %v73 = vld [vmem:[%s0 + $0x194] sm:$0xff]
    %v74 = vld [vmem:[%s0 + $0x19c] sm:$0xff]
    %v75 = vld [vmem:[%s0 + $0x1a4] sm:$0xff]
    %v76 = vld [vmem:[%s0 + $0x1ac] sm:$0xff]
    %v77 = vld [vmem:[%s0 + $0x1b4] sm:$0xff]
    %v78 = vld [vmem:[%s0 + $0x1bc] sm:$0xff]
    %v79 = vld [vmem:[%s0 + $0x1c4] sm:$0xff]
    %v80 = vld [vmem:[%s0 + $0x1cc] sm:$0xff]
    %v81 = vld [vmem:[%s0 + $0x1d4] sm:$0xff]
    %v82 = vld [vmem:[%s0 + $0x1dc] sm:$0xff]
    %v83 = vld [vmem:[%s0 + $0x1e4] sm:$0xff]
    %v84 = vld [vmem:[%s0 + $0x1ec] sm:$0xff]
    %v85 = vld [vmem:[%s0 + $0x1f4] sm:$0xff]
    %v86 = vld [vmem:[%s0 + $0x1fc] sm:$0xff]
    %v87 = vld [vmem:[%s0 + $0x204] sm:$0xff]
    %v88 = vld [vmem:[%s0 + $0x20c] sm:$0xff]
    %v89 = vld [vmem:[%s0 + $0x214] sm:$0xff]
    %v90 = vld [vmem:[%s0 + $0x21c] sm:$0xff]
    %v91 = vld [vmem:[%s0 + $0x224] sm:$0xff]
    %v92 = vld [vmem:[%s0 + $0x22c] sm:$0xff]
    %v93 = vld [vmem:[%s0 + $0x234] sm:$0xff]
    %v94 = vld [vmem:[%s0 + $0x23c] sm:$0xff]
    %v95 = vld [vmem:[%s0 + $0x244] sm:$0xff]
    %v96 = vld [vmem:[%s0 + $0x24c] sm:$0xff]
    %v97 = vld [vmem:[%s0 + $0x254] sm:$0xff]
    %v98 = vld [vmem:[%s0 + $0x25c] sm:$0xff]
    %v99 = vld [vmem:[%s0 + $0x264] sm:$0xf]
    %v100 = vld [vmem:[%s1] sm:$0xf]
    %v101 = vld [vmem:[%s1 + $0x4] sm:$0xf]
    %v102 = vld [vmem:[%s1 + $0x8] sm:$0xf]
    %v103 = vld [vmem:[%s1 + $0xc] sm:$0xf]
    %v104 = vld [vmem:[%s1 + $0x10] sm:$0xf]
    %v105 = vld [vmem:[%s1 + $0x14] sm:$0xf]
    %v106 = vld [vmem:[%s1 + $0x18] sm:$0xf]
    %v107 = vld [vmem:[%s1 + $0x1c] sm:$0xf]
    %v108 = vld [vmem:[%s1 + $0x20] sm:$0xf]
    %v109 = vld [vmem:[%s1 + $0x24] sm:$0xf]
    %v110 = vld [vmem:[%s1 + $0x28] sm:$0xf]
    %v111 = vld [vmem:[%s1 + $0x2c] sm:$0xf]
    %v112 = vld [vmem:[%s1 + $0x30] sm:$0xf]
    %v113 = vld [vmem:[%s1 + $0x34] sm:$0xf]
    %v114 = vld [vmem:[%s1 + $0x38] sm:$0xf]
    %v115 = vld [vmem:[%s1 + $0x3c] sm:$0xf]
    %v116 = vld [vmem:[%s1 + $0x40] sm:$0xf]
    %v117 = vld [vmem:[%s1 + $0x44] sm:$0xf]
    %v118 = vld [vmem:[%s1 + $0x48] sm:$0xf]
    %v119 = vld [vmem:[%s1 + $0x4c] sm:$0xf]
    %v120 = vld [vmem:[%s1 + $0x50] sm:$0xf]
    %v121 = vld [vmem:[%s1 + $0x54] sm:$0xf]
    %v122 = vld [vmem:[%s1 + $0x58] sm:$0xf]
    %v123 = vld [vmem:[%s1 + $0x5c] sm:$0xf]
    %v124 = vld [vmem:[%s1 + $0x60] sm:$0xf]
    %v125 = vld [vmem:[%s1 + $0x64] sm:$0xf]
    %v126 = vld [vmem:[%s1 + $0x68] sm:$0xf]
    %v127 = vld [vmem:[%s1 + $0x6c] sm:$0xf]
    %v128 = vld [vmem:[%s1 + $0x70] sm:$0xf]
    %v129 = vld [vmem:[%s1 + $0x74] sm:$0xf]
    %v130 = vld [vmem:[%s1 + $0x78] sm:$0xf]
    %v131 = vld [vmem:[%s1 + $0x7c] sm:$0xf]
    %v132 = vld [vmem:[%s1 + $0x80] sm:$0xf]
    %v133 = vld [vmem:[%s1 + $0x84] sm:$0xf]
    %v134 = vld [vmem:[%s1 + $0x88] sm:$0xf]
    %v135 = vld [vmem:[%s1 + $0x8c] sm:$0xf]
    %v136 = vld [vmem:[%s1 + $0x90] sm:$0xf]
    %v137 = vld [vmem:[%s1 + $0x94] sm:$0xf]
    %v138 = vld [vmem:[%s1 + $0x98] sm:$0xf]
    %v139 = vld [vmem:[%s1 + $0x9c] sm:$0xf]
    %v140 = vld [vmem:[%s1 + $0xa0] sm:$0xf]
    %v141 = vld [vmem:[%s1 + $0xa4] sm:$0xf]
    %v142 = vld [vmem:[%s1 + $0xa8] sm:$0xf]
    %v143 = vld [vmem:[%s1 + $0xac] sm:$0xf]
    %v144 = vld [vmem:[%s1 + $0xb0] sm:$0xf]
    %v145 = vld [vmem:[%s1 + $0xb4] sm:$0xf]
    %v146 = vld [vmem:[%s1 + $0xb8] sm:$0xf]
    %v147 = vld [vmem:[%s1 + $0xbc] sm:$0xf]
    %v148 = vld [vmem:[%s1 + $0xc0] sm:$0xf]
    %v149 = vld [vmem:[%s1 + $0xc4] sm:$0xf]
    %v150 = vld [vmem:[%s1 + $0xc8] sm:$0xf]
    %v151 = vld [vmem:[%s1 + $0xcc] sm:$0xf]
    %v152 = vld [vmem:[%s1 + $0xd0] sm:$0xf]
    %v153 = vld [vmem:[%s1 + $0xd4] sm:$0xf]
    %v154 = vld [vmem:[%s1 + $0xd8] sm:$0xf]
    %v155 = vld [vmem:[%s1 + $0xdc] sm:$0xf]
    %v156 = vld [vmem:[%s1 + $0xe0] sm:$0xf]
    %v157 = vld [vmem:[%s1 + $0xe4] sm:$0xf]
    %v158 = vld [vmem:[%s1 + $0xe8] sm:$0xf]
    %v159 = vld [vmem:[%s1 + $0xec] sm:$0xf]
    %v160 = vld [vmem:[%s1 + $0xf0] sm:$0xf]
    %v161 = vld [vmem:[%s1 + $0xf4] sm:$0xf]
    %v162 = vld [vmem:[%s1 + $0xf8] sm:$0xf]
    %v163 = vld [vmem:[%s1 + $0xfc] sm:$0xf]
    %v164 = vld [vmem:[%s1 + $0x100] sm:$0xf]
    %v165 = vld [vmem:[%s1 + $0x104] sm:$0xf]
    %v166 = vld [vmem:[%s1 + $0x108] sm:$0xf]
    %v167 = vld [vmem:[%s1 + $0x10c] sm:$0xf]
    %v168 = vld [vmem:[%s1 + $0x110] sm:$0xf]
    %v169 = vld [vmem:[%s1 + $0x114] sm:$0xf]
    %v170 = vld [vmem:[%s1 + $0x118] sm:$0xf]
    %v171 = vld [vmem:[%s1 + $0x11c] sm:$0xf]
    %v172 = vld [vmem:[%s1 + $0x120] sm:$0xf]
    %v173 = vld [vmem:[%s1 + $0x124] sm:$0xf]
    %v174 = vld [vmem:[%s1 + $0x128] sm:$0xf]
    %v175 = vld [vmem:[%s1 + $0x12c] sm:$0xf]
    %v176 = vld [vmem:[%s1 + $0x130] sm:$0xf]
    %v177 = vld [vmem:[%s1 + $0x134] sm:$0xf]
    %v178 = vld [vmem:[%s1 + $0x138] sm:$0xf]
    %v179 = vld [vmem:[%s1 + $0x13c] sm:$0xf]
    %v180 = vld [vmem:[%s1 + $0x140] sm:$0xf]
    %v181 = vld [vmem:[%s1 + $0x144] sm:$0xf]
    %v182 = vld [vmem:[%s1 + $0x148] sm:$0xf]
    %v183 = vld [vmem:[%s1 + $0x14c] sm:$0xf]
    %v184 = vld [vmem:[%s1 + $0x150] sm:$0xf]
    %v185 = vld [vmem:[%s1 + $0x154] sm:$0xf]
    %v186 = vld [vmem:[%s1 + $0x158] sm:$0xf]
    %v187 = vld [vmem:[%s1 + $0x15c] sm:$0xf]
    %v188 = vld [vmem:[%s1 + $0x160] sm:$0xf]
    %v189 = vld [vmem:[%s1 + $0x164] sm:$0xf]
    %v190 = vld [vmem:[%s1 + $0x168] sm:$0xf]
    %v191 = vld [vmem:[%s1 + $0x16c] sm:$0xf]
    %v192 = vld [vmem:[%s1 + $0x170] sm:$0xf]
    %v193 = vld [vmem:[%s1 + $0x174] sm:$0xf]
    %v194 = vld [vmem:[%s1 + $0x178] sm:$0xf]
    %v195 = vld [vmem:[%s1 + $0x17c] sm:$0xf]
    %v196 = vld [vmem:[%s1 + $0x180] sm:$0xf]
    %v197 = vld [vmem:[%s1 + $0x184] sm:$0xf]
    %v198 = vld [vmem:[%s1 + $0x188] sm:$0xf]
    %v199 = vld [vmem:[%s1 + $0x18c] sm:$0xf]
    %v200 = vld [vmem:[%s1 + $0x190] sm:$0xf]
    %v201 = vld [vmem:[%s1 + $0x194] sm:$0xf]
    %v202 = vld [vmem:[%s1 + $0x198] sm:$0xf]
    %v203 = vld [vmem:[%s1 + $0x19c] sm:$0xf]
    %v204 = vld [vmem:[%s1 + $0x1a0] sm:$0xf]
    %v205 = vld [vmem:[%s1 + $0x1a4] sm:$0xf]
    %v206 = vld [vmem:[%s1 + $0x1a8] sm:$0xf]
    %v207 = vld [vmem:[%s1 + $0x1ac] sm:$0xf]
    %v208 = vld [vmem:[%s1 + $0x1b0] sm:$0xf]
    %v209 = vld [vmem:[%s1 + $0x1b4] sm:$0xf]
    %v210 = vld [vmem:[%s1 + $0x1b8] sm:$0xf]
    %v211 = vld [vmem:[%s1 + $0x1bc] sm:$0xf]
    %v212 = vld [vmem:[%s1 + $0x1c0] sm:$0xf]
    %v213 = vld [vmem:[%s1 + $0x1c4] sm:$0xf]
    %v214 = vld [vmem:[%s1 + $0x1c8] sm:$0xf]
    %v215 = vld [vmem:[%s1 + $0x1cc] sm:$0xf]
    %v216 = vld [vmem:[%s1 + $0x1d0] sm:$0xf]
    %v217 = vld [vmem:[%s1 + $0x1d4] sm:$0xf]
    %v218 = vld [vmem:[%s1 + $0x1d8] sm:$0xf]
    %v219 = vld [vmem:[%s1 + $0x1dc] sm:$0xf]
    %v220 = vld [vmem:[%s1 + $0x1e0] sm:$0xf]
    %v221 = vld [vmem:[%s1 + $0x1e4] sm:$0xf]
    %v222 = vld [vmem:[%s1 + $0x1e8] sm:$0xf]
    %v223 = vld [vmem:[%s1 + $0x1ec] sm:$0xf]
    %v224 = vld [vmem:[%s1 + $0x1f0] sm:$0xf]
    %v225 = vld [vmem:[%s1 + $0x1f4] sm:$0xf]
    %v226 = vld [vmem:[%s1 + $0x1f8] sm:$0xf]
    %v227 = vld [vmem:[%s1 + $0x1fc] sm:$0xf]
    %v228 = vld [vmem:[%s1 + $0x200] sm:$0xf]
    %v229 = vld [vmem:[%s1 + $0x204] sm:$0xf]
    %v230 = vld [vmem:[%s1 + $0x208] sm:$0xf]
    %v231 = vld [vmem:[%s1 + $0x20c] sm:$0xf]
    %v232 = vld [vmem:[%s1 + $0x210] sm:$0xf]
    %v233 = vld [vmem:[%s1 + $0x214] sm:$0xf]
    %v234 = vld [vmem:[%s1 + $0x218] sm:$0xf]
    %v235 = vld [vmem:[%s1 + $0x21c] sm:$0xf]
    %v236 = vld [vmem:[%s1 + $0x220] sm:$0xf]
    %v237 = vld [vmem:[%s1 + $0x224] sm:$0xf]
    %v238 = vld [vmem:[%s1 + $0x228] sm:$0xf]
    %v239 = vld [vmem:[%s1 + $0x22c] sm:$0xf]
    %v240 = vld [vmem:[%s1 + $0x230] sm:$0xf]
    %v241 = vld [vmem:[%s1 + $0x234] sm:$0xf]
    %v242 = vld [vmem:[%s1 + $0x238] sm:$0xf]
    %v243 = vld [vmem:[%s1 + $0x23c] sm:$0xf]
    %v244 = vld [vmem:[%s1 + $0x240] sm:$0xf]
    %v245 = vld [vmem:[%s1 + $0x244] sm:$0xf]
    %v246 = vld [vmem:[%s1 + $0x248] sm:$0xf]
    %v247 = vld [vmem:[%s1 + $0x24c] sm:$0xf]
    %v248 = vld [vmem:[%s1 + $0x250] sm:$0xf]
    %v249 = vld [vmem:[%s1 + $0x254] sm:$0xf]
    %v250 = vld [vmem:[%s1 + $0x258] sm:$0xf]
    %v251 = vld [vmem:[%s1 + $0x25c] sm:$0xf]
    %v252 = vld [vmem:[%s1 + $0x260] sm:$0xf]
    %v253 = vld [vmem:[%s1 + $0x264] sm:$0xf]
    %v254 = vld [vmem:[%s1 + $0x268] sm:$0xf]
    %v255 = vld [vmem:[%s1 + $0x26c] sm:$0xf]
    %v256 = vld [vmem:[%s1 + $0x270] sm:$0xf]
    %v257 = vld [vmem:[%s1 + $0x274] sm:$0xf]
    %v258 = vld [vmem:[%s1 + $0x278] sm:$0xf]
    %v259 = vld [vmem:[%s1 + $0x27c] sm:$0xf]
    %v260 = vld [vmem:[%s1 + $0x280] sm:$0xf]
    %v261 = vld [vmem:[%s1 + $0x284] sm:$0xf]
    %v262 = vld [vmem:[%s1 + $0x288] sm:$0xf]
    %v263 = vld [vmem:[%s1 + $0x28c] sm:$0xf]
    %v264 = vld [vmem:[%s1 + $0x290] sm:$0xf]
    %v265 = vld [vmem:[%s1 + $0x294] sm:$0xf]
    %v266 = vld [vmem:[%s1 + $0x298] sm:$0xf]
    %v267 = vld [vmem:[%s1 + $0x29c] sm:$0xf]
    %v268 = vld [vmem:[%s1 + $0x2a0] sm:$0xf]
    %v269 = vld [vmem:[%s1 + $0x2a4] sm:$0xf]
    %v270 = vld [vmem:[%s1 + $0x2a8] sm:$0xf]
    %v271 = vld [vmem:[%s1 + $0x2ac] sm:$0xf]
    %v272 = vld [vmem:[%s1 + $0x2b0] sm:$0xf]
    %v273 = vld [vmem:[%s1 + $0x2b4] sm:$0xf]
    %v274 = vld [vmem:[%s1 + $0x2b8] sm:$0xf]
    %v275 = vld [vmem:[%s1 + $0x2bc] sm:$0xf]
    %v276 = vld [vmem:[%s1 + $0x2c0] sm:$0xf]
    %v277 = vld [vmem:[%s1 + $0x2c4] sm:$0xf]
    %v278 = vld [vmem:[%s1 + $0x2c8] sm:$0xf]
    %v279 = vld [vmem:[%s1 + $0x2cc] sm:$0xf]
    %v280 = vld [vmem:[%s1 + $0x2d0] sm:$0xf]
    %v281 = vld [vmem:[%s1 + $0x2d4] sm:$0xf]
    %v282 = vld [vmem:[%s1 + $0x2d8] sm:$0xf]
    %v283 = vld [vmem:[%s1 + $0x2dc] sm:$0xf]
    %v284 = vld [vmem:[%s1 + $0x2e0] sm:$0xf]
    %v285 = vld [vmem:[%s1 + $0x2e4] sm:$0xf]
    %v286 = vld [vmem:[%s1 + $0x2e8] sm:$0xf]
    %v287 = vld [vmem:[%s1 + $0x2ec] sm:$0xf]
    %v288 = vld [vmem:[%s1 + $0x2f0] sm:$0xf]
    %v289 = vld [vmem:[%s1 + $0x2f4] sm:$0xf]
    %v290 = vld [vmem:[%s1 + $0x2f8] sm:$0xf]
    %v291 = vld [vmem:[%s1 + $0x2fc] sm:$0xf]
    %v292 = vld [vmem:[%s1 + $0x300] sm:$0xf]
    %v293 = vld [vmem:[%s1 + $0x304] sm:$0xf]
    %v294 = vld [vmem:[%s1 + $0x308] sm:$0xf]
    %v295 = vld [vmem:[%s1 + $0x30c] sm:$0xf]
    %v296 = vld [vmem:[%s1 + $0x310] sm:$0xf]
    %v297 = vld [vmem:[%s1 + $0x314] sm:$0xf]
    %v298 = vld [vmem:[%s1 + $0x318] sm:$0xf]
    %v299 = vld [vmem:[%s1 + $0x31c] sm:$0xf]
    %v300 = vld [vmem:[%s1 + $0x320] sm:$0xf]
    %v301 = vld [vmem:[%s1 + $0x324] sm:$0xf]
    %v302 = vld [vmem:[%s1 + $0x328] sm:$0xf]
    %v303 = vld [vmem:[%s1 + $0x32c] sm:$0xf]
    %v304 = vld [vmem:[%s1 + $0x330] sm:$0xf]
    %v305 = vld [vmem:[%s1 + $0x334] sm:$0xf]
    %v306 = vld [vmem:[%s1 + $0x338] sm:$0xf]
    %v307 = vld [vmem:[%s1 + $0x33c] sm:$0xf]
    %v308 = vld [vmem:[%s1 + $0x340] sm:$0xf]
    %v309 = vld [vmem:[%s1 + $0x344] sm:$0xf]
    %v310 = vld [vmem:[%s1 + $0x348] sm:$0xf]
    %v311 = vld [vmem:[%s1 + $0x34c] sm:$0xf]
    %v312 = vld [vmem:[%s1 + $0x350] sm:$0xf]
    %v313 = vld [vmem:[%s1 + $0x354] sm:$0xf]
    %v314 = vld [vmem:[%s1 + $0x358] sm:$0xf]
    %v315 = vld [vmem:[%s1 + $0x35c] sm:$0xf]
    %v316 = vld [vmem:[%s1 + $0x360] sm:$0xf]
    %v317 = vld [vmem:[%s1 + $0x364] sm:$0xf]
    %v318 = vld [vmem:[%s1 + $0x368] sm:$0xf]
    %v319 = vld [vmem:[%s1 + $0x36c] sm:$0xf]
    %v320 = vld [vmem:[%s1 + $0x370] sm:$0xf]
    %v321 = vld [vmem:[%s1 + $0x374] sm:$0xf]
    %v322 = vld [vmem:[%s1 + $0x378] sm:$0xf]
    %v323 = vld [vmem:[%s1 + $0x37c] sm:$0xf]
    %v324 = vld [vmem:[%s1 + $0x380] sm:$0xf]
    %v325 = vld [vmem:[%s1 + $0x384] sm:$0xf]
    %v326 = vld [vmem:[%s1 + $0x388] sm:$0xf]
    %v327 = vld [vmem:[%s1 + $0x38c] sm:$0xf]
    %v328 = vld [vmem:[%s1 + $0x390] sm:$0xf]
    %v329 = vld [vmem:[%s1 + $0x394] sm:$0xf]
    %v330 = vld [vmem:[%s1 + $0x398] sm:$0xf]
    %v331 = vld [vmem:[%s1 + $0x39c] sm:$0xf]
    %v332 = vld [vmem:[%s1 + $0x3a0] sm:$0xf]
    %v333 = vld [vmem:[%s1 + $0x3a4] sm:$0xf]
    %v334 = vld [vmem:[%s1 + $0x3a8] sm:$0xf]
    %v335 = vld [vmem:[%s1 + $0x3ac] sm:$0xf]
    %v336 = vld [vmem:[%s1 + $0x3b0] sm:$0xf]
    %v337 = vld [vmem:[%s1 + $0x3b4] sm:$0xf]
    %v338 = vld [vmem:[%s1 + $0x3b8] sm:$0xf]
    %v339 = vld [vmem:[%s1 + $0x3bc] sm:$0xf]
    %v340 = vld [vmem:[%s1 + $0x3c0] sm:$0xf]
    %v341 = vld [vmem:[%s1 + $0x3c4] sm:$0xf]
    %v342 = vld [vmem:[%s1 + $0x3c8] sm:$0xf]
    %v343 = vld [vmem:[%s1 + $0x3cc] sm:$0xf]
    %v344 = vld [vmem:[%s1 + $0x3d0] sm:$0xf]
    %v345 = vld [vmem:[%s1 + $0x3d4] sm:$0xf]
    %v346 = vld [vmem:[%s1 + $0x3d8] sm:$0xf]
    %v347 = vld [vmem:[%s1 + $0x3dc] sm:$0xf]
    %v348 = vld [vmem:[%s1 + $0x3e0] sm:$0xf]
    %v349 = vld [vmem:[%s1 + $0x3e4] sm:$0xf]
    %v350 = vld [vmem:[%s1 + $0x3e8] sm:$0xf]
    %v351 = vld [vmem:[%s1 + $0x3ec] sm:$0xf]
    %v352 = vld [vmem:[%s1 + $0x3f0] sm:$0xf]
    %v353 = vld [vmem:[%s1 + $0x3f4] sm:$0xf]
    %v354 = vld [vmem:[%s1 + $0x3f8] sm:$0xf]
    %v355 = vld [vmem:[%s1 + $0x3fc] sm:$0xf]
    %v356 = vld [vmem:[%s1 + $0x400] sm:$0xf]
    %v357 = vld [vmem:[%s1 + $0x404] sm:$0xf]
    %v358 = vld [vmem:[%s1 + $0x408] sm:$0xf]
    %v359 = vld [vmem:[%s1 + $0x40c] sm:$0xf]
    %v360 = vld [vmem:[%s1 + $0x410] sm:$0xf]
    %v361 = vld [vmem:[%s1 + $0x414] sm:$0xf]
    %v362 = vld [vmem:[%s1 + $0x418] sm:$0xf]
    %v363 = vld [vmem:[%s1 + $0x41c] sm:$0xf]
    %v364 = vld [vmem:[%s1 + $0x420] sm:$0xf]
    %v365 = vld [vmem:[%s1 + $0x424] sm:$0xf]
    %v366 = vld [vmem:[%s1 + $0x428] sm:$0xf]
    %v367 = vld [vmem:[%s1 + $0x42c] sm:$0xf]
    %v368 = vld [vmem:[%s1 + $0x430] sm:$0xf]
    %v369 = vld [vmem:[%s1 + $0x434] sm:$0xf]
    %v370 = vld [vmem:[%s1 + $0x438] sm:$0xf]
    %v371 = vld [vmem:[%s1 + $0x43c] sm:$0xf]
    %v372 = vld [vmem:[%s1 + $0x440] sm:$0xf]
    %v373 = vld [vmem:[%s1 + $0x444] sm:$0xf]
    %v374 = vld [vmem:[%s1 + $0x448] sm:$0xf]
    %v375 = vld [vmem:[%s1 + $0x44c] sm:$0xf]
    %v376 = vld [vmem:[%s1 + $0x450] sm:$0xf]
    %v377 = vld [vmem:[%s1 + $0x454] sm:$0xf]
    %v378 = vld [vmem:[%s1 + $0x458] sm:$0xf]
    %v379 = vld [vmem:[%s1 + $0x45c] sm:$0xf]
    %v380 = vld [vmem:[%s1 + $0x460] sm:$0xf]
    %v381 = vld [vmem:[%s1 + $0x464] sm:$0xf]
    %v382 = vld [vmem:[%s1 + $0x468] sm:$0xf]
    %v383 = vld [vmem:[%s1 + $0x46c] sm:$0xf]
    %v384 = vld [vmem:[%s1 + $0x470] sm:$0xf]
    %v385 = vld [vmem:[%s1 + $0x474] sm:$0xf]
    %v386 = vld [vmem:[%s1 + $0x478] sm:$0xf]
    %v387 = vld [vmem:[%s1 + $0x47c] sm:$0xf]
    %v388 = vld [vmem:[%s1 + $0x480] sm:$0xf]
    %v389 = vld [vmem:[%s1 + $0x484] sm:$0xf]
    %v390 = vld [vmem:[%s1 + $0x488] sm:$0xf]
    %v391 = vld [vmem:[%s1 + $0x48c] sm:$0xf]
    %v392 = vld [vmem:[%s1 + $0x490] sm:$0xf]
    %v393 = vld [vmem:[%s1 + $0x494] sm:$0xf]
    %v394 = vld [vmem:[%s1 + $0x498] sm:$0xf]
    %v395 = vld [vmem:[%s1 + $0x49c] sm:$0xf]
    %v396 = vld [vmem:[%s1 + $0x4a0] sm:$0xf]
    %v397 = vld [vmem:[%s1 + $0x4a4] sm:$0xf]
    %v398 = vld [vmem:[%s1 + $0x4a8] sm:$0xf]
    %v399 = vld [vmem:[%s1 + $0x4ac] sm:$0xf]
    %v400 = vld [vmem:[%s1 + $0x4b0] sm:$0xf]
    %v401 = vld [vmem:[%s1 + $0x4b4] sm:$0xf]
    %v402 = vld [vmem:[%s1 + $0x4b8] sm:$0xf]
    %v403 = vld [vmem:[%s1 + $0x4bc] sm:$0xf]
    %v404 = vld [vmem:[%s1 + $0x4c0] sm:$0xf]
    %v405 = vld [vmem:[%s1 + $0x4c4] sm:$0xf]
    %v406 = vld [vmem:[%s1 + $0x4c8] sm:$0xf]
    %v407 = vld [vmem:[%s1 + $0x4cc] sm:$0xf]
    %v408 = vld [vmem:[%s1 + $0x4d0] sm:$0xf]
    %v409 = vld [vmem:[%s1 + $0x4d4] sm:$0xf]
    %v410 = vld [vmem:[%s1 + $0x4d8] sm:$0xf]
    %v411 = vld [vmem:[%s1 + $0x4dc] sm:$0xf]
    %v412 = vld [vmem:[%s1 + $0x4e0] sm:$0xf]
    %v413 = vld [vmem:[%s1 + $0x4e4] sm:$0xf]
    %v414 = vld [vmem:[%s1 + $0x4e8] sm:$0xf]
    %v415 = vld [vmem:[%s1 + $0x4ec] sm:$0xf]
    %v416 = vld [vmem:[%s1 + $0x4f0] sm:$0xf]
    %v417 = vld [vmem:[%s1 + $0x4f4] sm:$0xf]
    %v418 = vld [vmem:[%s1 + $0x4f8] sm:$0xf]
    %v419 = vld [vmem:[%s1 + $0x4fc] sm:$0xf]
    %v420 = vld [vmem:[%s1 + $0x500] sm:$0xf]
    %v421 = vld [vmem:[%s1 + $0x504] sm:$0xf]
    %v422 = vld [vmem:[%s1 + $0x508] sm:$0xf]
    %v423 = vld [vmem:[%s1 + $0x50c] sm:$0xf]
    %v424 = vld [vmem:[%s1 + $0x510] sm:$0xf]
    %v425 = vld [vmem:[%s1 + $0x514] sm:$0xf]
    %v426 = vld [vmem:[%s1 + $0x518] sm:$0xf]
    %v427 = vld [vmem:[%s1 + $0x51c] sm:$0xf]
    %v428 = vld [vmem:[%s1 + $0x520] sm:$0xf]
    %v429 = vld [vmem:[%s1 + $0x524] sm:$0xf]
    %v430 = vld [vmem:[%s1 + $0x528] sm:$0xf]
    %v431 = vld [vmem:[%s1 + $0x52c] sm:$0xf]
    %v432 = vld [vmem:[%s1 + $0x530] sm:$0xf]
    %v433 = vld [vmem:[%s1 + $0x534] sm:$0xf]
    %v434 = vld [vmem:[%s1 + $0x538] sm:$0xf]
    %v435 = vld [vmem:[%s1 + $0x53c] sm:$0xf]
    %v436 = vld [vmem:[%s1 + $0x540] sm:$0xf]
    %v437 = vld [vmem:[%s1 + $0x544] sm:$0xf]
    %v438 = vld [vmem:[%s1 + $0x548] sm:$0xf]
    %v439 = vld [vmem:[%s1 + $0x54c] sm:$0xf]
    %v440 = vld [vmem:[%s1 + $0x550] sm:$0xf]
    %v441 = vld [vmem:[%s1 + $0x554] sm:$0xf]
    %v442 = vld [vmem:[%s1 + $0x558] sm:$0xf]
    %v443 = vld [vmem:[%s1 + $0x55c] sm:$0xf]
    %v444 = vld [vmem:[%s1 + $0x560] sm:$0xf]
    %v445 = vld [vmem:[%s1 + $0x564] sm:$0xf]
    %v446 = vld [vmem:[%s1 + $0x568] sm:$0xf]
    %v447 = vld [vmem:[%s1 + $0x56c] sm:$0xf]
    %v448 = vld [vmem:[%s1 + $0x570] sm:$0xf]
    %v449 = vld [vmem:[%s1 + $0x574] sm:$0xf]
    %v450 = vld [vmem:[%s1 + $0x578] sm:$0xf]
    %v451 = vld [vmem:[%s1 + $0x57c] sm:$0xf]
    %v452 = vld [vmem:[%s1 + $0x580] sm:$0xf]
    %v453 = vld [vmem:[%s1 + $0x584] sm:$0xf]
    %v454 = vld [vmem:[%s1 + $0x588] sm:$0xf]
    %v455 = vld [vmem:[%s1 + $0x58c] sm:$0xf]
    %v456 = vld [vmem:[%s1 + $0x590] sm:$0xf]
    %v457 = vld [vmem:[%s1 + $0x594] sm:$0xf]
    %v458 = vld [vmem:[%s1 + $0x598] sm:$0xf]
    %v459 = vld [vmem:[%s1 + $0x59c] sm:$0xf]
    %v460 = vld [vmem:[%s1 + $0x5a0] sm:$0xf]
    %v461 = vld [vmem:[%s1 + $0x5a4] sm:$0xf]
    %v462 = vld [vmem:[%s1 + $0x5a8] sm:$0xf]
    %v463 = vld [vmem:[%s1 + $0x5ac] sm:$0xf]
    %v464 = vld [vmem:[%s1 + $0x5b0] sm:$0xf]
    %v465 = vld [vmem:[%s1 + $0x5b4] sm:$0xf]
    %v466 = vld [vmem:[%s1 + $0x5b8] sm:$0xf]
    %v467 = vld [vmem:[%s1 + $0x5bc] sm:$0xf]
    %v468 = vld [vmem:[%s1 + $0x5c0] sm:$0xf]
    %v469 = vld [vmem:[%s1 + $0x5c4] sm:$0xf]
    %v470 = vld [vmem:[%s1 + $0x5c8] sm:$0xf]
    %v471 = vld [vmem:[%s1 + $0x5cc] sm:$0xf]
    %v472 = vld [vmem:[%s1 + $0x5d0] sm:$0xf]
    %v473 = vld [vmem:[%s1 + $0x5d4] sm:$0xf]
    %v474 = vld [vmem:[%s1 + $0x5d8] sm:$0xf]
    %v475 = vld [vmem:[%s1 + $0x5dc] sm:$0xf]
    %v476 = vld [vmem:[%s1 + $0x5e0] sm:$0xf]
    %v477 = vld [vmem:[%s1 + $0x5e4] sm:$0xf]
    %v478 = vld [vmem:[%s1 + $0x5e8] sm:$0xf]
    %v479 = vld [vmem:[%s1 + $0x5ec] sm:$0xf]
    %v480 = vld [vmem:[%s1 + $0x5f0] sm:$0xf]
    %v481 = vld [vmem:[%s1 + $0x5f4] sm:$0xf]
    %v482 = vld [vmem:[%s1 + $0x5f8] sm:$0xf]
    %v483 = vld [vmem:[%s1 + $0x5fc] sm:$0xf]
    %v484 = vld [vmem:[%s1 + $0x600] sm:$0xf]
    %v485 = vld [vmem:[%s1 + $0x604] sm:$0xf]
    %v486 = vld [vmem:[%s1 + $0x608] sm:$0xf]
    %v487 = vld [vmem:[%s1 + $0x60c] sm:$0xf]
    %v488 = vld [vmem:[%s1 + $0x610] sm:$0xf]
    %v489 = vld [vmem:[%s1 + $0x614] sm:$0xf]
    %v490 = vld [vmem:[%s1 + $0x618] sm:$0xf]
    %v491 = vld [vmem:[%s1 + $0x61c] sm:$0xf]
    %v492 = vld [vmem:[%s1 + $0x620] sm:$0xf]
    %v493 = vld [vmem:[%s1 + $0x624] sm:$0xf]
    %v494 = vld [vmem:[%s1 + $0x628] sm:$0xf]
    %v495 = vld [vmem:[%s1 + $0x62c] sm:$0xf]
    %v496 = vld [vmem:[%s1 + $0x630] sm:$0xf]
    %v497 = vld [vmem:[%s1 + $0x634] sm:$0xf]
    %v498 = vld [vmem:[%s1 + $0x638] sm:$0xf]
    %v499 = vld [vmem:[%s1 + $0x63c] sm:$0xf]
    %v500 = vld [vmem:[%s1 + $0x640] sm:$0xf]
    %v501 = vld [vmem:[%s1 + $0x644] sm:$0xf]
    %v502 = vld [vmem:[%s1 + $0x648] sm:$0xf]
    %v503 = vld [vmem:[%s1 + $0x64c] sm:$0xf]
    %v504 = vld [vmem:[%s1 + $0x650] sm:$0xf]
    %v505 = vld [vmem:[%s1 + $0x654] sm:$0xf]
    %v506 = vld [vmem:[%s1 + $0x658] sm:$0xf]
    %v507 = vld [vmem:[%s1 + $0x65c] sm:$0xf]
    %v508 = vld [vmem:[%s1 + $0x660] sm:$0xf]
    %v509 = vld [vmem:[%s1 + $0x664] sm:$0xf]
    %v510 = vld [vmem:[%s1 + $0x668] sm:$0xf]
    %v511 = vld [vmem:[%s1 + $0x66c] sm:$0xf]
    %v512 = vld [vmem:[%s1 + $0x670] sm:$0xf]
    %v513 = vld [vmem:[%s1 + $0x674] sm:$0xf]
    %v514 = vld [vmem:[%s1 + $0x678] sm:$0xf]
    %v515 = vld [vmem:[%s1 + $0x67c] sm:$0xf]
    %v516 = vld [vmem:[%s1 + $0x680] sm:$0xf]
    %v517 = vld [vmem:[%s1 + $0x684] sm:$0xf]
    %v518 = vld [vmem:[%s1 + $0x688] sm:$0xf]
    %v519 = vld [vmem:[%s1 + $0x68c] sm:$0xf]
    %v520 = vld [vmem:[%s1 + $0x690] sm:$0xf]
    %v521 = vld [vmem:[%s1 + $0x694] sm:$0xf]
    %v522 = vld [vmem:[%s1 + $0x698] sm:$0xf]
    %v523 = vld [vmem:[%s1 + $0x69c] sm:$0xf]
    %v524 = vld [vmem:[%s1 + $0x6a0] sm:$0xf]
    %v525 = vld [vmem:[%s1 + $0x6a4] sm:$0xf]
    %v526 = vld [vmem:[%s1 + $0x6a8] sm:$0xf]
    %v527 = vld [vmem:[%s1 + $0x6ac] sm:$0xf]
    %v528 = vld [vmem:[%s1 + $0x6b0] sm:$0xf]
    %v529 = vld [vmem:[%s1 + $0x6b4] sm:$0xf]
    %v530 = vld [vmem:[%s1 + $0x6b8] sm:$0xf]
    %v531 = vld [vmem:[%s1 + $0x6bc] sm:$0xf]
    %v532 = vld [vmem:[%s1 + $0x6c0] sm:$0xf]
    %v533 = vld [vmem:[%s1 + $0x6c4] sm:$0xf]
    %v534 = vld [vmem:[%s1 + $0x6c8] sm:$0xf]
    %v535 = vld [vmem:[%s1 + $0x6cc] sm:$0xf]
    %v536 = vld [vmem:[%s1 + $0x6d0] sm:$0xf]
    %v537 = vld [vmem:[%s1 + $0x6d4] sm:$0xf]
    %v538 = vld [vmem:[%s1 + $0x6d8] sm:$0xf]
    %v539 = vld [vmem:[%s1 + $0x6dc] sm:$0xf]
    %v540 = vld [vmem:[%s1 + $0x6e0] sm:$0xf]
    %v541 = vld [vmem:[%s1 + $0x6e4] sm:$0xf]
    %v542 = vld [vmem:[%s1 + $0x6e8] sm:$0xf]
    %v543 = vld [vmem:[%s1 + $0x6ec] sm:$0xf]
    %v544 = vld [vmem:[%s1 + $0x6f0] sm:$0xf]
    %v545 = vld [vmem:[%s1 + $0x6f4] sm:$0xf]
    %v546 = vld [vmem:[%s1 + $0x6f8] sm:$0xf]
    %v547 = vld [vmem:[%s1 + $0x6fc] sm:$0xf]
    %v548 = vld [vmem:[%s1 + $0x700] sm:$0xf]
    %v549 = vld [vmem:[%s1 + $0x704] sm:$0xf]
    %v550 = vld [vmem:[%s1 + $0x708] sm:$0xf]
    %v551 = vld [vmem:[%s1 + $0x70c] sm:$0xf]
    %v552 = vld [vmem:[%s1 + $0x710] sm:$0xf]
    %v553 = vld [vmem:[%s1 + $0x714] sm:$0xf]
    %v554 = vld [vmem:[%s1 + $0x718] sm:$0xf]
    %v555 = vld [vmem:[%s1 + $0x71c] sm:$0xf]
    %v556 = vld [vmem:[%s1 + $0x720] sm:$0xf]
    %v557 = vld [vmem:[%s1 + $0x724] sm:$0xf]
    %v558 = vld [vmem:[%s1 + $0x728] sm:$0xf]
    %v559 = vld [vmem:[%s1 + $0x72c] sm:$0xf]
    %v560 = vld [vmem:[%s1 + $0x730] sm:$0xf]
    %v561 = vld [vmem:[%s1 + $0x734] sm:$0xf]
    %v562 = vld [vmem:[%s1 + $0x738] sm:$0xf]
    %v563 = vld [vmem:[%s1 + $0x73c] sm:$0xf]
    %v564 = vld [vmem:[%s1 + $0x740] sm:$0xf]
    %v565 = vld [vmem:[%s1 + $0x744] sm:$0xf]
    %v566 = vld [vmem:[%s1 + $0x748] sm:$0xf]
    %v567 = vld [vmem:[%s1 + $0x74c] sm:$0xf]
    %v568 = vld [vmem:[%s1 + $0x750] sm:$0xf]
    %v569 = vld [vmem:[%s1 + $0x754] sm:$0xf]
    %v570 = vld [vmem:[%s1 + $0x758] sm:$0xf]
    %v571 = vld [vmem:[%s1 + $0x75c] sm:$0xf]
    %v572 = vld [vmem:[%s1 + $0x760] sm:$0xf]
    %v573 = vld [vmem:[%s1 + $0x764] sm:$0xf]
    %v574 = vld [vmem:[%s1 + $0x768] sm:$0xf]
    %v575 = vld [vmem:[%s1 + $0x76c] sm:$0xf]
    %v576 = vld [vmem:[%s1 + $0x770] sm:$0xf]
    %v577 = vld [vmem:[%s1 + $0x774] sm:$0xf]
    %v578 = vld [vmem:[%s1 + $0x778] sm:$0xf]
    %v579 = vld [vmem:[%s1 + $0x77c] sm:$0xf]
    %v580 = vld [vmem:[%s1 + $0x780] sm:$0xf]
    %v581 = vld [vmem:[%s1 + $0x784] sm:$0xf]
    %v582 = vld [vmem:[%s1 + $0x788] sm:$0xf]
    %v583 = vld [vmem:[%s1 + $0x78c] sm:$0xf]
    %v584 = vld [vmem:[%s1 + $0x790] sm:$0xf]
    %v585 = vld [vmem:[%s1 + $0x794] sm:$0xf]
    %v586 = vld [vmem:[%s1 + $0x798] sm:$0xf]
    %v587 = vld [vmem:[%s1 + $0x79c] sm:$0xf]
    %v588 = vld [vmem:[%s1 + $0x7a0] sm:$0xf]
    %v589 = vld [vmem:[%s1 + $0x7a4] sm:$0xf]
    %v590 = vld [vmem:[%s1 + $0x7a8] sm:$0xf]
    %v591 = vld [vmem:[%s1 + $0x7ac] sm:$0xf]
    %v592 = vld [vmem:[%s1 + $0x7b0] sm:$0xf]
    %v593 = vld [vmem:[%s1 + $0x7b4] sm:$0xf]
    %v594 = vld [vmem:[%s1 + $0x7b8] sm:$0xf]
    %v595 = vld [vmem:[%s1 + $0x7bc] sm:$0xf]
    %v596 = vld [vmem:[%s1 + $0x7c0] sm:$0xf]
    %v597 = vld [vmem:[%s1 + $0x7c4] sm:$0xf]
    %v598 = vld [vmem:[%s1 + $0x7c8] sm:$0xf]
    %v599 = vld [vmem:[%s1 + $0x7cc] sm:$0xf]
    %v600 = vld [vmem:[%s1 + $0x7d0] sm:$0xf]
    %v601 = vld [vmem:[%s1 + $0x7d4] sm:$0xf]
    %v602 = vld [vmem:[%s1 + $0x7d8] sm:$0xf]
    %v603 = vld [vmem:[%s1 + $0x7dc] sm:$0xf]
    %v604 = vld [vmem:[%s1 + $0x7e0] sm:$0xf]
    %v605 = vld [vmem:[%s1 + $0x7e4] sm:$0xf]
    %v606 = vld [vmem:[%s1 + $0x7e8] sm:$0xf]
    %v607 = vld [vmem:[%s1 + $0x7ec] sm:$0xf]
    %v608 = vld [vmem:[%s1 + $0x7f0] sm:$0xf]
    %v609 = vld [vmem:[%s1 + $0x7f4] sm:$0xf]
    %v610 = vld [vmem:[%s1 + $0x7f8] sm:$0xf]
    %v611 = vld [vmem:[%s1 + $0x7fc] sm:$0xf]
    %v612 = vld [vmem:[%s1 + $0x800] sm:$0xf]
    %v613 = vld [vmem:[%s1 + $0x804] sm:$0xf]
    %v614 = vld [vmem:[%s1 + $0x808] sm:$0xf]
    %v615 = vld [vmem:[%s1 + $0x80c] sm:$0xf]
    %v616 = vld [vmem:[%s1 + $0x810] sm:$0xf]
    %v617 = vld [vmem:[%s1 + $0x814] sm:$0xf]
    %v618 = vld [vmem:[%s1 + $0x818] sm:$0xf]
    %v619 = vld [vmem:[%s1 + $0x81c] sm:$0xf]
    %v620 = vld [vmem:[%s1 + $0x820] sm:$0xf]
    %v621 = vld [vmem:[%s1 + $0x824] sm:$0xf]
    %v622 = vld [vmem:[%s1 + $0x828] sm:$0xf]
    %v623 = vld [vmem:[%s1 + $0x82c] sm:$0xf]
    %v624 = vld [vmem:[%s1 + $0x830] sm:$0xf]
    %v625 = vld [vmem:[%s1 + $0x834] sm:$0xf]
    %v626 = vld [vmem:[%s1 + $0x838] sm:$0xf]
    %v627 = vld [vmem:[%s1 + $0x83c] sm:$0xf]
    %v628 = vld [vmem:[%s1 + $0x840] sm:$0xf]
    %v629 = vld [vmem:[%s1 + $0x844] sm:$0xf]
    %v630 = vld [vmem:[%s1 + $0x848] sm:$0xf]
    %v631 = vld [vmem:[%s1 + $0x84c] sm:$0xf]
    %v632 = vld [vmem:[%s1 + $0x850] sm:$0xf]
    %v633 = vld [vmem:[%s1 + $0x854] sm:$0xf]
    %v634 = vld [vmem:[%s1 + $0x858] sm:$0xf]
    %v635 = vld [vmem:[%s1 + $0x85c] sm:$0xf]
    %v636 = vld [vmem:[%s1 + $0x860] sm:$0xf]
    %v637 = vld [vmem:[%s1 + $0x864] sm:$0xf]
    %v638 = vld [vmem:[%s1 + $0x868] sm:$0xf]
    %v639 = vld [vmem:[%s1 + $0x86c] sm:$0xf]
    %v640 = vld [vmem:[%s1 + $0x870] sm:$0xf]
    %v641 = vld [vmem:[%s1 + $0x874] sm:$0xf]
    %v642 = vld [vmem:[%s1 + $0x878] sm:$0xf]
    %v643 = vld [vmem:[%s1 + $0x87c] sm:$0xf]
    %v644 = vld [vmem:[%s1 + $0x880] sm:$0xf]
    %v645 = vld [vmem:[%s1 + $0x884] sm:$0xf]
    %v646 = vld [vmem:[%s1 + $0x888] sm:$0xf]
    %v647 = vld [vmem:[%s1 + $0x88c] sm:$0xf]
    %v648 = vld [vmem:[%s1 + $0x890] sm:$0xf]
    %v649 = vld [vmem:[%s1 + $0x894] sm:$0xf]
    %v650 = vld [vmem:[%s1 + $0x898] sm:$0xf]
    %v651 = vld [vmem:[%s1 + $0x89c] sm:$0xf]
    %v652 = vld [vmem:[%s1 + $0x8a0] sm:$0xf]
    %v653 = vld [vmem:[%s1 + $0x8a4] sm:$0xf]
    %v654 = vld [vmem:[%s1 + $0x8a8] sm:$0xf]
    %v655 = vld [vmem:[%s1 + $0x8ac] sm:$0xf]
    %v656 = vld [vmem:[%s1 + $0x8b0] sm:$0xf]
    %v657 = vld [vmem:[%s1 + $0x8b4] sm:$0xf]
    %v658 = vld [vmem:[%s1 + $0x8b8] sm:$0xf]
    %v659 = vld [vmem:[%s1 + $0x8bc] sm:$0xf]
    %v660 = vld [vmem:[%s1 + $0x8c0] sm:$0xf]
    %v661 = vld [vmem:[%s1 + $0x8c4] sm:$0xf]
    %v662 = vld [vmem:[%s1 + $0x8c8] sm:$0xf]
    %v663 = vld [vmem:[%s1 + $0x8cc] sm:$0xf]
    %v664 = vld [vmem:[%s1 + $0x8d0] sm:$0xf]
    %v665 = vld [vmem:[%s1 + $0x8d4] sm:$0xf]
    %v666 = vld [vmem:[%s1 + $0x8d8] sm:$0xf]
    %v667 = vld [vmem:[%s1 + $0x8dc] sm:$0xf]
    %v668 = vld [vmem:[%s1 + $0x8e0] sm:$0xf]
    %v669 = vld [vmem:[%s1 + $0x8e4] sm:$0xf]
    %v670 = vld [vmem:[%s1 + $0x8e8] sm:$0xf]
    %v671 = vld [vmem:[%s1 + $0x8ec] sm:$0xf]
    %v672 = vld [vmem:[%s1 + $0x8f0] sm:$0xf]
    %v673 = vld [vmem:[%s1 + $0x8f4] sm:$0xf]
    %v674 = vld [vmem:[%s1 + $0x8f8] sm:$0xf]
    %v675 = vld [vmem:[%s1 + $0x8fc] sm:$0xf]
    %v676 = vld [vmem:[%s1 + $0x900] sm:$0xf]
    %v677 = vld [vmem:[%s1 + $0x904] sm:$0xf]
    %v678 = vld [vmem:[%s1 + $0x908] sm:$0xf]
    %v679 = vld [vmem:[%s1 + $0x90c] sm:$0xf]
    %v680 = vld [vmem:[%s1 + $0x910] sm:$0xf]
    %v681 = vld [vmem:[%s1 + $0x914] sm:$0xf]
    %v682 = vld [vmem:[%s1 + $0x918] sm:$0xf]
    %v683 = vld [vmem:[%s1 + $0x91c] sm:$0xf]
    %v684 = vld [vmem:[%s1 + $0x920] sm:$0xf]
    %v685 = vld [vmem:[%s1 + $0x924] sm:$0xf]
    %v686 = vld [vmem:[%s1 + $0x928] sm:$0xf]
    %v687 = vld [vmem:[%s1 + $0x92c] sm:$0xf]
    %v688 = vld [vmem:[%s1 + $0x930] sm:$0xf]
    %v689 = vld [vmem:[%s1 + $0x934] sm:$0xf]
    %v690 = vld [vmem:[%s1 + $0x938] sm:$0xf]
    %v691 = vld [vmem:[%s1 + $0x93c] sm:$0xf]
    %v692 = vld [vmem:[%s1 + $0x940] sm:$0xf]
    %v693 = vld [vmem:[%s1 + $0x944] sm:$0xf]
    %v694 = vld [vmem:[%s1 + $0x948] sm:$0xf]
    %v695 = vld [vmem:[%s1 + $0x94c] sm:$0xf]
    %v696 = vld [vmem:[%s1 + $0x950] sm:$0xf]
    %v697 = vld [vmem:[%s1 + $0x954] sm:$0xf]
    %v698 = vld [vmem:[%s1 + $0x958] sm:$0xf]
    %v699 = vld [vmem:[%s1 + $0x95c] sm:$0xf]
    %v700 = vld [vmem:[%s1 + $0x960] sm:$0xf]
    %v701 = vld [vmem:[%s1 + $0x964] sm:$0xf]
    %v702 = vld [vmem:[%s1 + $0x968] sm:$0xf]
    %v703 = vld [vmem:[%s1 + $0x96c] sm:$0xf]
    %v704 = vld [vmem:[%s1 + $0x970] sm:$0xf]
    %v705 = vld [vmem:[%s1 + $0x974] sm:$0xf]
    %v706 = vld [vmem:[%s1 + $0x978] sm:$0xf]
    %v707 = vld [vmem:[%s1 + $0x97c] sm:$0xf]
    %v708 = vld [vmem:[%s1 + $0x980] sm:$0xf]
    %v709 = vld [vmem:[%s1 + $0x984] sm:$0xf]
    %v710 = vld [vmem:[%s1 + $0x988] sm:$0xf]
    %v711 = vld [vmem:[%s1 + $0x98c] sm:$0xf]
    %v712 = vld [vmem:[%s1 + $0x990] sm:$0xf]
    %v713 = vld [vmem:[%s1 + $0x994] sm:$0xf]
    %v714 = vld [vmem:[%s1 + $0x998] sm:$0xf]
    %v715 = vld [vmem:[%s1 + $0x99c] sm:$0xf]
    %v716 = vld [vmem:[%s1 + $0x9a0] sm:$0xf]
    %v717 = vld [vmem:[%s1 + $0x9a4] sm:$0xf]
    %v718 = vld [vmem:[%s1 + $0x9a8] sm:$0xf]
    %v719 = vld [vmem:[%s1 + $0x9ac] sm:$0xf]
    %v720 = vld [vmem:[%s1 + $0x9b0] sm:$0xf]
    %v721 = vld [vmem:[%s1 + $0x9b4] sm:$0xf]
    %v722 = vld [vmem:[%s1 + $0x9b8] sm:$0xf]
    %v723 = vld [vmem:[%s1 + $0x9bc] sm:$0xf]
    %v724 = vld [vmem:[%s1 + $0x9c0] sm:$0xf]
    %v725 = vld [vmem:[%s1 + $0x9c4] sm:$0xf]
    %v726 = vld [vmem:[%s1 + $0x9c8] sm:$0xf]
    %v727 = vld [vmem:[%s1 + $0x9cc] sm:$0xf]
    %v728 = vld [vmem:[%s1 + $0x9d0] sm:$0xf]
    %v729 = vld [vmem:[%s1 + $0x9d4] sm:$0xf]
    %v730 = vld [vmem:[%s1 + $0x9d8] sm:$0xf]
    %v731 = vld [vmem:[%s1 + $0x9dc] sm:$0xf]
    %v732 = vld [vmem:[%s1 + $0x9e0] sm:$0xf]
    %v733 = vld [vmem:[%s1 + $0x9e4] sm:$0xf]
    %v734 = vld [vmem:[%s1 + $0x9e8] sm:$0xf]
    %v735 = vld [vmem:[%s1 + $0x9ec] sm:$0xf]
    %v736 = vld [vmem:[%s1 + $0x9f0] sm:$0xf]
    %v737 = vld [vmem:[%s1 + $0x9f4] sm:$0xf]
    %v738 = vld [vmem:[%s1 + $0x9f8] sm:$0xf]
    %v739 = vld [vmem:[%s1 + $0x9fc] sm:$0xf]
    %v740 = vld [vmem:[%s1 + $0xa00] sm:$0xf]
    %v741 = vld [vmem:[%s1 + $0xa04] sm:$0xf]
    %v742 = vld [vmem:[%s1 + $0xa08] sm:$0xf]
    %v743 = vld [vmem:[%s1 + $0xa0c] sm:$0xf]
    %v744 = vld [vmem:[%s1 + $0xa10] sm:$0xf]
    %v745 = vld [vmem:[%s1 + $0xa14] sm:$0xf]
    %v746 = vld [vmem:[%s1 + $0xa18] sm:$0xf]
    %v747 = vld [vmem:[%s1 + $0xa1c] sm:$0xf]
    %v748 = vld [vmem:[%s1 + $0xa20] sm:$0xf]
    %v749 = vld [vmem:[%s1 + $0xa24] sm:$0xf]
    %v750 = vld [vmem:[%s1 + $0xa28] sm:$0xf]
    %v751 = vld [vmem:[%s1 + $0xa2c] sm:$0xf]
    %v752 = vld [vmem:[%s1 + $0xa30] sm:$0xf]
    %v753 = vld [vmem:[%s1 + $0xa34] sm:$0xf]
    %v754 = vld [vmem:[%s1 + $0xa38] sm:$0xf]
    %v755 = vld [vmem:[%s1 + $0xa3c] sm:$0xf]
    %v756 = vld [vmem:[%s1 + $0xa40] sm:$0xf]
    %v757 = vld [vmem:[%s1 + $0xa44] sm:$0xf]
    %v758 = vld [vmem:[%s1 + $0xa48] sm:$0xf]
    %v759 = vld [vmem:[%s1 + $0xa4c] sm:$0xf]
    %v760 = vld [vmem:[%s1 + $0xa50] sm:$0xf]
    %v761 = vld [vmem:[%s1 + $0xa54] sm:$0xf]
    %v762 = vld [vmem:[%s1 + $0xa58] sm:$0xf]
    %v763 = vld [vmem:[%s1 + $0xa5c] sm:$0xf]
    %v764 = vld [vmem:[%s1 + $0xa60] sm:$0xf]
    %v765 = vld [vmem:[%s1 + $0xa64] sm:$0xf]
    %v766 = vld [vmem:[%s1 + $0xa68] sm:$0xf]
    %v767 = vld [vmem:[%s1 + $0xa6c] sm:$0xf]
    %v768 = vld [vmem:[%s1 + $0xa70] sm:$0xf]
    %v769 = vld [vmem:[%s1 + $0xa74] sm:$0xf]
    %v770 = vld [vmem:[%s1 + $0xa78] sm:$0xf]
    %v771 = vld [vmem:[%s1 + $0xa7c] sm:$0xf]
    %v772 = vld [vmem:[%s1 + $0xa80] sm:$0xf]
    %v773 = vld [vmem:[%s1 + $0xa84] sm:$0xf]
    %v774 = vld [vmem:[%s1 + $0xa88] sm:$0xf]
    %v775 = vld [vmem:[%s1 + $0xa8c] sm:$0xf]
    %v776 = vld [vmem:[%s1 + $0xa90] sm:$0xf]
    %v777 = vld [vmem:[%s1 + $0xa94] sm:$0xf]
    %v778 = vld [vmem:[%s1 + $0xa98] sm:$0xf]
    %v779 = vld [vmem:[%s1 + $0xa9c] sm:$0xf]
    %v780 = vld [vmem:[%s1 + $0xaa0] sm:$0xf]
    %v781 = vld [vmem:[%s1 + $0xaa4] sm:$0xf]
    %v782 = vld [vmem:[%s1 + $0xaa8] sm:$0xf]
    %v783 = vld [vmem:[%s1 + $0xaac] sm:$0xf]
    %v784 = vld [vmem:[%s1 + $0xab0] sm:$0xf]
    %v785 = vld [vmem:[%s1 + $0xab4] sm:$0xf]
    %v786 = vld [vmem:[%s1 + $0xab8] sm:$0xf]
    %v787 = vld [vmem:[%s1 + $0xabc] sm:$0xf]
    %v788 = vld [vmem:[%s1 + $0xac0] sm:$0xf]
    %v789 = vld [vmem:[%s1 + $0xac4] sm:$0xf]
    %v790 = vld [vmem:[%s1 + $0xac8] sm:$0xf]
    %v791 = vld [vmem:[%s1 + $0xacc] sm:$0xf]
    %v792 = vld [vmem:[%s1 + $0xad0] sm:$0xf]
    %v793 = vld [vmem:[%s1 + $0xad4] sm:$0xf]
    %v794 = vld [vmem:[%s1 + $0xad8] sm:$0xf]
    %v795 = vld [vmem:[%s1 + $0xadc] sm:$0xf]
    %v796 = vld [vmem:[%s1 + $0xae0] sm:$0xf]
    %v797 = vld [vmem:[%s1 + $0xae4] sm:$0xf]
    %v798 = vld [vmem:[%s1 + $0xae8] sm:$0xf]
    %v799 = vld [vmem:[%s1 + $0xaec] sm:$0xf]
    %v800 = vld [vmem:[%s1 + $0xaf0] sm:$0xf]
    %v801 = vld [vmem:[%s1 + $0xaf4] sm:$0xf]
    %v802 = vld [vmem:[%s1 + $0xaf8] sm:$0xf]
    %v803 = vld [vmem:[%s1 + $0xafc] sm:$0xf]
    %v804 = vld [vmem:[%s1 + $0xb00] sm:$0xf]
    %v805 = vld [vmem:[%s1 + $0xb04] sm:$0xf]
    %v806 = vld [vmem:[%s1 + $0xb08] sm:$0xf]
    %v807 = vld [vmem:[%s1 + $0xb0c] sm:$0xf]
    %v808 = vld [vmem:[%s1 + $0xb10] sm:$0xf]
    %v809 = vld [vmem:[%s1 + $0xb14] sm:$0xf]
    %v810 = vld [vmem:[%s1 + $0xb18] sm:$0xf]
    %v811 = vld [vmem:[%s1 + $0xb1c] sm:$0xf]
    %v812 = vld [vmem:[%s1 + $0xb20] sm:$0xf]
    %v813 = vld [vmem:[%s1 + $0xb24] sm:$0xf]
    %v814 = vld [vmem:[%s1 + $0xb28] sm:$0xf]
    %v815 = vld [vmem:[%s1 + $0xb2c] sm:$0xf]
    %v816 = vld [vmem:[%s1 + $0xb30] sm:$0xf]
    %v817 = vld [vmem:[%s1 + $0xb34] sm:$0xf]
    %v818 = vld [vmem:[%s1 + $0xb38] sm:$0xf]
    %v819 = vld [vmem:[%s1 + $0xb3c] sm:$0xf]
    %v820 = vld [vmem:[%s1 + $0xb40] sm:$0xf]
    %v821 = vld [vmem:[%s1 + $0xb44] sm:$0xf]
    %v822 = vld [vmem:[%s1 + $0xb48] sm:$0xf]
    %v823 = vld [vmem:[%s1 + $0xb4c] sm:$0xf]
    %v824 = vld [vmem:[%s1 + $0xb50] sm:$0xf]
    %v825 = vld [vmem:[%s1 + $0xb54] sm:$0xf]
    %v826 = vld [vmem:[%s1 + $0xb58] sm:$0xf]
    %v827 = vld [vmem:[%s1 + $0xb5c] sm:$0xf]
    %v828 = vld [vmem:[%s1 + $0xb60] sm:$0xf]
    %v829 = vld [vmem:[%s1 + $0xb64] sm:$0xf]
    %v830 = vld [vmem:[%s1 + $0xb68] sm:$0xf]
    %v831 = vld [vmem:[%s1 + $0xb6c] sm:$0xf]
    %v832 = vld [vmem:[%s1 + $0xb70] sm:$0xf]
    %v833 = vld [vmem:[%s1 + $0xb74] sm:$0xf]
    %v834 = vld [vmem:[%s1 + $0xb78] sm:$0xf]
    %v835 = vld [vmem:[%s1 + $0xb7c] sm:$0xf]
    %v836 = vld [vmem:[%s1 + $0xb80] sm:$0xf]
    %v837 = vld [vmem:[%s1 + $0xb84] sm:$0xf]
    %v838 = vld [vmem:[%s1 + $0xb88] sm:$0xf]
    %v839 = vld [vmem:[%s1 + $0xb8c] sm:$0xf]
    %v840 = vld [vmem:[%s1 + $0xb90] sm:$0xf]
    %v841 = vld [vmem:[%s1 + $0xb94] sm:$0xf]
    %v842 = vld [vmem:[%s1 + $0xb98] sm:$0xf]
    %v843 = vld [vmem:[%s1 + $0xb9c] sm:$0xf]
    %v844 = vld [vmem:[%s1 + $0xba0] sm:$0xf]
    %v845 = vld [vmem:[%s1 + $0xba4] sm:$0xf]
    %v846 = vld [vmem:[%s1 + $0xba8] sm:$0xf]
    %v847 = vld [vmem:[%s1 + $0xbac] sm:$0xf]
    %v848 = vld [vmem:[%s1 + $0xbb0] sm:$0xf]
    %v849 = vld [vmem:[%s1 + $0xbb4] sm:$0xf]
    %v850 = vld [vmem:[%s1 + $0xbb8] sm:$0xf]
    %v851 = vld [vmem:[%s1 + $0xbbc] sm:$0xf]
    %v852 = vld [vmem:[%s1 + $0xbc0] sm:$0xf]
    %v853 = vld [vmem:[%s1 + $0xbc4] sm:$0xf]
    %v854 = vld [vmem:[%s1 + $0xbc8] sm:$0xf]
    %v855 = vld [vmem:[%s1 + $0xbcc] sm:$0xf]
    %v856 = vld [vmem:[%s1 + $0xbd0] sm:$0xf]
    %v857 = vld [vmem:[%s1 + $0xbd4] sm:$0xf]
    %v858 = vld [vmem:[%s1 + $0xbd8] sm:$0xf]
    %v859 = vld [vmem:[%s1 + $0xbdc] sm:$0xf]
    %v860 = vld [vmem:[%s1 + $0xbe0] sm:$0xf]
    %v861 = vld [vmem:[%s1 + $0xbe4] sm:$0xf]
    %v862 = vld [vmem:[%s1 + $0xbe8] sm:$0xf]
    %v863 = vld [vmem:[%s1 + $0xbec] sm:$0xf]
    %v864 = vld [vmem:[%s1 + $0xbf0] sm:$0xf]
    %v865 = vld [vmem:[%s1 + $0xbf4] sm:$0xf]
    %v866 = vld [vmem:[%s1 + $0xbf8] sm:$0xf]
    %v867 = vld [vmem:[%s1 + $0xbfc] sm:$0xf]
    %v868 = vld [vmem:[%s1 + $0xc00] sm:$0xf]
    %v869 = vld [vmem:[%s1 + $0xc04] sm:$0xf]
    %v870 = vld [vmem:[%s1 + $0xc08] sm:$0xf]
    %v871 = vld [vmem:[%s1 + $0xc0c] sm:$0xf]
    %v872 = vld [vmem:[%s1 + $0xc10] sm:$0xf]
    %v873 = vld [vmem:[%s1 + $0xc14] sm:$0xf]
    %v874 = vld [vmem:[%s1 + $0xc18] sm:$0xf]
    %v875 = vld [vmem:[%s1 + $0xc1c] sm:$0xf]
    %v876 = vld [vmem:[%s1 + $0xc20] sm:$0xf]
    %v877 = vld [vmem:[%s1 + $0xc24] sm:$0xf]
    %v878 = vld [vmem:[%s1 + $0xc28] sm:$0xf]
    %v879 = vld [vmem:[%s1 + $0xc2c] sm:$0xf]
    %v880 = vld [vmem:[%s1 + $0xc30] sm:$0xf]
    %v881 = vld [vmem:[%s1 + $0xc34] sm:$0xf]
    %v882 = vld [vmem:[%s1 + $0xc38] sm:$0xf]
    %v883 = vld [vmem:[%s1 + $0xc3c] sm:$0xf]
    %v884 = vld [vmem:[%s1 + $0xc40] sm:$0xf]
    %v885 = vld [vmem:[%s1 + $0xc44] sm:$0xf]
    %v886 = vld [vmem:[%s1 + $0xc48] sm:$0xf]
    %v887 = vld [vmem:[%s1 + $0xc4c] sm:$0xf]
    %v888 = vld [vmem:[%s1 + $0xc50] sm:$0xf]
    %v889 = vld [vmem:[%s1 + $0xc54] sm:$0xf]
    %v890 = vld [vmem:[%s1 + $0xc58] sm:$0xf]
    %v891 = vld [vmem:[%s1 + $0xc5c] sm:$0xf]
    %v892 = vld [vmem:[%s1 + $0xc60] sm:$0xf]
    %v893 = vld [vmem:[%s1 + $0xc64] sm:$0xf]
    %v894 = vld [vmem:[%s1 + $0xc68] sm:$0xf]
    %v895 = vld [vmem:[%s1 + $0xc6c] sm:$0xf]
    %v896 = vld [vmem:[%s1 + $0xc70] sm:$0xf]
    %v897 = vld [vmem:[%s1 + $0xc74] sm:$0xf]
    %v898 = vld [vmem:[%s1 + $0xc78] sm:$0xf]
    %v899 = vld [vmem:[%s1 + $0xc7c] sm:$0xf]
    %v900 = vld [vmem:[%s1 + $0xc80] sm:$0xf]
    %v901 = vld [vmem:[%s1 + $0xc84] sm:$0xf]
    %v902 = vld [vmem:[%s1 + $0xc88] sm:$0xf]
    %v903 = vld [vmem:[%s1 + $0xc8c] sm:$0xf]
    %v904 = vld [vmem:[%s1 + $0xc90] sm:$0xf]
    %v905 = vld [vmem:[%s1 + $0xc94] sm:$0xf]
    %v906 = vld [vmem:[%s1 + $0xc98] sm:$0xf]
    %v907 = vld [vmem:[%s1 + $0xc9c] sm:$0xf]
    %v908 = vld [vmem:[%s1 + $0xca0] sm:$0xf]
    %v909 = vld [vmem:[%s1 + $0xca4] sm:$0xf]
    %v910 = vld [vmem:[%s1 + $0xca8] sm:$0xf]
    %v911 = vld [vmem:[%s1 + $0xcac] sm:$0xf]
    %v912 = vld [vmem:[%s1 + $0xcb0] sm:$0xf]
    %v913 = vld [vmem:[%s1 + $0xcb4] sm:$0xf]
    %v914 = vld [vmem:[%s1 + $0xcb8] sm:$0xf]
    %v915 = vld [vmem:[%s1 + $0xcbc] sm:$0xf]
    %v916 = vld [vmem:[%s1 + $0xcc0] sm:$0xf]
    %v917 = vld [vmem:[%s1 + $0xcc4] sm:$0xf]
    %v918 = vld [vmem:[%s1 + $0xcc8] sm:$0xf]
    %v919 = vld [vmem:[%s1 + $0xccc] sm:$0xf]
    %v920 = vld [vmem:[%s1 + $0xcd0] sm:$0xf]
    %v921 = vld [vmem:[%s1 + $0xcd4] sm:$0xf]
    %v922 = vld [vmem:[%s1 + $0xcd8] sm:$0xf]
    %v923 = vld [vmem:[%s1 + $0xcdc] sm:$0xf]
    %v924 = vld [vmem:[%s1 + $0xce0] sm:$0xf]
    %v925 = vld [vmem:[%s1 + $0xce4] sm:$0xf]
    %v926 = vld [vmem:[%s1 + $0xce8] sm:$0xf]
    %v927 = vld [vmem:[%s1 + $0xcec] sm:$0xf]
    %v928 = vld [vmem:[%s1 + $0xcf0] sm:$0xf]
    %v929 = vld [vmem:[%s1 + $0xcf4] sm:$0xf]
    %v930 = vld [vmem:[%s1 + $0xcf8] sm:$0xf]
    %v931 = vld [vmem:[%s1 + $0xcfc] sm:$0xf]
    %v932 = vld [vmem:[%s1 + $0xd00] sm:$0xf]
    %v933 = vld [vmem:[%s1 + $0xd04] sm:$0xf]
    %v934 = vld [vmem:[%s1 + $0xd08] sm:$0xf]
    %v935 = vld [vmem:[%s1 + $0xd0c] sm:$0xf]
    %v936 = vld [vmem:[%s1 + $0xd10] sm:$0xf]
    %v937 = vld [vmem:[%s1 + $0xd14] sm:$0xf]
    %v938 = vld [vmem:[%s1 + $0xd18] sm:$0xf]
    %v939 = vld [vmem:[%s1 + $0xd1c] sm:$0xf]
    %v940 = vld [vmem:[%s1 + $0xd20] sm:$0xf]
    %v941 = vld [vmem:[%s1 + $0xd24] sm:$0xf]
    %v942 = vld [vmem:[%s1 + $0xd28] sm:$0xf]
    %v943 = vld [vmem:[%s1 + $0xd2c] sm:$0xf]
    %v944 = vld [vmem:[%s1 + $0xd30] sm:$0xf]
    %v945 = vld [vmem:[%s1 + $0xd34] sm:$0xf]
    %v946 = vld [vmem:[%s1 + $0xd38] sm:$0xf]
    %v947 = vld [vmem:[%s1 + $0xd3c] sm:$0xf]
    %v948 = vld [vmem:[%s1 + $0xd40] sm:$0xf]
    %v949 = vld [vmem:[%s1 + $0xd44] sm:$0xf]
    %v950 = vld [vmem:[%s1 + $0xd48] sm:$0xf]
    %v951 = vld [vmem:[%s1 + $0xd4c] sm:$0xf]
    %v952 = vld [vmem:[%s1 + $0xd50] sm:$0xf]
    %v953 = vld [vmem:[%s1 + $0xd54] sm:$0xf]
    %v954 = vld [vmem:[%s1 + $0xd58] sm:$0xf]
    %v955 = vld [vmem:[%s1 + $0xd5c] sm:$0xf]
    %v956 = vld [vmem:[%s1 + $0xd60] sm:$0xf]
    %v957 = vld [vmem:[%s1 + $0xd64] sm:$0xf]
    %v958 = vld [vmem:[%s1 + $0xd68] sm:$0xf]
    %v959 = vld [vmem:[%s1 + $0xd6c] sm:$0xf]
    %v960 = vld [vmem:[%s1 + $0xd70] sm:$0xf]
    %v961 = vld [vmem:[%s1 + $0xd74] sm:$0xf]
    %v962 = vld [vmem:[%s1 + $0xd78] sm:$0xf]
    %v963 = vld [vmem:[%s1 + $0xd7c] sm:$0xf]
    %v964 = vld [vmem:[%s1 + $0xd80] sm:$0xf]
    %v965 = vld [vmem:[%s1 + $0xd84] sm:$0xf]
    %v966 = vld [vmem:[%s1 + $0xd88] sm:$0xf]
    %v967 = vld [vmem:[%s1 + $0xd8c] sm:$0xf]
    %v968 = vld [vmem:[%s1 + $0xd90] sm:$0xf]
    %v969 = vld [vmem:[%s1 + $0xd94] sm:$0xf]
    %v970 = vld [vmem:[%s1 + $0xd98] sm:$0xf]
    %v971 = vld [vmem:[%s1 + $0xd9c] sm:$0xf]
    %v972 = vld [vmem:[%s1 + $0xda0] sm:$0xf]
    %v973 = vld [vmem:[%s1 + $0xda4] sm:$0xf]
    %v974 = vld [vmem:[%s1 + $0xda8] sm:$0xf]
    %v975 = vld [vmem:[%s1 + $0xdac] sm:$0xf]
    %v976 = vld [vmem:[%s1 + $0xdb0] sm:$0xf]
    %v977 = vld [vmem:[%s1 + $0xdb4] sm:$0xf]
    %v978 = vld [vmem:[%s1 + $0xdb8] sm:$0xf]
    %v979 = vld [vmem:[%s1 + $0xdbc] sm:$0xf]
    %v980 = vld [vmem:[%s1 + $0xdc0] sm:$0xf]
    %v981 = vld [vmem:[%s1 + $0xdc4] sm:$0xf]
    %v982 = vld [vmem:[%s1 + $0xdc8] sm:$0xf]
    %v983 = vld [vmem:[%s1 + $0xdcc] sm:$0xf]
    %v984 = vld [vmem:[%s1 + $0xdd0] sm:$0xf]
    %v985 = vld [vmem:[%s1 + $0xdd4] sm:$0xf]
    %v986 = vld [vmem:[%s1 + $0xdd8] sm:$0xf]
    %v987 = vld [vmem:[%s1 + $0xddc] sm:$0xf]
    %v988 = vld [vmem:[%s1 + $0xde0] sm:$0xf]
    %v989 = vld [vmem:[%s1 + $0xde4] sm:$0xf]
    %v990 = vld [vmem:[%s1 + $0xde8] sm:$0xf]
    %v991 = vld [vmem:[%s1 + $0xdec] sm:$0xf]
    %v992 = vld [vmem:[%s1 + $0xdf0] sm:$0xf]
    %v993 = vld [vmem:[%s1 + $0xdf4] sm:$0xf]
    %v994 = vld [vmem:[%s1 + $0xdf8] sm:$0xf]
    %v995 = vld [vmem:[%s1 + $0xdfc] sm:$0xf]
    %v996 = vld [vmem:[%s1 + $0xe00] sm:$0xf]
    %v997 = vld [vmem:[%s1 + $0xe04] sm:$0xf]
    %v998 = vld [vmem:[%s1 + $0xe08] sm:$0xf]
    %v999 = vld [vmem:[%s1 + $0xe0c] sm:$0xf]
    %v1000 = vld [vmem:[%s1 + $0xe10] sm:$0xf]
    %v1001 = vld [vmem:[%s1 + $0xe14] sm:$0xf]
    %v1002 = vld [vmem:[%s1 + $0xe18] sm:$0xf]
    %v1003 = vld [vmem:[%s1 + $0xe1c] sm:$0xf]
    %v1004 = vld [vmem:[%s1 + $0xe20] sm:$0xf]
    %v1005 = vld [vmem:[%s1 + $0xe24] sm:$0xf]
    %v1006 = vld [vmem:[%s1 + $0xe28] sm:$0xf]
    %v1007 = vld [vmem:[%s1 + $0xe2c] sm:$0xf]
    %v1008 = vld [vmem:[%s1 + $0xe30] sm:$0xf]
    %v1009 = vld [vmem:[%s1 + $0xe34] sm:$0xf]
    %v1010 = vld [vmem:[%s1 + $0xe38] sm:$0xf]
    %v1011 = vld [vmem:[%s1 + $0xe3c] sm:$0xf]
    %v1012 = vld [vmem:[%s1 + $0xe40] sm:$0xf]
    %v1013 = vld [vmem:[%s1 + $0xe44] sm:$0xf]
    %v1014 = vld [vmem:[%s1 + $0xe48] sm:$0xf]
    %v1015 = vld [vmem:[%s1 + $0xe4c] sm:$0xf]
    %v1016 = vld [vmem:[%s1 + $0xe50] sm:$0xf]
    %v1017 = vld [vmem:[%s1 + $0xe54] sm:$0xf]
    %v1018 = vld [vmem:[%s1 + $0xe58] sm:$0xf]
    %v1019 = vld [vmem:[%s1 + $0xe5c] sm:$0xf]
    %v1020 = vld [vmem:[%s1 + $0xe60] sm:$0xf]
    %v1021 = vld [vmem:[%s1 + $0xe64] sm:$0xf]
    %v1022 = vld [vmem:[%s1 + $0xe68] sm:$0xf]
    %v1023 = vld [vmem:[%s1 + $0xe6c] sm:$0xf]
    %v1024 = vld [vmem:[%s1 + $0xe70] sm:$0xf]
    %v1025 = vld [vmem:[%s1 + $0xe74] sm:$0xf]
    %v1026 = vld [vmem:[%s1 + $0xe78] sm:$0xf]
    %v1027 = vld [vmem:[%s1 + $0xe7c] sm:$0xf]
    %v1028 = vld [vmem:[%s1 + $0xe80] sm:$0xf]
    %v1029 = vld [vmem:[%s1 + $0xe84] sm:$0xf]
    %v1030 = vld [vmem:[%s1 + $0xe88] sm:$0xf]
    %v1031 = vld [vmem:[%s1 + $0xe8c] sm:$0xf]
    %v1032 = vld [vmem:[%s1 + $0xe90] sm:$0xf]
    %v1033 = vld [vmem:[%s1 + $0xe94] sm:$0xf]
    %v1034 = vld [vmem:[%s1 + $0xe98] sm:$0xf]
    %v1035 = vld [vmem:[%s1 + $0xe9c] sm:$0xf]
    %v1036 = vld [vmem:[%s1 + $0xea0] sm:$0xf]
    %v1037 = vld [vmem:[%s1 + $0xea4] sm:$0xf]
    %v1038 = vld [vmem:[%s1 + $0xea8] sm:$0xf]
    %v1039 = vld [vmem:[%s1 + $0xeac] sm:$0xf]
    %v1040 = vld [vmem:[%s1 + $0xeb0] sm:$0xf]
    %v1041 = vld [vmem:[%s1 + $0xeb4] sm:$0xf]
    %v1042 = vld [vmem:[%s1 + $0xeb8] sm:$0xf]
    %v1043 = vld [vmem:[%s1 + $0xebc] sm:$0xf]
    %v1044 = vld [vmem:[%s1 + $0xec0] sm:$0xf]
    %v1045 = vld [vmem:[%s1 + $0xec4] sm:$0xf]
    %v1046 = vld [vmem:[%s1 + $0xec8] sm:$0xf]
    %v1047 = vld [vmem:[%s1 + $0xecc] sm:$0xf]
    %v1048 = vld [vmem:[%s1 + $0xed0] sm:$0xf]
    %v1049 = vld [vmem:[%s1 + $0xed4] sm:$0xf]
    %v1050 = vld [vmem:[%s1 + $0xed8] sm:$0xf]
    %v1051 = vld [vmem:[%s1 + $0xedc] sm:$0xf]
    %v1052 = vld [vmem:[%s1 + $0xee0] sm:$0xf]
    %v1053 = vld [vmem:[%s1 + $0xee4] sm:$0xf]
    %v1054 = vld [vmem:[%s1 + $0xee8] sm:$0xf]
    %v1055 = vld [vmem:[%s1 + $0xeec] sm:$0xf]
    %v1056 = vld [vmem:[%s1 + $0xef0] sm:$0xf]
    %v1057 = vld [vmem:[%s1 + $0xef4] sm:$0xf]
    %v1058 = vld [vmem:[%s1 + $0xef8] sm:$0xf]
    %v1059 = vld [vmem:[%s1 + $0xefc] sm:$0xf]
    %v1060 = vld [vmem:[%s1 + $0xf00] sm:$0xf]
    %v1061 = vld [vmem:[%s1 + $0xf04] sm:$0xf]
    %v1062 = vld [vmem:[%s1 + $0xf08] sm:$0xf]
    %v1063 = vld [vmem:[%s1 + $0xf0c] sm:$0xf]
    %v1064 = vld [vmem:[%s1 + $0xf10] sm:$0xf]
    %v1065 = vld [vmem:[%s1 + $0xf14] sm:$0xf]
    %v1066 = vld [vmem:[%s1 + $0xf18] sm:$0xf]
    %v1067 = vld [vmem:[%s1 + $0xf1c] sm:$0xf]
    %v1068 = vld [vmem:[%s1 + $0xf20] sm:$0xf]
    %v1069 = vld [vmem:[%s1 + $0xf24] sm:$0xf]
    %v1070 = vld [vmem:[%s1 + $0xf28] sm:$0xf]
    %v1071 = vld [vmem:[%s1 + $0xf2c] sm:$0xf]
    %v1072 = vld [vmem:[%s1 + $0xf30] sm:$0xf]
    %v1073 = vld [vmem:[%s1 + $0xf34] sm:$0xf]
    %v1074 = vld [vmem:[%s1 + $0xf38] sm:$0xf]
    %v1075 = vld [vmem:[%s1 + $0xf3c] sm:$0xf]
    %v1076 = vld [vmem:[%s1 + $0xf40] sm:$0xf]
    %v1077 = vld [vmem:[%s1 + $0xf44] sm:$0xf]
    %v1078 = vld [vmem:[%s1 + $0xf48] sm:$0xf]
    %v1079 = vld [vmem:[%s1 + $0xf4c] sm:$0xf]
    %v1080 = vld [vmem:[%s1 + $0xf50] sm:$0xf]
    %v1081 = vld [vmem:[%s1 + $0xf54] sm:$0xf]
    %v1082 = vld [vmem:[%s1 + $0xf58] sm:$0xf]
    %v1083 = vld [vmem:[%s1 + $0xf5c] sm:$0xf]
    %v1084 = vld [vmem:[%s1 + $0xf60] sm:$0xf]
    %v1085 = vld [vmem:[%s1 + $0xf64] sm:$0xf]
    %v1086 = vld [vmem:[%s1 + $0xf68] sm:$0xf]
    %v1087 = vld [vmem:[%s1 + $0xf6c] sm:$0xf]
    %v1088 = vld [vmem:[%s1 + $0xf70] sm:$0xf]
    %v1089 = vld [vmem:[%s1 + $0xf74] sm:$0xf]
    %v1090 = vld [vmem:[%s1 + $0xf78] sm:$0xf]
    %v1091 = vld [vmem:[%s1 + $0xf7c] sm:$0xf]
    %v1092 = vld [vmem:[%s1 + $0xf80] sm:$0xf]
    %v1093 = vld [vmem:[%s1 + $0xf84] sm:$0xf]
    %v1094 = vld [vmem:[%s1 + $0xf88] sm:$0xf]
    %v1095 = vld [vmem:[%s1 + $0xf8c] sm:$0xf]
    %v1096 = vld [vmem:[%s1 + $0xf90] sm:$0xf]
    %v1097 = vld [vmem:[%s1 + $0xf94] sm:$0xf]
    %v1098 = vld [vmem:[%s1 + $0xf98] sm:$0xf]
    %v1099 = vld [vmem:[%s1 + $0xf9c] sm:$0xf]
    %v1100 = vld [vmem:[%s1 + $0xfa0] sm:$0xf]
    %v1101 = vld [vmem:[%s1 + $0xfa4] sm:$0xf]
    %v1102 = vld [vmem:[%s1 + $0xfa8] sm:$0xf]
    %v1103 = vld [vmem:[%s1 + $0xfac] sm:$0xf]
    %v1104 = vld [vmem:[%s1 + $0xfb0] sm:$0xf]
    %v1105 = vld [vmem:[%s1 + $0xfb4] sm:$0xf]
    %v1106 = vld [vmem:[%s1 + $0xfb8] sm:$0xf]
    %v1107 = vld [vmem:[%s1 + $0xfbc] sm:$0xf]
    %v1108 = vld [vmem:[%s1 + $0xfc0] sm:$0xf]
    %v1109 = vld [vmem:[%s1 + $0xfc4] sm:$0xf]
    %v1110 = vld [vmem:[%s1 + $0xfc8] sm:$0xf]
    %v1111 = vld [vmem:[%s1 + $0xfcc] sm:$0xf]
    %v1112 = vld [vmem:[%s1 + $0xfd0] sm:$0xf]
    %v1113 = vld [vmem:[%s1 + $0xfd4] sm:$0xf]
    %v1114 = vld [vmem:[%s1 + $0xfd8] sm:$0xf]
    %v1115 = vld [vmem:[%s1 + $0xfdc] sm:$0xf]
    %v1116 = vld [vmem:[%s1 + $0xfe0] sm:$0xf]
    %v1117 = vld [vmem:[%s1 + $0xfe4] sm:$0xf]
    %v1118 = vld [vmem:[%s1 + $0xfe8] sm:$0xf]
    %v1119 = vld [vmem:[%s1 + $0xfec] sm:$0xf]
    %v1120 = vld [vmem:[%s1 + $0xff0] sm:$0xf]
    %v1121 = vld [vmem:[%s1 + $0xff4] sm:$0xf]
    %v1122 = vld [vmem:[%s1 + $0xff8] sm:$0xf]
    %v1123 = vld [vmem:[%s1 + $0xffc] sm:$0xf]
    %v1124 = vld [vmem:[%s1 + $0x1000] sm:$0xf]
    %v1125 = vld [vmem:[%s1 + $0x1004] sm:$0xf]
    %v1126 = vld [vmem:[%s1 + $0x1008] sm:$0xf]
    %v1127 = vld [vmem:[%s1 + $0x100c] sm:$0xf]
    %v1128 = vld [vmem:[%s1 + $0x1010] sm:$0xf]
    %v1129 = vld [vmem:[%s1 + $0x1014] sm:$0xf]
    %v1130 = vld [vmem:[%s1 + $0x1018] sm:$0xf]
    %v1131 = vld [vmem:[%s1 + $0x101c] sm:$0xf]
    %v1132 = vld [vmem:[%s1 + $0x1020] sm:$0xf]
    %v1133 = vld [vmem:[%s1 + $0x1024] sm:$0xf]
    %v1134 = vld [vmem:[%s1 + $0x1028] sm:$0xf]
    %v1135 = vld [vmem:[%s1 + $0x102c] sm:$0xf]
    %v1136 = vld [vmem:[%s1 + $0x1030] sm:$0xf]
    %v1137 = vld [vmem:[%s1 + $0x1034] sm:$0xf]
    %v1138 = vld [vmem:[%s1 + $0x1038] sm:$0xf]
    %v1139 = vld [vmem:[%s1 + $0x103c] sm:$0xf]
    %v1140 = vld [vmem:[%s1 + $0x1040] sm:$0xf]
    %v1141 = vld [vmem:[%s1 + $0x1044] sm:$0xf]
    %v1142 = vld [vmem:[%s1 + $0x1048] sm:$0xf]
    %v1143 = vld [vmem:[%s1 + $0x104c] sm:$0xf]
    %v1144 = vld [vmem:[%s1 + $0x1050] sm:$0xf]
    %v1145 = vld [vmem:[%s1 + $0x1054] sm:$0xf]
    %v1146 = vld [vmem:[%s1 + $0x1058] sm:$0xf]
    %v1147 = vld [vmem:[%s1 + $0x105c] sm:$0xf]
    %v1148 = vld [vmem:[%s1 + $0x1060] sm:$0xf]
    %v1149 = vld [vmem:[%s1 + $0x1064] sm:$0xf]
    %v1150 = vld [vmem:[%s1 + $0x1068] sm:$0xf]
    %v1151 = vld [vmem:[%s1 + $0x106c] sm:$0xf]
    %v1152 = vld [vmem:[%s1 + $0x1070] sm:$0xf]
    %v1153 = vld [vmem:[%s1 + $0x1074] sm:$0xf]
    %v1154 = vld [vmem:[%s1 + $0x1078] sm:$0xf]
    %v1155 = vld [vmem:[%s1 + $0x107c] sm:$0xf]
    %v1156 = vld [vmem:[%s1 + $0x1080] sm:$0xf]
    %v1157 = vld [vmem:[%s1 + $0x1084] sm:$0xf]
    %v1158 = vld [vmem:[%s1 + $0x1088] sm:$0xf]
    %v1159 = vld [vmem:[%s1 + $0x108c] sm:$0xf]
    %v1160 = vld [vmem:[%s1 + $0x1090] sm:$0xf]
    %v1161 = vld [vmem:[%s1 + $0x1094] sm:$0xf]
    %v1162 = vld [vmem:[%s1 + $0x1098] sm:$0xf]
    %v1163 = vld [vmem:[%s1 + $0x109c] sm:$0xf]
    %v1164 = vld [vmem:[%s1 + $0x10a0] sm:$0xf]
    %v1165 = vld [vmem:[%s1 + $0x10a4] sm:$0xf]
    %v1166 = vld [vmem:[%s1 + $0x10a8] sm:$0xf]
    %v1167 = vld [vmem:[%s1 + $0x10ac] sm:$0xf]
    %v1168 = vld [vmem:[%s1 + $0x10b0] sm:$0xf]
    %v1169 = vld [vmem:[%s1 + $0x10b4] sm:$0xf]
    %v1170 = vld [vmem:[%s1 + $0x10b8] sm:$0xf]
    %v1171 = vld [vmem:[%s1 + $0x10bc] sm:$0xf]
    %v1172 = vld [vmem:[%s1 + $0x10c0] sm:$0xf]
    %v1173 = vld [vmem:[%s1 + $0x10c4] sm:$0xf]
    %v1174 = vld [vmem:[%s1 + $0x10c8] sm:$0xf]
    %v1175 = vld [vmem:[%s1 + $0x10cc] sm:$0xf]
    %v1176 = vld [vmem:[%s1 + $0x10d0] sm:$0xf]
    %v1177 = vld [vmem:[%s1 + $0x10d4] sm:$0xf]
    %v1178 = vld [vmem:[%s1 + $0x10d8] sm:$0xf]
    %v1179 = vld [vmem:[%s1 + $0x10dc] sm:$0xf]
    %v1180 = vld [vmem:[%s1 + $0x10e0] sm:$0xf]
    %v1181 = vld [vmem:[%s1 + $0x10e4] sm:$0xf]
    %v1182 = vld [vmem:[%s1 + $0x10e8] sm:$0xf]
    %v1183 = vld [vmem:[%s1 + $0x10ec] sm:$0xf]
    %v1184 = vld [vmem:[%s1 + $0x10f0] sm:$0xf]
    %v1185 = vld [vmem:[%s1 + $0x10f4] sm:$0xf]
    %v1186 = vld [vmem:[%s1 + $0x10f8] sm:$0xf]
    %v1187 = vld [vmem:[%s1 + $0x10fc] sm:$0xf]
    %v1188 = vld [vmem:[%s1 + $0x1100] sm:$0xf]
    %v1189 = vld [vmem:[%s1 + $0x1104] sm:$0xf]
    %v1190 = vld [vmem:[%s1 + $0x1108] sm:$0xf]
    %v1191 = vld [vmem:[%s1 + $0x110c] sm:$0xf]
    %v1192 = vld [vmem:[%s1 + $0x1110] sm:$0xf]
    %v1193 = vld [vmem:[%s1 + $0x1114] sm:$0xf]
    %v1194 = vld [vmem:[%s1 + $0x1118] sm:$0xf]
    %v1195 = vld [vmem:[%s1 + $0x111c] sm:$0xf]
    %v1196 = vld [vmem:[%s1 + $0x1120] sm:$0xf]
    %v1197 = vld [vmem:[%s1 + $0x1124] sm:$0xf]
    %v1198 = vld [vmem:[%s1 + $0x1128] sm:$0xf]
    %v1199 = vld [vmem:[%s1 + $0x112c] sm:$0xf]
    %v1200 = vld [vmem:[%s1 + $0x1130] sm:$0xf]
    %v1201 = vld [vmem:[%s1 + $0x1134] sm:$0xf]
    %v1202 = vld [vmem:[%s1 + $0x1138] sm:$0xf]
    %v1203 = vld [vmem:[%s1 + $0x113c] sm:$0xf]
    %v1204 = vld [vmem:[%s1 + $0x1140] sm:$0xf]
    %v1205 = vld [vmem:[%s1 + $0x1144] sm:$0xf]
    %v1206 = vld [vmem:[%s1 + $0x1148] sm:$0xf]
    %v1207 = vld [vmem:[%s1 + $0x114c] sm:$0xf]
    %v1208 = vld [vmem:[%s1 + $0x1150] sm:$0xf]
    %v1209 = vld [vmem:[%s1 + $0x1154] sm:$0xf]
    %v1210 = vld [vmem:[%s1 + $0x1158] sm:$0xf]
    %v1211 = vld [vmem:[%s1 + $0x115c] sm:$0xf]
    %v1212 = vld [vmem:[%s1 + $0x1160] sm:$0xf]
    %v1213 = vld [vmem:[%s1 + $0x1164] sm:$0xf]
    %v1214 = vld [vmem:[%s1 + $0x1168] sm:$0xf]
    %v1215 = vld [vmem:[%s1 + $0x116c] sm:$0xf]
    %v1216 = vld [vmem:[%s1 + $0x1170] sm:$0xf]
    %v1217 = vld [vmem:[%s1 + $0x1174] sm:$0xf]
    %v1218 = vld [vmem:[%s1 + $0x1178] sm:$0xf]
    %v1219 = vld [vmem:[%s1 + $0x117c] sm:$0xf]
    %v1220 = vld [vmem:[%s1 + $0x1180] sm:$0xf]
    %v1221 = vld [vmem:[%s1 + $0x1184] sm:$0xf]
    %v1222 = vld [vmem:[%s1 + $0x1188] sm:$0xf]
    %v1223 = vld [vmem:[%s1 + $0x118c] sm:$0xf]
    %v1224 = vld [vmem:[%s1 + $0x1190] sm:$0xf]
    %v1225 = vld [vmem:[%s1 + $0x1194] sm:$0xf]
    %v1226 = vld [vmem:[%s1 + $0x1198] sm:$0xf]
    %v1227 = vld [vmem:[%s1 + $0x119c] sm:$0xf]
    %v1228 = vld [vmem:[%s1 + $0x11a0] sm:$0xf]
    %v1229 = vld [vmem:[%s1 + $0x11a4] sm:$0xf]
    %v1230 = vld [vmem:[%s1 + $0x11a8] sm:$0xf]
    %v1231 = vld [vmem:[%s1 + $0x11ac] sm:$0xf]
    %v1232 = vld [vmem:[%s1 + $0x11b0] sm:$0xf]
    %v1233 = vld [vmem:[%s1 + $0x11b4] sm:$0xf]
    %v1234 = vld [vmem:[%s1 + $0x11b8] sm:$0xf]
    %v1235 = vld [vmem:[%s1 + $0x11bc] sm:$0xf]
    %v1236 = vld [vmem:[%s1 + $0x11c0] sm:$0xf]
    %v1237 = vld [vmem:[%s1 + $0x11c4] sm:$0xf]
    %v1238 = vld [vmem:[%s1 + $0x11c8] sm:$0xf]
    %v1239 = vld [vmem:[%s1 + $0x11cc] sm:$0xf]
    %v1240 = vld [vmem:[%s1 + $0x11d0] sm:$0xf]
    %v1241 = vld [vmem:[%s1 + $0x11d4] sm:$0xf]
    %v1242 = vld [vmem:[%s1 + $0x11d8] sm:$0xf]
    %v1243 = vld [vmem:[%s1 + $0x11dc] sm:$0xf]
    %v1244 = vld [vmem:[%s1 + $0x11e0] sm:$0xf]
    %v1245 = vld [vmem:[%s1 + $0x11e4] sm:$0xf]
    %v1246 = vld [vmem:[%s1 + $0x11e8] sm:$0xf]
    %v1247 = vld [vmem:[%s1 + $0x11ec] sm:$0xf]
    %v1248 = vld [vmem:[%s1 + $0x11f0] sm:$0xf]
    %v1249 = vld [vmem:[%s1 + $0x11f4] sm:$0xf]
    %v1250 = vld [vmem:[%s1 + $0x11f8] sm:$0xf]
    %v1251 = vld [vmem:[%s1 + $0x11fc] sm:$0xf]
    %v1252 = vld [vmem:[%s1 + $0x1200] sm:$0xf]
    %v1253 = vld [vmem:[%s1 + $0x1204] sm:$0xf]
    %v1254 = vld [vmem:[%s1 + $0x1208] sm:$0xf]
    %v1255 = vld [vmem:[%s1 + $0x120c] sm:$0xf]
    %v1256 = vld [vmem:[%s1 + $0x1210] sm:$0xf]
    %v1257 = vld [vmem:[%s1 + $0x1214] sm:$0xf]
    %v1258 = vld [vmem:[%s1 + $0x1218] sm:$0xf]
    %v1259 = vld [vmem:[%s1 + $0x121c] sm:$0xf]
    %v1260 = vld [vmem:[%s1 + $0x1220] sm:$0xf]
    %v1261 = vld [vmem:[%s1 + $0x1224] sm:$0xf]
    %v1262 = vld [vmem:[%s1 + $0x1228] sm:$0xf]
    %v1263 = vld [vmem:[%s1 + $0x122c] sm:$0xf]
    %v1264 = vld [vmem:[%s1 + $0x1230] sm:$0xf]
    %v1265 = vld [vmem:[%s1 + $0x1234] sm:$0xf]
    %v1266 = vld [vmem:[%s1 + $0x1238] sm:$0xf]
    %v1267 = vld [vmem:[%s1 + $0x123c] sm:$0xf]
    %v1268 = vld [vmem:[%s1 + $0x1240] sm:$0xf]
    %v1269 = vld [vmem:[%s1 + $0x1244] sm:$0xf]
    %v1270 = vld [vmem:[%s1 + $0x1248] sm:$0xf]
    %v1271 = vld [vmem:[%s1 + $0x124c] sm:$0xf]
    %v1272 = vld [vmem:[%s1 + $0x1250] sm:$0xf]
    %v1273 = vld [vmem:[%s1 + $0x1254] sm:$0xf]
    %v1274 = vld [vmem:[%s1 + $0x1258] sm:$0xf]
    %v1275 = vld [vmem:[%s1 + $0x125c] sm:$0xf]
    %v1276 = vld [vmem:[%s1 + $0x1260] sm:$0xf]
    %v1277 = vld [vmem:[%s1 + $0x1264] sm:$0xf]
    %v1278 = vld [vmem:[%s1 + $0x1268] sm:$0xf]
    %v1279 = vld [vmem:[%s1 + $0x126c] sm:$0xf]
    %v1280 = vld [vmem:[%s1 + $0x1270] sm:$0xf]
    %v1281 = vld [vmem:[%s1 + $0x1274] sm:$0xf]
    %v1282 = vld [vmem:[%s1 + $0x1278] sm:$0xf]
    %v1283 = vld [vmem:[%s1 + $0x127c] sm:$0xf]
    %v1284 = vld [vmem:[%s1 + $0x1280] sm:$0xf]
    %v1285 = vld [vmem:[%s1 + $0x1284] sm:$0xf]
    %v1286 = vld [vmem:[%s1 + $0x1288] sm:$0xf]
    %v1287 = vld [vmem:[%s1 + $0x128c] sm:$0xf]
    %v1288 = vld [vmem:[%s1 + $0x1290] sm:$0xf]
    %v1289 = vld [vmem:[%s1 + $0x1294] sm:$0xf]
    %v1290 = vld [vmem:[%s1 + $0x1298] sm:$0xf]
    %v1291 = vld [vmem:[%s1 + $0x129c] sm:$0xf]
    %v1292 = vld [vmem:[%s1 + $0x12a0] sm:$0xf]
    %v1293 = vld [vmem:[%s1 + $0x12a4] sm:$0xf]
    %v1294 = vld [vmem:[%s1 + $0x12a8] sm:$0xf]
    %v1295 = vld [vmem:[%s1 + $0x12ac] sm:$0xf]
    %v1296 = vld [vmem:[%s1 + $0x12b0] sm:$0xf]
    %v1297 = vld [vmem:[%s1 + $0x12b4] sm:$0xf]
    %v1298 = vld [vmem:[%s1 + $0x12b8] sm:$0xf]
    %v1299 = vld [vmem:[%s1 + $0x12bc] sm:$0xf]
    %v1300 = vld [vmem:[%s1 + $0x12c0] sm:$0xf]
    %v1301 = vld [vmem:[%s1 + $0x12c4] sm:$0xf]
    %v1302 = vld [vmem:[%s1 + $0x12c8] sm:$0xf]
    %v1303 = vld [vmem:[%s1 + $0x12cc] sm:$0xf]
    %v1304 = vld [vmem:[%s1 + $0x12d0] sm:$0xf]
    %v1305 = vld [vmem:[%s1 + $0x12d4] sm:$0xf]
    %v1306 = vld [vmem:[%s1 + $0x12d8] sm:$0xf]
    %v1307 = vld [vmem:[%s1 + $0x12dc] sm:$0xf]
    %v1308 = vld [vmem:[%s1 + $0x12e0] sm:$0xf]
    %v1309 = vld [vmem:[%s1 + $0x12e4] sm:$0xf]
    %v1310 = vld [vmem:[%s1 + $0x12e8] sm:$0xf]
    %v1311 = vld [vmem:[%s1 + $0x12ec] sm:$0xf]
    %v1312 = vld [vmem:[%s1 + $0x12f0] sm:$0xf]
    %v1313 = vld [vmem:[%s1 + $0x12f4] sm:$0xf]
    %v1314 = vld [vmem:[%s1 + $0x12f8] sm:$0xf]
    %v1315 = vld [vmem:[%s1 + $0x12fc] sm:$0xf]
    %v1316 = vld [vmem:[%s1 + $0x1300] sm:$0xf]
    %v1317 = vld [vmem:[%s1 + $0x1304] sm:$0xf]
    %v1318 = vld [vmem:[%s1 + $0x1308] sm:$0xf]
    %v1319 = vld [vmem:[%s1 + $0x130c] sm:$0xf]
    %v1320 = vld [vmem:[%s1 + $0x1310] sm:$0xf]
    %v1321 = vld [vmem:[%s1 + $0x1314] sm:$0xf]
    %v1322 = vld [vmem:[%s1 + $0x1318] sm:$0xf]
    %v1323 = vld [vmem:[%s1 + $0x131c] sm:$0xf]
    %v1324 = vld [vmem:[%s1 + $0x1320] sm:$0xf]
    %v1325 = vld [vmem:[%s1 + $0x1324] sm:$0xf]
    %v1326 = vld [vmem:[%s1 + $0x1328] sm:$0xf]
    %v1327 = vld [vmem:[%s1 + $0x132c] sm:$0xf]
    %v1328 = vld [vmem:[%s1 + $0x1330] sm:$0xf]
    %v1329 = vld [vmem:[%s1 + $0x1334] sm:$0xf]
    %v1330 = vld [vmem:[%s1 + $0x1338] sm:$0xf]
    %v1331 = vld [vmem:[%s1 + $0x133c] sm:$0xf]
    %v1410 = vunpack.c.l.b16 %v22
    %v1411 = vunpack.c.h.b16 %v22
    %v1412 = vunpack.c.l.b16 %v23
    %v1413 = vunpack.c.h.b16 %v23
    %v1414 = vunpack.c.l.b16 %v24
    %v1415 = vunpack.c.h.b16 %v24
    %v1416 = vunpack.c.l.b16 %v25
    %v1417 = vunpack.c.h.b16 %v25
    %v1418 = vunpack.c.l.b16 %v26
    %v1419 = vunpack.c.h.b16 %v26
    %v1420 = vunpack.c.l.b16 %v27
    %v1421 = vunpack.c.h.b16 %v27
    %v1422 = vunpack.c.l.b16 %v28
    %v1423 = vunpack.c.h.b16 %v28
    %v1424 = vunpack.c.l.b16 %v29
    %v1425 = vunpack.c.h.b16 %v29
    %v1426 = vunpack.c.l.b16 %v30
    %v1427 = vunpack.c.h.b16 %v30
    %v1428 = vunpack.c.l.b16 %v31
    %v1429 = vunpack.c.h.b16 %v31
    %v1430 = vunpack.c.l.b16 %v32
    %v1431 = vunpack.c.h.b16 %v32
    %v1432 = vunpack.c.l.b16 %v33
    %v1433 = vunpack.c.h.b16 %v33
    %v1434 = vunpack.c.l.b16 %v34
    %v1435 = vunpack.c.h.b16 %v34
    %v1436 = vunpack.c.l.b16 %v35
    %v1437 = vunpack.c.h.b16 %v35
    %v1438 = vunpack.c.l.b16 %v36
    %v1439 = vunpack.c.h.b16 %v36
    %v1440 = vunpack.c.l.b16 %v37
    %v1441 = vunpack.c.h.b16 %v37
    %v1442 = vunpack.c.l.b16 %v38
    %v1443 = vunpack.c.h.b16 %v38
    %v1444 = vunpack.c.l.b16 %v39
    %v1445 = vunpack.c.h.b16 %v39
    %v1446 = vunpack.c.l.b16 %v40
    %v1447 = vunpack.c.h.b16 %v40
    %v1448 = vunpack.c.l.b16 %v41
    %v1449 = vunpack.c.h.b16 %v41
    %v1450 = vunpack.c.l.b16 %v42
    %v1451 = vunpack.c.h.b16 %v42
    %v1452 = vunpack.c.l.b16 %v43
    %v1453 = vunpack.c.h.b16 %v43
    %v1454 = vunpack.c.l.b16 %v44
    %v1455 = vunpack.c.h.b16 %v44
    %v1456 = vunpack.c.l.b16 %v45
    %v1457 = vunpack.c.h.b16 %v45
    %v1458 = vunpack.c.l.b16 %v46
    %v1459 = vunpack.c.h.b16 %v46
    %v1460 = vunpack.c.l.b16 %v47
    %v1461 = vunpack.c.h.b16 %v47
    %v1462 = vunpack.c.l.b16 %v48
    %v1463 = vunpack.c.h.b16 %v48
    %v1464 = vunpack.c.l.b16 %v49
    %v1465 = vunpack.c.h.b16 %v49
    %v1466 = vunpack.c.l.b16 %v50
    %v1467 = vunpack.c.h.b16 %v50
    %v1468 = vunpack.c.l.b16 %v51
    %v1469 = vunpack.c.h.b16 %v51
    %v1470 = vunpack.c.l.b16 %v52
    %v1471 = vunpack.c.h.b16 %v52
    %v1472 = vunpack.c.l.b16 %v53
    %v1473 = vunpack.c.h.b16 %v53
    %v1474 = vunpack.c.l.b16 %v54
    %v1475 = vunpack.c.h.b16 %v54
    %v1476 = vunpack.c.l.b16 %v55
    %v1477 = vunpack.c.h.b16 %v55
    %v1478 = vunpack.c.l.b16 %v56
    %v1479 = vunpack.c.h.b16 %v56
    %v1480 = vunpack.c.l.b16 %v57
    %v1481 = vunpack.c.h.b16 %v57
    %v1482 = vunpack.c.l.b16 %v58
    %v1483 = vunpack.c.h.b16 %v58
    %v1484 = vunpack.c.l.b16 %v59
    %v1485 = vunpack.c.h.b16 %v59
    %v1486 = vunpack.c.l.b16 %v60
    %v1487 = vunpack.c.l.b16 %v61
    %v1488 = vunpack.c.h.b16 %v61
    %v1489 = vunpack.c.l.b16 %v62
    %v1490 = vunpack.c.h.b16 %v62
    %v1491 = vunpack.c.l.b16 %v63
    %v1492 = vunpack.c.h.b16 %v63
    %v1493 = vunpack.c.l.b16 %v64
    %v1494 = vunpack.c.h.b16 %v64
    %v1495 = vunpack.c.l.b16 %v65
    %v1496 = vunpack.c.h.b16 %v65
    %v1497 = vunpack.c.l.b16 %v66
    %v1498 = vunpack.c.h.b16 %v66
    %v1499 = vunpack.c.l.b16 %v67
    %v1500 = vunpack.c.h.b16 %v67
    %v1501 = vunpack.c.l.b16 %v68
    %v1502 = vunpack.c.h.b16 %v68
    %v1503 = vunpack.c.l.b16 %v69
    %v1504 = vunpack.c.h.b16 %v69
    %v1505 = vunpack.c.l.b16 %v70
    %v1506 = vunpack.c.h.b16 %v70
    %v1507 = vunpack.c.l.b16 %v71
    %v1508 = vunpack.c.h.b16 %v71
    %v1509 = vunpack.c.l.b16 %v72
    %v1510 = vunpack.c.h.b16 %v72
    %v1511 = vunpack.c.l.b16 %v73
    %v1512 = vunpack.c.h.b16 %v73
    %v1513 = vunpack.c.l.b16 %v74
    %v1514 = vunpack.c.h.b16 %v74
    %v1515 = vunpack.c.l.b16 %v75
    %v1516 = vunpack.c.h.b16 %v75
    %v1517 = vunpack.c.l.b16 %v76
    %v1518 = vunpack.c.h.b16 %v76
    %v1519 = vunpack.c.l.b16 %v77
    %v1520 = vunpack.c.h.b16 %v77
    %v1521 = vunpack.c.l.b16 %v78
    %v1522 = vunpack.c.h.b16 %v78
    %v1523 = vunpack.c.l.b16 %v79
    %v1524 = vunpack.c.h.b16 %v79
    %v1525 = vunpack.c.l.b16 %v80
    %v1526 = vunpack.c.h.b16 %v80
    %v1527 = vunpack.c.l.b16 %v81
    %v1528 = vunpack.c.h.b16 %v81
    %v1529 = vunpack.c.l.b16 %v82
    %v1530 = vunpack.c.h.b16 %v82
    %v1531 = vunpack.c.l.b16 %v83
    %v1532 = vunpack.c.h.b16 %v83
    %v1533 = vunpack.c.l.b16 %v84
    %v1534 = vunpack.c.h.b16 %v84
    %v1535 = vunpack.c.l.b16 %v85
    %v1536 = vunpack.c.h.b16 %v85
    %v1537 = vunpack.c.l.b16 %v86
    %v1538 = vunpack.c.h.b16 %v86
    %v1539 = vunpack.c.l.b16 %v87
    %v1540 = vunpack.c.h.b16 %v87
    %v1541 = vunpack.c.l.b16 %v88
    %v1542 = vunpack.c.h.b16 %v88
    %v1543 = vunpack.c.l.b16 %v89
    %v1544 = vunpack.c.h.b16 %v89
    %v1545 = vunpack.c.l.b16 %v90
    %v1546 = vunpack.c.h.b16 %v90
    %v1547 = vunpack.c.l.b16 %v91
    %v1548 = vunpack.c.h.b16 %v91
    %v1549 = vunpack.c.l.b16 %v92
    %v1550 = vunpack.c.h.b16 %v92
    %v1551 = vunpack.c.l.b16 %v93
    %v1552 = vunpack.c.h.b16 %v93
    %v1553 = vunpack.c.l.b16 %v94
    %v1554 = vunpack.c.h.b16 %v94
    %v1555 = vunpack.c.l.b16 %v95
    %v1556 = vunpack.c.h.b16 %v95
    %v1557 = vunpack.c.l.b16 %v96
    %v1558 = vunpack.c.h.b16 %v96
    %v1559 = vunpack.c.l.b16 %v97
    %v1560 = vunpack.c.h.b16 %v97
    %v1561 = vunpack.c.l.b16 %v98
    %v1562 = vunpack.c.h.b16 %v98
    %v1563 = vunpack.c.l.b16 %v99
    %v1564 = vpack.c.b16 %v1487, %v1410
    %v1565 = vpack.c.b16 %v1488, %v1411
    %v1566 = vpack.c.b16 %v1489, %v1412
    %v1567 = vpack.c.b16 %v1490, %v1413
    %v1568 = vpack.c.b16 %v1491, %v1414
    %v1569 = vpack.c.b16 %v1492, %v1415
    %v1570 = vpack.c.b16 %v1493, %v1416
    %v1571 = vpack.c.b16 %v1494, %v1417
    %v1572 = vpack.c.b16 %v1495, %v1418
    %v1573 = vpack.c.b16 %v1496, %v1419
    %v1574 = vpack.c.b16 %v1497, %v1420
    %v1575 = vpack.c.b16 %v1498, %v1421
    %v1576 = vpack.c.b16 %v1499, %v1422
    %v1577 = vpack.c.b16 %v1500, %v1423
    %v1578 = vpack.c.b16 %v1501, %v1424
    %v1579 = vpack.c.b16 %v1502, %v1425
    %v1580 = vpack.c.b16 %v1503, %v1426
    %v1581 = vpack.c.b16 %v1504, %v1427
    %v1582 = vpack.c.b16 %v1505, %v1428
    %v1583 = vpack.c.b16 %v1506, %v1429
    %v1584 = vpack.c.b16 %v1507, %v1430
    %v1585 = vpack.c.b16 %v1508, %v1431
    %v1586 = vpack.c.b16 %v1509, %v1432
    %v1587 = vpack.c.b16 %v1510, %v1433
    %v1588 = vpack.c.b16 %v1511, %v1434
    %v1589 = vpack.c.b16 %v1512, %v1435
    %v1590 = vpack.c.b16 %v1513, %v1436
    %v1591 = vpack.c.b16 %v1514, %v1437
    %v1592 = vpack.c.b16 %v1515, %v1438
    %v1593 = vpack.c.b16 %v1516, %v1439
    %v1594 = vpack.c.b16 %v1517, %v1440
    %v1595 = vpack.c.b16 %v1518, %v1441
    %v1596 = vpack.c.b16 %v1519, %v1442
    %v1597 = vpack.c.b16 %v1520, %v1443
    %v1598 = vpack.c.b16 %v1521, %v1444
    %v1599 = vpack.c.b16 %v1522, %v1445
    %v1600 = vpack.c.b16 %v1523, %v1446
    %v1601 = vpack.c.b16 %v1524, %v1447
    %v1602 = vpack.c.b16 %v1525, %v1448
    %v1603 = vpack.c.b16 %v1526, %v1449
    %v1604 = vpack.c.b16 %v1527, %v1450
    %v1605 = vpack.c.b16 %v1528, %v1451
    %v1606 = vpack.c.b16 %v1529, %v1452
    %v1607 = vpack.c.b16 %v1530, %v1453
    %v1608 = vpack.c.b16 %v1531, %v1454
    %v1609 = vpack.c.b16 %v1532, %v1455
    %v1610 = vpack.c.b16 %v1533, %v1456
    %v1611 = vpack.c.b16 %v1534, %v1457
    %v1612 = vpack.c.b16 %v1535, %v1458
    %v1613 = vpack.c.b16 %v1536, %v1459
    %v1614 = vpack.c.b16 %v1537, %v1460
    %v1615 = vpack.c.b16 %v1538, %v1461
    %v1616 = vpack.c.b16 %v1539, %v1462
    %v1617 = vpack.c.b16 %v1540, %v1463
    %v1618 = vpack.c.b16 %v1541, %v1464
    %v1619 = vpack.c.b16 %v1542, %v1465
    %v1620 = vpack.c.b16 %v1543, %v1466
    %v1621 = vpack.c.b16 %v1544, %v1467
    %v1622 = vpack.c.b16 %v1545, %v1468
    %v1623 = vpack.c.b16 %v1546, %v1469
    %v1624 = vpack.c.b16 %v1547, %v1470
    %v1625 = vpack.c.b16 %v1548, %v1471
    %v1626 = vpack.c.b16 %v1549, %v1472
    %v1627 = vpack.c.b16 %v1550, %v1473
    %v1628 = vpack.c.b16 %v1551, %v1474
    %v1629 = vpack.c.b16 %v1552, %v1475
    %v1630 = vpack.c.b16 %v1553, %v1476
    %v1631 = vpack.c.b16 %v1554, %v1477
    %v1632 = vpack.c.b16 %v1555, %v1478
    %v1633 = vpack.c.b16 %v1556, %v1479
    %v1634 = vpack.c.b16 %v1557, %v1480
    %v1635 = vpack.c.b16 %v1558, %v1481
    %v1636 = vpack.c.b16 %v1559, %v1482
    %v1637 = vpack.c.b16 %v1560, %v1483
    %v1638 = vpack.c.b16 %v1561, %v1484
    %v1639 = vpack.c.b16 %v1562, %v1485
    %v1640 = vpack.c.b16 %v1563, %v1486
    %v2950 = vunpack.c.l.b16 %v100
    %v2951 = vunpack.c.l.b16 %v101
    %v2952 = vunpack.c.l.b16 %v102
    %v2953 = vunpack.c.l.b16 %v103
    %v2954 = vunpack.c.l.b16 %v104
    %v2955 = vunpack.c.l.b16 %v105
    %v2956 = vunpack.c.l.b16 %v106
    %v2957 = vunpack.c.l.b16 %v107
    %v2958 = vunpack.c.l.b16 %v108
    %v2959 = vunpack.c.l.b16 %v109
    %v2960 = vunpack.c.l.b16 %v110
    %v2961 = vunpack.c.l.b16 %v111
    %v2962 = vunpack.c.l.b16 %v112
    %v2963 = vunpack.c.l.b16 %v113
    %v2964 = vunpack.c.l.b16 %v114
    %v2965 = vunpack.c.l.b16 %v115
    %v2966 = vunpack.c.l.b16 %v116
    %v2967 = vunpack.c.l.b16 %v117
    %v2968 = vunpack.c.l.b16 %v118
    %v2969 = vunpack.c.l.b16 %v119
    %v2970 = vunpack.c.l.b16 %v120
    %v2971 = vunpack.c.l.b16 %v121
    %v2972 = vunpack.c.l.b16 %v122
    %v2973 = vunpack.c.l.b16 %v123
    %v2974 = vunpack.c.l.b16 %v124
    %v2975 = vunpack.c.l.b16 %v125
    %v2976 = vunpack.c.l.b16 %v126
    %v2977 = vunpack.c.l.b16 %v127
    %v2978 = vunpack.c.l.b16 %v128
    %v2979 = vunpack.c.l.b16 %v129
    %v2980 = vunpack.c.l.b16 %v130
    %v2981 = vunpack.c.l.b16 %v131
    %v2982 = vunpack.c.l.b16 %v132
    %v2983 = vunpack.c.l.b16 %v133
    %v2984 = vunpack.c.l.b16 %v134
    %v2985 = vunpack.c.l.b16 %v135
    %v2986 = vunpack.c.l.b16 %v136
    %v2987 = vunpack.c.l.b16 %v137
    %v2988 = vunpack.c.l.b16 %v138
    %v2989 = vunpack.c.l.b16 %v139
    %v2990 = vunpack.c.l.b16 %v140
    %v2991 = vunpack.c.l.b16 %v141
    %v2992 = vunpack.c.l.b16 %v142
    %v2993 = vunpack.c.l.b16 %v143
    %v2994 = vunpack.c.l.b16 %v144
    %v2995 = vunpack.c.l.b16 %v145
    %v2996 = vunpack.c.l.b16 %v146
    %v2997 = vunpack.c.l.b16 %v147
    %v2998 = vunpack.c.l.b16 %v148
    %v2999 = vunpack.c.l.b16 %v149
    %v3000 = vunpack.c.l.b16 %v150
    %v3001 = vunpack.c.l.b16 %v151
    %v3002 = vunpack.c.l.b16 %v152
    %v3003 = vunpack.c.l.b16 %v153
    %v3004 = vunpack.c.l.b16 %v154
    %v3005 = vunpack.c.l.b16 %v155
    %v3006 = vunpack.c.l.b16 %v156
    %v3007 = vunpack.c.l.b16 %v157
    %v3008 = vunpack.c.l.b16 %v158
    %v3009 = vunpack.c.l.b16 %v159
    %v3010 = vunpack.c.l.b16 %v160
    %v3011 = vunpack.c.l.b16 %v161
    %v3012 = vunpack.c.l.b16 %v162
    %v3013 = vunpack.c.l.b16 %v163
    %v3014 = vunpack.c.l.b16 %v164
    %v3015 = vunpack.c.l.b16 %v165
    %v3016 = vunpack.c.l.b16 %v166
    %v3017 = vunpack.c.l.b16 %v167
    %v3018 = vunpack.c.l.b16 %v168
    %v3019 = vunpack.c.l.b16 %v169
    %v3020 = vunpack.c.l.b16 %v170
    %v3021 = vunpack.c.l.b16 %v171
    %v3022 = vunpack.c.l.b16 %v172
    %v3023 = vunpack.c.l.b16 %v173
    %v3024 = vunpack.c.l.b16 %v174
    %v3025 = vunpack.c.l.b16 %v175
    %v3026 = vunpack.c.l.b16 %v176
    %v3027 = vunpack.c.l.b16 %v177
    %v3028 = vunpack.c.l.b16 %v178
    %v3029 = vunpack.c.l.b16 %v179
    %v3030 = vunpack.c.l.b16 %v180
    %v3031 = vunpack.c.l.b16 %v181
    %v3032 = vunpack.c.l.b16 %v182
    %v3033 = vunpack.c.l.b16 %v183
    %v3034 = vunpack.c.l.b16 %v184
    %v3035 = vunpack.c.l.b16 %v185
    %v3036 = vunpack.c.l.b16 %v186
    %v3037 = vunpack.c.l.b16 %v187
    %v3038 = vunpack.c.l.b16 %v188
    %v3039 = vunpack.c.l.b16 %v189
    %v3040 = vunpack.c.l.b16 %v190
    %v3041 = vunpack.c.l.b16 %v191
    %v3042 = vunpack.c.l.b16 %v192
    %v3043 = vunpack.c.l.b16 %v193
    %v3044 = vunpack.c.l.b16 %v194
    %v3045 = vunpack.c.l.b16 %v195
    %v3046 = vunpack.c.l.b16 %v196
    %v3047 = vunpack.c.l.b16 %v197
    %v3048 = vunpack.c.l.b16 %v198
    %v3049 = vunpack.c.l.b16 %v199
    %v3050 = vunpack.c.l.b16 %v200
    %v3051 = vunpack.c.l.b16 %v201
    %v3052 = vunpack.c.l.b16 %v202
    %v3053 = vunpack.c.l.b16 %v203
    %v3054 = vunpack.c.l.b16 %v204
    %v3055 = vunpack.c.l.b16 %v205
    %v3056 = vunpack.c.l.b16 %v206
    %v3057 = vunpack.c.l.b16 %v207
    %v3058 = vunpack.c.l.b16 %v208
    %v3059 = vunpack.c.l.b16 %v209
    %v3060 = vunpack.c.l.b16 %v210
    %v3061 = vunpack.c.l.b16 %v211
    %v3062 = vunpack.c.l.b16 %v212
    %v3063 = vunpack.c.l.b16 %v213
    %v3064 = vunpack.c.l.b16 %v214
    %v3065 = vunpack.c.l.b16 %v215
    %v3066 = vunpack.c.l.b16 %v216
    %v3067 = vunpack.c.l.b16 %v217
    %v3068 = vunpack.c.l.b16 %v218
    %v3069 = vunpack.c.l.b16 %v219
    %v3070 = vunpack.c.l.b16 %v220
    %v3071 = vunpack.c.l.b16 %v221
    %v3072 = vunpack.c.l.b16 %v222
    %v3073 = vunpack.c.l.b16 %v223
    %v3074 = vunpack.c.l.b16 %v224
    %v3075 = vunpack.c.l.b16 %v225
    %v3076 = vunpack.c.l.b16 %v226
    %v3077 = vunpack.c.l.b16 %v227
    %v3078 = vunpack.c.l.b16 %v228
    %v3079 = vunpack.c.l.b16 %v229
    %v3080 = vunpack.c.l.b16 %v230
    %v3081 = vunpack.c.l.b16 %v231
    %v3082 = vunpack.c.l.b16 %v232
    %v3083 = vunpack.c.l.b16 %v233
    %v3084 = vunpack.c.l.b16 %v234
    %v3085 = vunpack.c.l.b16 %v235
    %v3086 = vunpack.c.l.b16 %v236
    %v3087 = vunpack.c.l.b16 %v237
    %v3088 = vunpack.c.l.b16 %v238
    %v3089 = vunpack.c.l.b16 %v239
    %v3090 = vunpack.c.l.b16 %v240
    %v3091 = vunpack.c.l.b16 %v241
    %v3092 = vunpack.c.l.b16 %v242
    %v3093 = vunpack.c.l.b16 %v243
    %v3094 = vunpack.c.l.b16 %v244
    %v3095 = vunpack.c.l.b16 %v245
    %v3096 = vunpack.c.l.b16 %v246
    %v3097 = vunpack.c.l.b16 %v247
    %v3098 = vunpack.c.l.b16 %v248
    %v3099 = vunpack.c.l.b16 %v249
    %v3100 = vunpack.c.l.b16 %v250
    %v3101 = vunpack.c.l.b16 %v251
    %v3102 = vunpack.c.l.b16 %v252
    %v3103 = vunpack.c.l.b16 %v253
    %v3104 = vunpack.c.l.b16 %v254
    %v3105 = vunpack.c.l.b16 %v255
    %v3106 = vunpack.c.l.b16 %v256
    %v3107 = vunpack.c.l.b16 %v257
    %v3108 = vunpack.c.l.b16 %v258
    %v3109 = vunpack.c.l.b16 %v259
    %v3110 = vunpack.c.l.b16 %v260
    %v3111 = vunpack.c.l.b16 %v261
    %v3112 = vunpack.c.l.b16 %v262
    %v3113 = vunpack.c.l.b16 %v263
    %v3114 = vunpack.c.l.b16 %v264
    %v3115 = vunpack.c.l.b16 %v265
    %v3116 = vunpack.c.l.b16 %v266
    %v3117 = vunpack.c.l.b16 %v267
    %v3118 = vunpack.c.l.b16 %v268
    %v3119 = vunpack.c.l.b16 %v269
    %v3120 = vunpack.c.l.b16 %v270
    %v3121 = vunpack.c.l.b16 %v271
    %v3122 = vunpack.c.l.b16 %v272
    %v3123 = vunpack.c.l.b16 %v273
    %v3124 = vunpack.c.l.b16 %v274
    %v3125 = vunpack.c.l.b16 %v275
    %v3126 = vunpack.c.l.b16 %v276
    %v3127 = vunpack.c.l.b16 %v277
    %v3128 = vunpack.c.l.b16 %v278
    %v3129 = vunpack.c.l.b16 %v279
    %v3130 = vunpack.c.l.b16 %v280
    %v3131 = vunpack.c.l.b16 %v281
    %v3132 = vunpack.c.l.b16 %v282
    %v3133 = vunpack.c.l.b16 %v283
    %v3134 = vunpack.c.l.b16 %v284
    %v3135 = vunpack.c.l.b16 %v285
    %v3136 = vunpack.c.l.b16 %v286
    %v3137 = vunpack.c.l.b16 %v287
    %v3138 = vunpack.c.l.b16 %v288
    %v3139 = vunpack.c.l.b16 %v289
    %v3140 = vunpack.c.l.b16 %v290
    %v3141 = vunpack.c.l.b16 %v291
    %v3142 = vunpack.c.l.b16 %v292
    %v3143 = vunpack.c.l.b16 %v293
    %v3144 = vunpack.c.l.b16 %v294
    %v3145 = vunpack.c.l.b16 %v295
    %v3146 = vunpack.c.l.b16 %v296
    %v3147 = vunpack.c.l.b16 %v297
    %v3148 = vunpack.c.l.b16 %v298
    %v3149 = vunpack.c.l.b16 %v299
    %v3150 = vunpack.c.l.b16 %v300
    %v3151 = vunpack.c.l.b16 %v301
    %v3152 = vunpack.c.l.b16 %v302
    %v3153 = vunpack.c.l.b16 %v303
    %v3154 = vunpack.c.l.b16 %v304
    %v3155 = vunpack.c.l.b16 %v305
    %v3156 = vunpack.c.l.b16 %v306
    %v3157 = vunpack.c.l.b16 %v307
    %v3158 = vunpack.c.l.b16 %v308
    %v3159 = vunpack.c.l.b16 %v309
    %v3160 = vunpack.c.l.b16 %v310
    %v3161 = vunpack.c.l.b16 %v311
    %v3162 = vunpack.c.l.b16 %v312
    %v3163 = vunpack.c.l.b16 %v313
    %v3164 = vunpack.c.l.b16 %v314
    %v3165 = vunpack.c.l.b16 %v315
    %v3166 = vunpack.c.l.b16 %v316
    %v3167 = vunpack.c.l.b16 %v317
    %v3168 = vunpack.c.l.b16 %v318
    %v3169 = vunpack.c.l.b16 %v319
    %v3170 = vunpack.c.l.b16 %v320
    %v3171 = vunpack.c.l.b16 %v321
    %v3172 = vunpack.c.l.b16 %v322
    %v3173 = vunpack.c.l.b16 %v323
    %v3174 = vunpack.c.l.b16 %v324
    %v3175 = vunpack.c.l.b16 %v325
    %v3176 = vunpack.c.l.b16 %v326
    %v3177 = vunpack.c.l.b16 %v327
    %v3178 = vunpack.c.l.b16 %v328
    %v3179 = vunpack.c.l.b16 %v329
    %v3180 = vunpack.c.l.b16 %v330
    %v3181 = vunpack.c.l.b16 %v331
    %v3182 = vunpack.c.l.b16 %v332
    %v3183 = vunpack.c.l.b16 %v333
    %v3184 = vunpack.c.l.b16 %v334
    %v3185 = vunpack.c.l.b16 %v335
    %v3186 = vunpack.c.l.b16 %v336
    %v3187 = vunpack.c.l.b16 %v337
    %v3188 = vunpack.c.l.b16 %v338
    %v3189 = vunpack.c.l.b16 %v339
    %v3190 = vunpack.c.l.b16 %v340
    %v3191 = vunpack.c.l.b16 %v341
    %v3192 = vunpack.c.l.b16 %v342
    %v3193 = vunpack.c.l.b16 %v343
    %v3194 = vunpack.c.l.b16 %v344
    %v3195 = vunpack.c.l.b16 %v345
    %v3196 = vunpack.c.l.b16 %v346
    %v3197 = vunpack.c.l.b16 %v347
    %v3198 = vunpack.c.l.b16 %v348
    %v3199 = vunpack.c.l.b16 %v349
    %v3200 = vunpack.c.l.b16 %v350
    %v3201 = vunpack.c.l.b16 %v351
    %v3202 = vunpack.c.l.b16 %v352
    %v3203 = vunpack.c.l.b16 %v353
    %v3204 = vunpack.c.l.b16 %v354
    %v3205 = vunpack.c.l.b16 %v355
    %v3206 = vunpack.c.l.b16 %v356
    %v3207 = vunpack.c.l.b16 %v357
    %v3208 = vunpack.c.l.b16 %v358
    %v3209 = vunpack.c.l.b16 %v359
    %v3210 = vunpack.c.l.b16 %v360
    %v3211 = vunpack.c.l.b16 %v361
    %v3212 = vunpack.c.l.b16 %v362
    %v3213 = vunpack.c.l.b16 %v363
    %v3214 = vunpack.c.l.b16 %v364
    %v3215 = vunpack.c.l.b16 %v365
    %v3216 = vunpack.c.l.b16 %v366
    %v3217 = vunpack.c.l.b16 %v367
    %v3218 = vunpack.c.l.b16 %v368
    %v3219 = vunpack.c.l.b16 %v369
    %v3220 = vunpack.c.l.b16 %v370
    %v3221 = vunpack.c.l.b16 %v371
    %v3222 = vunpack.c.l.b16 %v372
    %v3223 = vunpack.c.l.b16 %v373
    %v3224 = vunpack.c.l.b16 %v374
    %v3225 = vunpack.c.l.b16 %v375
    %v3226 = vunpack.c.l.b16 %v376
    %v3227 = vunpack.c.l.b16 %v377
    %v3228 = vunpack.c.l.b16 %v378
    %v3229 = vunpack.c.l.b16 %v379
    %v3230 = vunpack.c.l.b16 %v380
    %v3231 = vunpack.c.l.b16 %v381
    %v3232 = vunpack.c.l.b16 %v382
    %v3233 = vunpack.c.l.b16 %v383
    %v3234 = vunpack.c.l.b16 %v384
    %v3235 = vunpack.c.l.b16 %v385
    %v3236 = vunpack.c.l.b16 %v386
    %v3237 = vunpack.c.l.b16 %v387
    %v3238 = vunpack.c.l.b16 %v388
    %v3239 = vunpack.c.l.b16 %v389
    %v3240 = vunpack.c.l.b16 %v390
    %v3241 = vunpack.c.l.b16 %v391
    %v3242 = vunpack.c.l.b16 %v392
    %v3243 = vunpack.c.l.b16 %v393
    %v3244 = vunpack.c.l.b16 %v394
    %v3245 = vunpack.c.l.b16 %v395
    %v3246 = vunpack.c.l.b16 %v396
    %v3247 = vunpack.c.l.b16 %v397
    %v3248 = vunpack.c.l.b16 %v398
    %v3249 = vunpack.c.l.b16 %v399
    %v3250 = vunpack.c.l.b16 %v400
    %v3251 = vunpack.c.l.b16 %v401
    %v3252 = vunpack.c.l.b16 %v402
    %v3253 = vunpack.c.l.b16 %v403
    %v3254 = vunpack.c.l.b16 %v404
    %v3255 = vunpack.c.l.b16 %v405
    %v3256 = vunpack.c.l.b16 %v406
    %v3257 = vunpack.c.l.b16 %v407
    %v3258 = vunpack.c.l.b16 %v408
    %v3259 = vunpack.c.l.b16 %v409
    %v3260 = vunpack.c.l.b16 %v410
    %v3261 = vunpack.c.l.b16 %v411
    %v3262 = vunpack.c.l.b16 %v412
    %v3263 = vunpack.c.l.b16 %v413
    %v3264 = vunpack.c.l.b16 %v414
    %v3265 = vunpack.c.l.b16 %v415
    %v3266 = vunpack.c.l.b16 %v416
    %v3267 = vunpack.c.l.b16 %v417
    %v3268 = vunpack.c.l.b16 %v418
    %v3269 = vunpack.c.l.b16 %v419
    %v3270 = vunpack.c.l.b16 %v420
    %v3271 = vunpack.c.l.b16 %v421
    %v3272 = vunpack.c.l.b16 %v422
    %v3273 = vunpack.c.l.b16 %v423
    %v3274 = vunpack.c.l.b16 %v424
    %v3275 = vunpack.c.l.b16 %v425
    %v3276 = vunpack.c.l.b16 %v426
    %v3277 = vunpack.c.l.b16 %v427
    %v3278 = vunpack.c.l.b16 %v428
    %v3279 = vunpack.c.l.b16 %v429
    %v3280 = vunpack.c.l.b16 %v430
    %v3281 = vunpack.c.l.b16 %v431
    %v3282 = vunpack.c.l.b16 %v432
    %v3283 = vunpack.c.l.b16 %v433
    %v3284 = vunpack.c.l.b16 %v434
    %v3285 = vunpack.c.l.b16 %v435
    %v3286 = vunpack.c.l.b16 %v436
    %v3287 = vunpack.c.l.b16 %v437
    %v3288 = vunpack.c.l.b16 %v438
    %v3289 = vunpack.c.l.b16 %v439
    %v3290 = vunpack.c.l.b16 %v440
    %v3291 = vunpack.c.l.b16 %v441
    %v3292 = vunpack.c.l.b16 %v442
    %v3293 = vunpack.c.l.b16 %v443
    %v3294 = vunpack.c.l.b16 %v444
    %v3295 = vunpack.c.l.b16 %v445
    %v3296 = vunpack.c.l.b16 %v446
    %v3297 = vunpack.c.l.b16 %v447
    %v3298 = vunpack.c.l.b16 %v448
    %v3299 = vunpack.c.l.b16 %v449
    %v3300 = vunpack.c.l.b16 %v450
    %v3301 = vunpack.c.l.b16 %v451
    %v3302 = vunpack.c.l.b16 %v452
    %v3303 = vunpack.c.l.b16 %v453
    %v3304 = vunpack.c.l.b16 %v454
    %v3305 = vunpack.c.l.b16 %v455
    %v3306 = vunpack.c.l.b16 %v456
    %v3307 = vunpack.c.l.b16 %v457
    %v3308 = vunpack.c.l.b16 %v458
    %v3309 = vunpack.c.l.b16 %v459
    %v3310 = vunpack.c.l.b16 %v460
    %v3311 = vunpack.c.l.b16 %v461
    %v3312 = vunpack.c.l.b16 %v462
    %v3313 = vunpack.c.l.b16 %v463
    %v3314 = vunpack.c.l.b16 %v464
    %v3315 = vunpack.c.l.b16 %v465
    %v3316 = vunpack.c.l.b16 %v466
    %v3317 = vunpack.c.l.b16 %v467
    %v3318 = vunpack.c.l.b16 %v468
    %v3319 = vunpack.c.l.b16 %v469
    %v3320 = vunpack.c.l.b16 %v470
    %v3321 = vunpack.c.l.b16 %v471
    %v3322 = vunpack.c.l.b16 %v472
    %v3323 = vunpack.c.l.b16 %v473
    %v3324 = vunpack.c.l.b16 %v474
    %v3325 = vunpack.c.l.b16 %v475
    %v3326 = vunpack.c.l.b16 %v476
    %v3327 = vunpack.c.l.b16 %v477
    %v3328 = vunpack.c.l.b16 %v478
    %v3329 = vunpack.c.l.b16 %v479
    %v3330 = vunpack.c.l.b16 %v480
    %v3331 = vunpack.c.l.b16 %v481
    %v3332 = vunpack.c.l.b16 %v482
    %v3333 = vunpack.c.l.b16 %v483
    %v3334 = vunpack.c.l.b16 %v484
    %v3335 = vunpack.c.l.b16 %v485
    %v3336 = vunpack.c.l.b16 %v486
    %v3337 = vunpack.c.l.b16 %v487
    %v3338 = vunpack.c.l.b16 %v488
    %v3339 = vunpack.c.l.b16 %v489
    %v3340 = vunpack.c.l.b16 %v490
    %v3341 = vunpack.c.l.b16 %v491
    %v3342 = vunpack.c.l.b16 %v492
    %v3343 = vunpack.c.l.b16 %v493
    %v3344 = vunpack.c.l.b16 %v494
    %v3345 = vunpack.c.l.b16 %v495
    %v3346 = vunpack.c.l.b16 %v496
    %v3347 = vunpack.c.l.b16 %v497
    %v3348 = vunpack.c.l.b16 %v498
    %v3349 = vunpack.c.l.b16 %v499
    %v3350 = vunpack.c.l.b16 %v500
    %v3351 = vunpack.c.l.b16 %v501
    %v3352 = vunpack.c.l.b16 %v502
    %v3353 = vunpack.c.l.b16 %v503
    %v3354 = vunpack.c.l.b16 %v504
    %v3355 = vunpack.c.l.b16 %v505
    %v3356 = vunpack.c.l.b16 %v506
    %v3357 = vunpack.c.l.b16 %v507
    %v3358 = vunpack.c.l.b16 %v508
    %v3359 = vunpack.c.l.b16 %v509
    %v3360 = vunpack.c.l.b16 %v510
    %v3361 = vunpack.c.l.b16 %v511
    %v3362 = vunpack.c.l.b16 %v512
    %v3363 = vunpack.c.l.b16 %v513
    %v3364 = vunpack.c.l.b16 %v514
    %v3365 = vunpack.c.l.b16 %v515
    %v3366 = vunpack.c.l.b16 %v516
    %v3367 = vunpack.c.l.b16 %v517
    %v3368 = vunpack.c.l.b16 %v518
    %v3369 = vunpack.c.l.b16 %v519
    %v3370 = vunpack.c.l.b16 %v520
    %v3371 = vunpack.c.l.b16 %v521
    %v3372 = vunpack.c.l.b16 %v522
    %v3373 = vunpack.c.l.b16 %v523
    %v3374 = vunpack.c.l.b16 %v524
    %v3375 = vunpack.c.l.b16 %v525
    %v3376 = vunpack.c.l.b16 %v526
    %v3377 = vunpack.c.l.b16 %v527
    %v3378 = vunpack.c.l.b16 %v528
    %v3379 = vunpack.c.l.b16 %v529
    %v3380 = vunpack.c.l.b16 %v530
    %v3381 = vunpack.c.l.b16 %v531
    %v3382 = vunpack.c.l.b16 %v532
    %v3383 = vunpack.c.l.b16 %v533
    %v3384 = vunpack.c.l.b16 %v534
    %v3385 = vunpack.c.l.b16 %v535
    %v3386 = vunpack.c.l.b16 %v536
    %v3387 = vunpack.c.l.b16 %v537
    %v3388 = vunpack.c.l.b16 %v538
    %v3389 = vunpack.c.l.b16 %v539
    %v3390 = vunpack.c.l.b16 %v540
    %v3391 = vunpack.c.l.b16 %v541
    %v3392 = vunpack.c.l.b16 %v542
    %v3393 = vunpack.c.l.b16 %v543
    %v3394 = vunpack.c.l.b16 %v544
    %v3395 = vunpack.c.l.b16 %v545
    %v3396 = vunpack.c.l.b16 %v546
    %v3397 = vunpack.c.l.b16 %v547
    %v3398 = vunpack.c.l.b16 %v548
    %v3399 = vunpack.c.l.b16 %v549
    %v3400 = vunpack.c.l.b16 %v550
    %v3401 = vunpack.c.l.b16 %v551
    %v3402 = vunpack.c.l.b16 %v552
    %v3403 = vunpack.c.l.b16 %v553
    %v3404 = vunpack.c.l.b16 %v554
    %v3405 = vunpack.c.l.b16 %v555
    %v3406 = vunpack.c.l.b16 %v556
    %v3407 = vunpack.c.l.b16 %v557
    %v3408 = vunpack.c.l.b16 %v558
    %v3409 = vunpack.c.l.b16 %v559
    %v3410 = vunpack.c.l.b16 %v560
    %v3411 = vunpack.c.l.b16 %v561
    %v3412 = vunpack.c.l.b16 %v562
    %v3413 = vunpack.c.l.b16 %v563
    %v3414 = vunpack.c.l.b16 %v564
    %v3415 = vunpack.c.l.b16 %v565
    %v3416 = vunpack.c.l.b16 %v566
    %v3417 = vunpack.c.l.b16 %v567
    %v3418 = vunpack.c.l.b16 %v568
    %v3419 = vunpack.c.l.b16 %v569
    %v3420 = vunpack.c.l.b16 %v570
    %v3421 = vunpack.c.l.b16 %v571
    %v3422 = vunpack.c.l.b16 %v572
    %v3423 = vunpack.c.l.b16 %v573
    %v3424 = vunpack.c.l.b16 %v574
    %v3425 = vunpack.c.l.b16 %v575
    %v3426 = vunpack.c.l.b16 %v576
    %v3427 = vunpack.c.l.b16 %v577
    %v3428 = vunpack.c.l.b16 %v578
    %v3429 = vunpack.c.l.b16 %v579
    %v3430 = vunpack.c.l.b16 %v580
    %v3431 = vunpack.c.l.b16 %v581
    %v3432 = vunpack.c.l.b16 %v582
    %v3433 = vunpack.c.l.b16 %v583
    %v3434 = vunpack.c.l.b16 %v584
    %v3435 = vunpack.c.l.b16 %v585
    %v3436 = vunpack.c.l.b16 %v586
    %v3437 = vunpack.c.l.b16 %v587
    %v3438 = vunpack.c.l.b16 %v588
    %v3439 = vunpack.c.l.b16 %v589
    %v3440 = vunpack.c.l.b16 %v590
    %v3441 = vunpack.c.l.b16 %v591
    %v3442 = vunpack.c.l.b16 %v592
    %v3443 = vunpack.c.l.b16 %v593
    %v3444 = vunpack.c.l.b16 %v594
    %v3445 = vunpack.c.l.b16 %v595
    %v3446 = vunpack.c.l.b16 %v596
    %v3447 = vunpack.c.l.b16 %v597
    %v3448 = vunpack.c.l.b16 %v598
    %v3449 = vunpack.c.l.b16 %v599
    %v3450 = vunpack.c.l.b16 %v600
    %v3451 = vunpack.c.l.b16 %v601
    %v3452 = vunpack.c.l.b16 %v602
    %v3453 = vunpack.c.l.b16 %v603
    %v3454 = vunpack.c.l.b16 %v604
    %v3455 = vunpack.c.l.b16 %v605
    %v3456 = vunpack.c.l.b16 %v606
    %v3457 = vunpack.c.l.b16 %v607
    %v3458 = vunpack.c.l.b16 %v608
    %v3459 = vunpack.c.l.b16 %v609
    %v3460 = vunpack.c.l.b16 %v610
    %v3461 = vunpack.c.l.b16 %v611
    %v3462 = vunpack.c.l.b16 %v612
    %v3463 = vunpack.c.l.b16 %v613
    %v3464 = vunpack.c.l.b16 %v614
    %v3465 = vunpack.c.l.b16 %v615
    %v3466 = vunpack.c.l.b16 %v616
    %v3467 = vunpack.c.l.b16 %v617
    %v3468 = vunpack.c.l.b16 %v618
    %v3469 = vunpack.c.l.b16 %v619
    %v3470 = vunpack.c.l.b16 %v620
    %v3471 = vunpack.c.l.b16 %v621
    %v3472 = vunpack.c.l.b16 %v622
    %v3473 = vunpack.c.l.b16 %v623
    %v3474 = vunpack.c.l.b16 %v624
    %v3475 = vunpack.c.l.b16 %v625
    %v3476 = vunpack.c.l.b16 %v626
    %v3477 = vunpack.c.l.b16 %v627
    %v3478 = vunpack.c.l.b16 %v628
    %v3479 = vunpack.c.l.b16 %v629
    %v3480 = vunpack.c.l.b16 %v630
    %v3481 = vunpack.c.l.b16 %v631
    %v3482 = vunpack.c.l.b16 %v632
    %v3483 = vunpack.c.l.b16 %v633
    %v3484 = vunpack.c.l.b16 %v634
    %v3485 = vunpack.c.l.b16 %v635
    %v3486 = vunpack.c.l.b16 %v636
    %v3487 = vunpack.c.l.b16 %v637
    %v3488 = vunpack.c.l.b16 %v638
    %v3489 = vunpack.c.l.b16 %v639
    %v3490 = vunpack.c.l.b16 %v640
    %v3491 = vunpack.c.l.b16 %v641
    %v3492 = vunpack.c.l.b16 %v642
    %v3493 = vunpack.c.l.b16 %v643
    %v3494 = vunpack.c.l.b16 %v644
    %v3495 = vunpack.c.l.b16 %v645
    %v3496 = vunpack.c.l.b16 %v646
    %v3497 = vunpack.c.l.b16 %v647
    %v3498 = vunpack.c.l.b16 %v648
    %v3499 = vunpack.c.l.b16 %v649
    %v3500 = vunpack.c.l.b16 %v650
    %v3501 = vunpack.c.l.b16 %v651
    %v3502 = vunpack.c.l.b16 %v652
    %v3503 = vunpack.c.l.b16 %v653
    %v3504 = vunpack.c.l.b16 %v654
    %v3505 = vunpack.c.l.b16 %v655
    %v3506 = vunpack.c.l.b16 %v656
    %v3507 = vunpack.c.l.b16 %v657
    %v3508 = vunpack.c.l.b16 %v658
    %v3509 = vunpack.c.l.b16 %v659
    %v3510 = vunpack.c.l.b16 %v660
    %v3511 = vunpack.c.l.b16 %v661
    %v3512 = vunpack.c.l.b16 %v662
    %v3513 = vunpack.c.l.b16 %v663
    %v3514 = vunpack.c.l.b16 %v664
    %v3515 = vunpack.c.l.b16 %v665
    %v3516 = vunpack.c.l.b16 %v666
    %v3517 = vunpack.c.l.b16 %v667
    %v3518 = vunpack.c.l.b16 %v668
    %v3519 = vunpack.c.l.b16 %v669
    %v3520 = vunpack.c.l.b16 %v670
    %v3521 = vunpack.c.l.b16 %v671
    %v3522 = vunpack.c.l.b16 %v672
    %v3523 = vunpack.c.l.b16 %v673
    %v3524 = vunpack.c.l.b16 %v674
    %v3525 = vunpack.c.l.b16 %v675
    %v3526 = vunpack.c.l.b16 %v676
    %v3527 = vunpack.c.l.b16 %v677
    %v3528 = vunpack.c.l.b16 %v678
    %v3529 = vunpack.c.l.b16 %v679
    %v3530 = vunpack.c.l.b16 %v680
    %v3531 = vunpack.c.l.b16 %v681
    %v3532 = vunpack.c.l.b16 %v682
    %v3533 = vunpack.c.l.b16 %v683
    %v3534 = vunpack.c.l.b16 %v684
    %v3535 = vunpack.c.l.b16 %v685
    %v3536 = vunpack.c.l.b16 %v686
    %v3537 = vunpack.c.l.b16 %v687
    %v3538 = vunpack.c.l.b16 %v688
    %v3539 = vunpack.c.l.b16 %v689
    %v3540 = vunpack.c.l.b16 %v690
    %v3541 = vunpack.c.l.b16 %v691
    %v3542 = vunpack.c.l.b16 %v692
    %v3543 = vunpack.c.l.b16 %v693
    %v3544 = vunpack.c.l.b16 %v694
    %v3545 = vunpack.c.l.b16 %v695
    %v3546 = vunpack.c.l.b16 %v696
    %v3547 = vunpack.c.l.b16 %v697
    %v3548 = vunpack.c.l.b16 %v698
    %v3549 = vunpack.c.l.b16 %v699
    %v3550 = vunpack.c.l.b16 %v700
    %v3551 = vunpack.c.l.b16 %v701
    %v3552 = vunpack.c.l.b16 %v702
    %v3553 = vunpack.c.l.b16 %v703
    %v3554 = vunpack.c.l.b16 %v704
    %v3555 = vunpack.c.l.b16 %v705
    %v3556 = vunpack.c.l.b16 %v706
    %v3557 = vunpack.c.l.b16 %v707
    %v3558 = vunpack.c.l.b16 %v708
    %v3559 = vunpack.c.l.b16 %v709
    %v3560 = vunpack.c.l.b16 %v710
    %v3561 = vunpack.c.l.b16 %v711
    %v3562 = vunpack.c.l.b16 %v712
    %v3563 = vunpack.c.l.b16 %v713
    %v3564 = vunpack.c.l.b16 %v714
    %v3565 = vunpack.c.l.b16 %v715
    %v3566 = vunpack.c.l.b16 %v716
    %v3567 = vunpack.c.l.b16 %v717
    %v3568 = vunpack.c.l.b16 %v718
    %v3569 = vunpack.c.l.b16 %v719
    %v3570 = vunpack.c.l.b16 %v720
    %v3571 = vunpack.c.l.b16 %v721
    %v3572 = vunpack.c.l.b16 %v722
    %v3573 = vunpack.c.l.b16 %v723
    %v3574 = vunpack.c.l.b16 %v724
    %v3575 = vunpack.c.l.b16 %v725
    %v3576 = vunpack.c.l.b16 %v726
    %v3577 = vunpack.c.l.b16 %v727
    %v3578 = vunpack.c.l.b16 %v728
    %v3579 = vunpack.c.l.b16 %v729
    %v3580 = vunpack.c.l.b16 %v730
    %v3581 = vunpack.c.l.b16 %v731
    %v3582 = vunpack.c.l.b16 %v732
    %v3583 = vunpack.c.l.b16 %v733
    %v3584 = vunpack.c.l.b16 %v734
    %v3585 = vunpack.c.l.b16 %v735
    %v3586 = vunpack.c.l.b16 %v736
    %v3587 = vunpack.c.l.b16 %v737
    %v3588 = vunpack.c.l.b16 %v738
    %v3589 = vunpack.c.l.b16 %v739
    %v3590 = vunpack.c.l.b16 %v740
    %v3591 = vunpack.c.l.b16 %v741
    %v3592 = vunpack.c.l.b16 %v742
    %v3593 = vunpack.c.l.b16 %v743
    %v3594 = vunpack.c.l.b16 %v744
    %v3595 = vunpack.c.l.b16 %v745
    %v3596 = vunpack.c.l.b16 %v746
    %v3597 = vunpack.c.l.b16 %v747
    %v3598 = vunpack.c.l.b16 %v748
    %v3599 = vunpack.c.l.b16 %v749
    %v3600 = vunpack.c.l.b16 %v750
    %v3601 = vunpack.c.l.b16 %v751
    %v3602 = vunpack.c.l.b16 %v752
    %v3603 = vunpack.c.l.b16 %v753
    %v3604 = vunpack.c.l.b16 %v754
    %v3605 = vunpack.c.l.b16 %v755
    %v3606 = vunpack.c.l.b16 %v756
    %v3607 = vunpack.c.l.b16 %v757
    %v3608 = vunpack.c.l.b16 %v758
    %v3609 = vunpack.c.l.b16 %v759
    %v3610 = vunpack.c.l.b16 %v760
    %v3611 = vunpack.c.l.b16 %v761
    %v3612 = vunpack.c.l.b16 %v762
    %v3613 = vunpack.c.l.b16 %v763
    %v3614 = vunpack.c.l.b16 %v764
    %v3615 = vunpack.c.l.b16 %v765
    %v3616 = vunpack.c.l.b16 %v766
    %v3617 = vunpack.c.l.b16 %v767
    %v3618 = vunpack.c.l.b16 %v768
    %v3619 = vunpack.c.l.b16 %v769
    %v3620 = vunpack.c.l.b16 %v770
    %v3621 = vunpack.c.l.b16 %v771
    %v3622 = vunpack.c.l.b16 %v772
    %v3623 = vunpack.c.l.b16 %v773
    %v3624 = vunpack.c.l.b16 %v774
    %v3625 = vunpack.c.l.b16 %v775
    %v3626 = vunpack.c.l.b16 %v776
    %v3627 = vunpack.c.l.b16 %v777
    %v3628 = vunpack.c.l.b16 %v778
    %v3629 = vunpack.c.l.b16 %v779
    %v3630 = vunpack.c.l.b16 %v780
    %v3631 = vunpack.c.l.b16 %v781
    %v3632 = vunpack.c.l.b16 %v782
    %v3633 = vunpack.c.l.b16 %v783
    %v3634 = vunpack.c.l.b16 %v784
    %v3635 = vunpack.c.l.b16 %v785
    %v3636 = vunpack.c.l.b16 %v786
    %v3637 = vunpack.c.l.b16 %v787
    %v3638 = vunpack.c.l.b16 %v788
    %v3639 = vunpack.c.l.b16 %v789
    %v3640 = vunpack.c.l.b16 %v790
    %v3641 = vunpack.c.l.b16 %v791
    %v3642 = vunpack.c.l.b16 %v792
    %v3643 = vunpack.c.l.b16 %v793
    %v3644 = vunpack.c.l.b16 %v794
    %v3645 = vunpack.c.l.b16 %v795
    %v3646 = vunpack.c.l.b16 %v796
    %v3647 = vunpack.c.l.b16 %v797
    %v3648 = vunpack.c.l.b16 %v798
    %v3649 = vunpack.c.l.b16 %v799
    %v3650 = vunpack.c.l.b16 %v800
    %v3651 = vunpack.c.l.b16 %v801
    %v3652 = vunpack.c.l.b16 %v802
    %v3653 = vunpack.c.l.b16 %v803
    %v3654 = vunpack.c.l.b16 %v804
    %v3655 = vunpack.c.l.b16 %v805
    %v3656 = vunpack.c.l.b16 %v806
    %v3657 = vunpack.c.l.b16 %v807
    %v3658 = vunpack.c.l.b16 %v808
    %v3659 = vunpack.c.l.b16 %v809
    %v3660 = vunpack.c.l.b16 %v810
    %v3661 = vunpack.c.l.b16 %v811
    %v3662 = vunpack.c.l.b16 %v812
    %v3663 = vunpack.c.l.b16 %v813
    %v3664 = vunpack.c.l.b16 %v814
    %v3665 = vunpack.c.l.b16 %v815
    %v3666 = vunpack.c.l.b16 %v816
    %v3667 = vunpack.c.l.b16 %v817
    %v3668 = vunpack.c.l.b16 %v818
    %v3669 = vunpack.c.l.b16 %v819
    %v3670 = vunpack.c.l.b16 %v820
    %v3671 = vunpack.c.l.b16 %v821
    %v3672 = vunpack.c.l.b16 %v822
    %v3673 = vunpack.c.l.b16 %v823
    %v3674 = vunpack.c.l.b16 %v824
    %v3675 = vunpack.c.l.b16 %v825
    %v3676 = vunpack.c.l.b16 %v826
    %v3677 = vunpack.c.l.b16 %v827
    %v3678 = vunpack.c.l.b16 %v828
    %v3679 = vunpack.c.l.b16 %v829
    %v3680 = vunpack.c.l.b16 %v830
    %v3681 = vunpack.c.l.b16 %v831
    %v3682 = vunpack.c.l.b16 %v832
    %v3683 = vunpack.c.l.b16 %v833
    %v3684 = vunpack.c.l.b16 %v834
    %v3685 = vunpack.c.l.b16 %v835
    %v3686 = vunpack.c.l.b16 %v836
    %v3687 = vunpack.c.l.b16 %v837
    %v3688 = vunpack.c.l.b16 %v838
    %v3689 = vunpack.c.l.b16 %v839
    %v3690 = vunpack.c.l.b16 %v840
    %v3691 = vunpack.c.l.b16 %v841
    %v3692 = vunpack.c.l.b16 %v842
    %v3693 = vunpack.c.l.b16 %v843
    %v3694 = vunpack.c.l.b16 %v844
    %v3695 = vunpack.c.l.b16 %v845
    %v3696 = vunpack.c.l.b16 %v846
    %v3697 = vunpack.c.l.b16 %v847
    %v3698 = vunpack.c.l.b16 %v848
    %v3699 = vunpack.c.l.b16 %v849
    %v3700 = vunpack.c.l.b16 %v850
    %v3701 = vunpack.c.l.b16 %v851
    %v3702 = vunpack.c.l.b16 %v852
    %v3703 = vunpack.c.l.b16 %v853
    %v3704 = vunpack.c.l.b16 %v854
    %v3705 = vunpack.c.l.b16 %v855
    %v3706 = vunpack.c.l.b16 %v856
    %v3707 = vunpack.c.l.b16 %v857
    %v3708 = vunpack.c.l.b16 %v858
    %v3709 = vunpack.c.l.b16 %v859
    %v3710 = vunpack.c.l.b16 %v860
    %v3711 = vunpack.c.l.b16 %v861
    %v3712 = vunpack.c.l.b16 %v862
    %v3713 = vunpack.c.l.b16 %v863
    %v3714 = vunpack.c.l.b16 %v864
    %v3715 = vunpack.c.l.b16 %v865
    %v3716 = vunpack.c.l.b16 %v866
    %v3717 = vunpack.c.l.b16 %v867
    %v3718 = vunpack.c.l.b16 %v868
    %v3719 = vunpack.c.l.b16 %v869
    %v3720 = vunpack.c.l.b16 %v870
    %v3721 = vunpack.c.l.b16 %v871
    %v3722 = vunpack.c.l.b16 %v872
    %v3723 = vunpack.c.l.b16 %v873
    %v3724 = vunpack.c.l.b16 %v874
    %v3725 = vunpack.c.l.b16 %v875
    %v3726 = vunpack.c.l.b16 %v876
    %v3727 = vunpack.c.l.b16 %v877
    %v3728 = vunpack.c.l.b16 %v878
    %v3729 = vunpack.c.l.b16 %v879
    %v3730 = vunpack.c.l.b16 %v880
    %v3731 = vunpack.c.l.b16 %v881
    %v3732 = vunpack.c.l.b16 %v882
    %v3733 = vunpack.c.l.b16 %v883
    %v3734 = vunpack.c.l.b16 %v884
    %v3735 = vunpack.c.l.b16 %v885
    %v3736 = vunpack.c.l.b16 %v886
    %v3737 = vunpack.c.l.b16 %v887
    %v3738 = vunpack.c.l.b16 %v888
    %v3739 = vunpack.c.l.b16 %v889
    %v3740 = vunpack.c.l.b16 %v890
    %v3741 = vunpack.c.l.b16 %v891
    %v3742 = vunpack.c.l.b16 %v892
    %v3743 = vunpack.c.l.b16 %v893
    %v3744 = vunpack.c.l.b16 %v894
    %v3745 = vunpack.c.l.b16 %v895
    %v3746 = vunpack.c.l.b16 %v896
    %v3747 = vunpack.c.l.b16 %v897
    %v3748 = vunpack.c.l.b16 %v898
    %v3749 = vunpack.c.l.b16 %v899
    %v3750 = vunpack.c.l.b16 %v900
    %v3751 = vunpack.c.l.b16 %v901
    %v3752 = vunpack.c.l.b16 %v902
    %v3753 = vunpack.c.l.b16 %v903
    %v3754 = vunpack.c.l.b16 %v904
    %v3755 = vunpack.c.l.b16 %v905
    %v3756 = vunpack.c.l.b16 %v906
    %v3757 = vunpack.c.l.b16 %v907
    %v3758 = vunpack.c.l.b16 %v908
    %v3759 = vunpack.c.l.b16 %v909
    %v3760 = vunpack.c.l.b16 %v910
    %v3761 = vunpack.c.l.b16 %v911
    %v3762 = vunpack.c.l.b16 %v912
    %v3763 = vunpack.c.l.b16 %v913
    %v3764 = vunpack.c.l.b16 %v914
    %v3765 = vunpack.c.l.b16 %v915
    %v3766 = vunpack.c.l.b16 %v916
    %v3767 = vunpack.c.l.b16 %v917
    %v3768 = vunpack.c.l.b16 %v918
    %v3769 = vunpack.c.l.b16 %v919
    %v3770 = vunpack.c.l.b16 %v920
    %v3771 = vunpack.c.l.b16 %v921
    %v3772 = vunpack.c.l.b16 %v922
    %v3773 = vunpack.c.l.b16 %v923
    %v3774 = vunpack.c.l.b16 %v924
    %v3775 = vunpack.c.l.b16 %v925
    %v3776 = vunpack.c.l.b16 %v926
    %v3777 = vunpack.c.l.b16 %v927
    %v3778 = vunpack.c.l.b16 %v928
    %v3779 = vunpack.c.l.b16 %v929
    %v3780 = vunpack.c.l.b16 %v930
    %v3781 = vunpack.c.l.b16 %v931
    %v3782 = vunpack.c.l.b16 %v932
    %v3783 = vunpack.c.l.b16 %v933
    %v3784 = vunpack.c.l.b16 %v934
    %v3785 = vunpack.c.l.b16 %v935
    %v3786 = vunpack.c.l.b16 %v936
    %v3787 = vunpack.c.l.b16 %v937
    %v3788 = vunpack.c.l.b16 %v938
    %v3789 = vunpack.c.l.b16 %v939
    %v3790 = vunpack.c.l.b16 %v940
    %v3791 = vunpack.c.l.b16 %v941
    %v3792 = vunpack.c.l.b16 %v942
    %v3793 = vunpack.c.l.b16 %v943
    %v3794 = vunpack.c.l.b16 %v944
    %v3795 = vunpack.c.l.b16 %v945
    %v3796 = vunpack.c.l.b16 %v946
    %v3797 = vunpack.c.l.b16 %v947
    %v3798 = vunpack.c.l.b16 %v948
    %v3799 = vunpack.c.l.b16 %v949
    %v3800 = vunpack.c.l.b16 %v950
    %v3801 = vunpack.c.l.b16 %v951
    %v3802 = vunpack.c.l.b16 %v952
    %v3803 = vunpack.c.l.b16 %v953
    %v3804 = vunpack.c.l.b16 %v954
    %v3805 = vunpack.c.l.b16 %v955
    %v3806 = vunpack.c.l.b16 %v956
    %v3807 = vunpack.c.l.b16 %v957
    %v3808 = vunpack.c.l.b16 %v958
    %v3809 = vunpack.c.l.b16 %v959
    %v3810 = vunpack.c.l.b16 %v960
    %v3811 = vunpack.c.l.b16 %v961
    %v3812 = vunpack.c.l.b16 %v962
    %v3813 = vunpack.c.l.b16 %v963
    %v3814 = vunpack.c.l.b16 %v964
    %v3815 = vunpack.c.l.b16 %v965
    %v3816 = vunpack.c.l.b16 %v966
    %v3817 = vunpack.c.l.b16 %v967
    %v3818 = vunpack.c.l.b16 %v968
    %v3819 = vunpack.c.l.b16 %v969
    %v3820 = vunpack.c.l.b16 %v970
    %v3821 = vunpack.c.l.b16 %v971
    %v3822 = vunpack.c.l.b16 %v972
    %v3823 = vunpack.c.l.b16 %v973
    %v3824 = vunpack.c.l.b16 %v974
    %v3825 = vunpack.c.l.b16 %v975
    %v3826 = vunpack.c.l.b16 %v976
    %v3827 = vunpack.c.l.b16 %v977
    %v3828 = vunpack.c.l.b16 %v978
    %v3829 = vunpack.c.l.b16 %v979
    %v3830 = vunpack.c.l.b16 %v980
    %v3831 = vunpack.c.l.b16 %v981
    %v3832 = vunpack.c.l.b16 %v982
    %v3833 = vunpack.c.l.b16 %v983
    %v3834 = vunpack.c.l.b16 %v984
    %v3835 = vunpack.c.l.b16 %v985
    %v3836 = vunpack.c.l.b16 %v986
    %v3837 = vunpack.c.l.b16 %v987
    %v3838 = vunpack.c.l.b16 %v988
    %v3839 = vunpack.c.l.b16 %v989
    %v3840 = vunpack.c.l.b16 %v990
    %v3841 = vunpack.c.l.b16 %v991
    %v3842 = vunpack.c.l.b16 %v992
    %v3843 = vunpack.c.l.b16 %v993
    %v3844 = vunpack.c.l.b16 %v994
    %v3845 = vunpack.c.l.b16 %v995
    %v3846 = vunpack.c.l.b16 %v996
    %v3847 = vunpack.c.l.b16 %v997
    %v3848 = vunpack.c.l.b16 %v998
    %v3849 = vunpack.c.l.b16 %v999
    %v3850 = vunpack.c.l.b16 %v1000
    %v3851 = vunpack.c.l.b16 %v1001
    %v3852 = vunpack.c.l.b16 %v1002
    %v3853 = vunpack.c.l.b16 %v1003
    %v3854 = vunpack.c.l.b16 %v1004
    %v3855 = vunpack.c.l.b16 %v1005
    %v3856 = vunpack.c.l.b16 %v1006
    %v3857 = vunpack.c.l.b16 %v1007
    %v3858 = vunpack.c.l.b16 %v1008
    %v3859 = vunpack.c.l.b16 %v1009
    %v3860 = vunpack.c.l.b16 %v1010
    %v3861 = vunpack.c.l.b16 %v1011
    %v3862 = vunpack.c.l.b16 %v1012
    %v3863 = vunpack.c.l.b16 %v1013
    %v3864 = vunpack.c.l.b16 %v1014
    %v3865 = vunpack.c.l.b16 %v1015
    %v3866 = vunpack.c.l.b16 %v1016
    %v3867 = vunpack.c.l.b16 %v1017
    %v3868 = vunpack.c.l.b16 %v1018
    %v3869 = vunpack.c.l.b16 %v1019
    %v3870 = vunpack.c.l.b16 %v1020
    %v3871 = vunpack.c.l.b16 %v1021
    %v3872 = vunpack.c.l.b16 %v1022
    %v3873 = vunpack.c.l.b16 %v1023
    %v3874 = vunpack.c.l.b16 %v1024
    %v3875 = vunpack.c.l.b16 %v1025
    %v3876 = vunpack.c.l.b16 %v1026
    %v3877 = vunpack.c.l.b16 %v1027
    %v3878 = vunpack.c.l.b16 %v1028
    %v3879 = vunpack.c.l.b16 %v1029
    %v3880 = vunpack.c.l.b16 %v1030
    %v3881 = vunpack.c.l.b16 %v1031
    %v3882 = vunpack.c.l.b16 %v1032
    %v3883 = vunpack.c.l.b16 %v1033
    %v3884 = vunpack.c.l.b16 %v1034
    %v3885 = vunpack.c.l.b16 %v1035
    %v3886 = vunpack.c.l.b16 %v1036
    %v3887 = vunpack.c.l.b16 %v1037
    %v3888 = vunpack.c.l.b16 %v1038
    %v3889 = vunpack.c.l.b16 %v1039
    %v3890 = vunpack.c.l.b16 %v1040
    %v3891 = vunpack.c.l.b16 %v1041
    %v3892 = vunpack.c.l.b16 %v1042
    %v3893 = vunpack.c.l.b16 %v1043
    %v3894 = vunpack.c.l.b16 %v1044
    %v3895 = vunpack.c.l.b16 %v1045
    %v3896 = vunpack.c.l.b16 %v1046
    %v3897 = vunpack.c.l.b16 %v1047
    %v3898 = vunpack.c.l.b16 %v1048
    %v3899 = vunpack.c.l.b16 %v1049
    %v3900 = vunpack.c.l.b16 %v1050
    %v3901 = vunpack.c.l.b16 %v1051
    %v3902 = vunpack.c.l.b16 %v1052
    %v3903 = vunpack.c.l.b16 %v1053
    %v3904 = vunpack.c.l.b16 %v1054
    %v3905 = vunpack.c.l.b16 %v1055
    %v3906 = vunpack.c.l.b16 %v1056
    %v3907 = vunpack.c.l.b16 %v1057
    %v3908 = vunpack.c.l.b16 %v1058
    %v3909 = vunpack.c.l.b16 %v1059
    %v3910 = vunpack.c.l.b16 %v1060
    %v3911 = vunpack.c.l.b16 %v1061
    %v3912 = vunpack.c.l.b16 %v1062
    %v3913 = vunpack.c.l.b16 %v1063
    %v3914 = vunpack.c.l.b16 %v1064
    %v3915 = vunpack.c.l.b16 %v1065
    %v3916 = vunpack.c.l.b16 %v1066
    %v3917 = vunpack.c.l.b16 %v1067
    %v3918 = vunpack.c.l.b16 %v1068
    %v3919 = vunpack.c.l.b16 %v1069
    %v3920 = vunpack.c.l.b16 %v1070
    %v3921 = vunpack.c.l.b16 %v1071
    %v3922 = vunpack.c.l.b16 %v1072
    %v3923 = vunpack.c.l.b16 %v1073
    %v3924 = vunpack.c.l.b16 %v1074
    %v3925 = vunpack.c.l.b16 %v1075
    %v3926 = vunpack.c.l.b16 %v1076
    %v3927 = vunpack.c.l.b16 %v1077
    %v3928 = vunpack.c.l.b16 %v1078
    %v3929 = vunpack.c.l.b16 %v1079
    %v3930 = vunpack.c.l.b16 %v1080
    %v3931 = vunpack.c.l.b16 %v1081
    %v3932 = vunpack.c.l.b16 %v1082
    %v3933 = vunpack.c.l.b16 %v1083
    %v3934 = vunpack.c.l.b16 %v1084
    %v3935 = vunpack.c.l.b16 %v1085
    %v3936 = vunpack.c.l.b16 %v1086
    %v3937 = vunpack.c.l.b16 %v1087
    %v3938 = vunpack.c.l.b16 %v1088
    %v3939 = vunpack.c.l.b16 %v1089
    %v3940 = vunpack.c.l.b16 %v1090
    %v3941 = vunpack.c.l.b16 %v1091
    %v3942 = vunpack.c.l.b16 %v1092
    %v3943 = vunpack.c.l.b16 %v1093
    %v3944 = vunpack.c.l.b16 %v1094
    %v3945 = vunpack.c.l.b16 %v1095
    %v3946 = vunpack.c.l.b16 %v1096
    %v3947 = vunpack.c.l.b16 %v1097
    %v3948 = vunpack.c.l.b16 %v1098
    %v3949 = vunpack.c.l.b16 %v1099
    %v3950 = vunpack.c.l.b16 %v1100
    %v3951 = vunpack.c.l.b16 %v1101
    %v3952 = vunpack.c.l.b16 %v1102
    %v3953 = vunpack.c.l.b16 %v1103
    %v3954 = vunpack.c.l.b16 %v1104
    %v3955 = vunpack.c.l.b16 %v1105
    %v3956 = vunpack.c.l.b16 %v1106
    %v3957 = vunpack.c.l.b16 %v1107
    %v3958 = vunpack.c.l.b16 %v1108
    %v3959 = vunpack.c.l.b16 %v1109
    %v3960 = vunpack.c.l.b16 %v1110
    %v3961 = vunpack.c.l.b16 %v1111
    %v3962 = vunpack.c.l.b16 %v1112
    %v3963 = vunpack.c.l.b16 %v1113
    %v3964 = vunpack.c.l.b16 %v1114
    %v3965 = vunpack.c.l.b16 %v1115
    %v3966 = vunpack.c.l.b16 %v1116
    %v3967 = vunpack.c.l.b16 %v1117
    %v3968 = vunpack.c.l.b16 %v1118
    %v3969 = vunpack.c.l.b16 %v1119
    %v3970 = vunpack.c.l.b16 %v1120
    %v3971 = vunpack.c.l.b16 %v1121
    %v3972 = vunpack.c.l.b16 %v1122
    %v3973 = vunpack.c.l.b16 %v1123
    %v3974 = vunpack.c.l.b16 %v1124
    %v3975 = vunpack.c.l.b16 %v1125
    %v3976 = vunpack.c.l.b16 %v1126
    %v3977 = vunpack.c.l.b16 %v1127
    %v3978 = vunpack.c.l.b16 %v1128
    %v3979 = vunpack.c.l.b16 %v1129
    %v3980 = vunpack.c.l.b16 %v1130
    %v3981 = vunpack.c.l.b16 %v1131
    %v3982 = vunpack.c.l.b16 %v1132
    %v3983 = vunpack.c.l.b16 %v1133
    %v3984 = vunpack.c.l.b16 %v1134
    %v3985 = vunpack.c.l.b16 %v1135
    %v3986 = vunpack.c.l.b16 %v1136
    %v3987 = vunpack.c.l.b16 %v1137
    %v3988 = vunpack.c.l.b16 %v1138
    %v3989 = vunpack.c.l.b16 %v1139
    %v3990 = vunpack.c.l.b16 %v1140
    %v3991 = vunpack.c.l.b16 %v1141
    %v3992 = vunpack.c.l.b16 %v1142
    %v3993 = vunpack.c.l.b16 %v1143
    %v3994 = vunpack.c.l.b16 %v1144
    %v3995 = vunpack.c.l.b16 %v1145
    %v3996 = vunpack.c.l.b16 %v1146
    %v3997 = vunpack.c.l.b16 %v1147
    %v3998 = vunpack.c.l.b16 %v1148
    %v3999 = vunpack.c.l.b16 %v1149
    %v4000 = vunpack.c.l.b16 %v1150
    %v4001 = vunpack.c.l.b16 %v1151
    %v4002 = vunpack.c.l.b16 %v1152
    %v4003 = vunpack.c.l.b16 %v1153
    %v4004 = vunpack.c.l.b16 %v1154
    %v4005 = vunpack.c.l.b16 %v1155
    %v4006 = vunpack.c.l.b16 %v1156
    %v4007 = vunpack.c.l.b16 %v1157
    %v4008 = vunpack.c.l.b16 %v1158
    %v4009 = vunpack.c.l.b16 %v1159
    %v4010 = vunpack.c.l.b16 %v1160
    %v4011 = vunpack.c.l.b16 %v1161
    %v4012 = vunpack.c.l.b16 %v1162
    %v4013 = vunpack.c.l.b16 %v1163
    %v4014 = vunpack.c.l.b16 %v1164
    %v4015 = vunpack.c.l.b16 %v1165
    %v4016 = vunpack.c.l.b16 %v1166
    %v4017 = vunpack.c.l.b16 %v1167
    %v4018 = vunpack.c.l.b16 %v1168
    %v4019 = vunpack.c.l.b16 %v1169
    %v4020 = vunpack.c.l.b16 %v1170
    %v4021 = vunpack.c.l.b16 %v1171
    %v4022 = vunpack.c.l.b16 %v1172
    %v4023 = vunpack.c.l.b16 %v1173
    %v4024 = vunpack.c.l.b16 %v1174
    %v4025 = vunpack.c.l.b16 %v1175
    %v4026 = vunpack.c.l.b16 %v1176
    %v4027 = vunpack.c.l.b16 %v1177
    %v4028 = vunpack.c.l.b16 %v1178
    %v4029 = vunpack.c.l.b16 %v1179
    %v4030 = vunpack.c.l.b16 %v1180
    %v4031 = vunpack.c.l.b16 %v1181
    %v4032 = vunpack.c.l.b16 %v1182
    %v4033 = vunpack.c.l.b16 %v1183
    %v4034 = vunpack.c.l.b16 %v1184
    %v4035 = vunpack.c.l.b16 %v1185
    %v4036 = vunpack.c.l.b16 %v1186
    %v4037 = vunpack.c.l.b16 %v1187
    %v4038 = vunpack.c.l.b16 %v1188
    %v4039 = vunpack.c.l.b16 %v1189
    %v4040 = vunpack.c.l.b16 %v1190
    %v4041 = vunpack.c.l.b16 %v1191
    %v4042 = vunpack.c.l.b16 %v1192
    %v4043 = vunpack.c.l.b16 %v1193
    %v4044 = vunpack.c.l.b16 %v1194
    %v4045 = vunpack.c.l.b16 %v1195
    %v4046 = vunpack.c.l.b16 %v1196
    %v4047 = vunpack.c.l.b16 %v1197
    %v4048 = vunpack.c.l.b16 %v1198
    %v4049 = vunpack.c.l.b16 %v1199
    %v4050 = vunpack.c.l.b16 %v1200
    %v4051 = vunpack.c.l.b16 %v1201
    %v4052 = vunpack.c.l.b16 %v1202
    %v4053 = vunpack.c.l.b16 %v1203
    %v4054 = vunpack.c.l.b16 %v1204
    %v4055 = vunpack.c.l.b16 %v1205
    %v4056 = vunpack.c.l.b16 %v1206
    %v4057 = vunpack.c.l.b16 %v1207
    %v4058 = vunpack.c.l.b16 %v1208
    %v4059 = vunpack.c.l.b16 %v1209
    %v4060 = vunpack.c.l.b16 %v1210
    %v4061 = vunpack.c.l.b16 %v1211
    %v4062 = vunpack.c.l.b16 %v1212
    %v4063 = vunpack.c.l.b16 %v1213
    %v4064 = vunpack.c.l.b16 %v1214
    %v4065 = vunpack.c.l.b16 %v1215
    %v4066 = vunpack.c.l.b16 %v1216
    %v4067 = vunpack.c.l.b16 %v1217
    %v4068 = vunpack.c.l.b16 %v1218
    %v4069 = vunpack.c.l.b16 %v1219
    %v4070 = vunpack.c.l.b16 %v1220
    %v4071 = vunpack.c.l.b16 %v1221
    %v4072 = vunpack.c.l.b16 %v1222
    %v4073 = vunpack.c.l.b16 %v1223
    %v4074 = vunpack.c.l.b16 %v1224
    %v4075 = vunpack.c.l.b16 %v1225
    %v4076 = vunpack.c.l.b16 %v1226
    %v4077 = vunpack.c.l.b16 %v1227
    %v4078 = vunpack.c.l.b16 %v1228
    %v4079 = vunpack.c.l.b16 %v1229
    %v4080 = vunpack.c.l.b16 %v1230
    %v4081 = vunpack.c.l.b16 %v1231
    %v4082 = vunpack.c.l.b16 %v1232
    %v4083 = vunpack.c.l.b16 %v1233
    %v4084 = vunpack.c.l.b16 %v1234
    %v4085 = vunpack.c.l.b16 %v1235
    %v4086 = vunpack.c.l.b16 %v1236
    %v4087 = vunpack.c.l.b16 %v1237
    %v4088 = vunpack.c.l.b16 %v1238
    %v4089 = vunpack.c.l.b16 %v1239
    %v4090 = vunpack.c.l.b16 %v1240
    %v4091 = vunpack.c.l.b16 %v1241
    %v4092 = vunpack.c.l.b16 %v1242
    %v4093 = vunpack.c.l.b16 %v1243
    %v4094 = vunpack.c.l.b16 %v1244
    %v4095 = vunpack.c.l.b16 %v1245
    %v4096 = vunpack.c.l.b16 %v1246
    %v4097 = vunpack.c.l.b16 %v1247
    %v4098 = vunpack.c.l.b16 %v1248
    %v4099 = vunpack.c.l.b16 %v1249
    %v4100 = vunpack.c.l.b16 %v1250
    %v4101 = vunpack.c.l.b16 %v1251
    %v4102 = vunpack.c.l.b16 %v1252
    %v4103 = vunpack.c.l.b16 %v1253
    %v4104 = vunpack.c.l.b16 %v1254
    %v4105 = vunpack.c.l.b16 %v1255
    %v4106 = vunpack.c.l.b16 %v1256
    %v4107 = vunpack.c.l.b16 %v1257
    %v4108 = vunpack.c.l.b16 %v1258
    %v4109 = vunpack.c.l.b16 %v1259
    %v4110 = vunpack.c.l.b16 %v1260
    %v4111 = vunpack.c.l.b16 %v1261
    %v4112 = vunpack.c.l.b16 %v1262
    %v4113 = vunpack.c.l.b16 %v1263
    %v4114 = vunpack.c.l.b16 %v1264
    %v4115 = vunpack.c.l.b16 %v1265
    %v4116 = vunpack.c.l.b16 %v1266
    %v4117 = vunpack.c.l.b16 %v1267
    %v4118 = vunpack.c.l.b16 %v1268
    %v4119 = vunpack.c.l.b16 %v1269
    %v4120 = vunpack.c.l.b16 %v1270
    %v4121 = vunpack.c.l.b16 %v1271
    %v4122 = vunpack.c.l.b16 %v1272
    %v4123 = vunpack.c.l.b16 %v1273
    %v4124 = vunpack.c.l.b16 %v1274
    %v4125 = vunpack.c.l.b16 %v1275
    %v4126 = vunpack.c.l.b16 %v1276
    %v4127 = vunpack.c.l.b16 %v1277
    %v4128 = vunpack.c.l.b16 %v1278
    %v4129 = vunpack.c.l.b16 %v1279
    %v4130 = vunpack.c.l.b16 %v1280
    %v4131 = vunpack.c.l.b16 %v1281
    %v4132 = vunpack.c.l.b16 %v1282
    %v4133 = vunpack.c.l.b16 %v1283
    %v4134 = vunpack.c.l.b16 %v1284
    %v4135 = vunpack.c.l.b16 %v1285
    %v4136 = vunpack.c.l.b16 %v1286
    %v4137 = vunpack.c.l.b16 %v1287
    %v4138 = vunpack.c.l.b16 %v1288
    %v4139 = vunpack.c.l.b16 %v1289
    %v4140 = vunpack.c.l.b16 %v1290
    %v4141 = vunpack.c.l.b16 %v1291
    %v4142 = vunpack.c.l.b16 %v1292
    %v4143 = vunpack.c.l.b16 %v1293
    %v4144 = vunpack.c.l.b16 %v1294
    %v4145 = vunpack.c.l.b16 %v1295
    %v4146 = vunpack.c.l.b16 %v1296
    %v4147 = vunpack.c.l.b16 %v1297
    %v4148 = vunpack.c.l.b16 %v1298
    %v4149 = vunpack.c.l.b16 %v1299
    %v4150 = vunpack.c.l.b16 %v1300
    %v4151 = vunpack.c.l.b16 %v1301
    %v4152 = vunpack.c.l.b16 %v1302
    %v4153 = vunpack.c.l.b16 %v1303
    %v4154 = vunpack.c.l.b16 %v1304
    %v4155 = vunpack.c.l.b16 %v1305
    %v4156 = vunpack.c.l.b16 %v1306
    %v4157 = vunpack.c.l.b16 %v1307
    %v4158 = vunpack.c.l.b16 %v1308
    %v4159 = vunpack.c.l.b16 %v1309
    %v4160 = vunpack.c.l.b16 %v1310
    %v4161 = vunpack.c.l.b16 %v1311
    %v4162 = vunpack.c.l.b16 %v1312
    %v4163 = vunpack.c.l.b16 %v1313
    %v4164 = vunpack.c.l.b16 %v1314
    %v4165 = vunpack.c.l.b16 %v1315
    %v4166 = vunpack.c.l.b16 %v1316
    %v4167 = vunpack.c.l.b16 %v1317
    %v4168 = vunpack.c.l.b16 %v1318
    %v4169 = vunpack.c.l.b16 %v1319
    %v4170 = vunpack.c.l.b16 %v1320
    %v4171 = vunpack.c.l.b16 %v1321
    %v4172 = vunpack.c.l.b16 %v1322
    %v4173 = vunpack.c.l.b16 %v1323
    %v4174 = vunpack.c.l.b16 %v1324
    %v4175 = vunpack.c.l.b16 %v1325
    %v4176 = vunpack.c.l.b16 %v1326
    %v4177 = vunpack.c.l.b16 %v1327
    %v4178 = vunpack.c.l.b16 %v1328
    %v4179 = vunpack.c.l.b16 %v1329
    %v4180 = vunpack.c.l.b16 %v1330
    %v4181 = vunpack.c.l.b16 %v1331
    %v4182 = vpack.c.b16 %v2951, %v2950
    %v4183 = vpack.c.b16 %v2953, %v2952
    %v4184 = vpack.c.b16 %v2955, %v2954
    %v4185 = vpack.c.b16 %v2957, %v2956
    %v4186 = vpack.c.b16 %v2959, %v2958
    %v4187 = vpack.c.b16 %v2961, %v2960
    %v4188 = vpack.c.b16 %v2963, %v2962
    %v4189 = vpack.c.b16 %v2965, %v2964
    %v4190 = vpack.c.b16 %v2967, %v2966
    %v4191 = vpack.c.b16 %v2969, %v2968
    %v4192 = vpack.c.b16 %v2971, %v2970
    %v4193 = vpack.c.b16 %v2973, %v2972
    %v4194 = vpack.c.b16 %v2975, %v2974
    %v4195 = vpack.c.b16 %v2977, %v2976
    %v4196 = vpack.c.b16 %v2979, %v2978
    %v4197 = vpack.c.b16 %v2981, %v2980
    %v4198 = vpack.c.b16 %v2983, %v2982
    %v4199 = vpack.c.b16 %v2985, %v2984
    %v4200 = vpack.c.b16 %v2987, %v2986
    %v4201 = vpack.c.b16 %v2989, %v2988
    %v4202 = vpack.c.b16 %v2991, %v2990
    %v4203 = vpack.c.b16 %v2993, %v2992
    %v4204 = vpack.c.b16 %v2995, %v2994
    %v4205 = vpack.c.b16 %v2997, %v2996
    %v4206 = vpack.c.b16 %v2999, %v2998
    %v4207 = vpack.c.b16 %v3001, %v3000
    %v4208 = vpack.c.b16 %v3003, %v3002
    %v4209 = vpack.c.b16 %v3005, %v3004
    %v4210 = vpack.c.b16 %v3007, %v3006
    %v4211 = vpack.c.b16 %v3009, %v3008
    %v4212 = vpack.c.b16 %v3011, %v3010
    %v4213 = vpack.c.b16 %v3013, %v3012
    %v4214 = vpack.c.b16 %v3015, %v3014
    %v4215 = vpack.c.b16 %v3017, %v3016
    %v4216 = vpack.c.b16 %v3019, %v3018
    %v4217 = vpack.c.b16 %v3021, %v3020
    %v4218 = vpack.c.b16 %v3023, %v3022
    %v4219 = vpack.c.b16 %v3025, %v3024
    %v4220 = vpack.c.b16 %v3027, %v3026
    %v4221 = vpack.c.b16 %v3029, %v3028
    %v4222 = vpack.c.b16 %v3031, %v3030
    %v4223 = vpack.c.b16 %v3033, %v3032
    %v4224 = vpack.c.b16 %v3035, %v3034
    %v4225 = vpack.c.b16 %v3037, %v3036
    %v4226 = vpack.c.b16 %v3039, %v3038
    %v4227 = vpack.c.b16 %v3041, %v3040
    %v4228 = vpack.c.b16 %v3043, %v3042
    %v4229 = vpack.c.b16 %v3045, %v3044
    %v4230 = vpack.c.b16 %v3047, %v3046
    %v4231 = vpack.c.b16 %v3049, %v3048
    %v4232 = vpack.c.b16 %v3051, %v3050
    %v4233 = vpack.c.b16 %v3053, %v3052
    %v4234 = vpack.c.b16 %v3055, %v3054
    %v4235 = vpack.c.b16 %v3057, %v3056
    %v4236 = vpack.c.b16 %v3059, %v3058
    %v4237 = vpack.c.b16 %v3061, %v3060
    %v4238 = vpack.c.b16 %v3063, %v3062
    %v4239 = vpack.c.b16 %v3065, %v3064
    %v4240 = vpack.c.b16 %v3067, %v3066
    %v4241 = vpack.c.b16 %v3069, %v3068
    %v4242 = vpack.c.b16 %v3071, %v3070
    %v4243 = vpack.c.b16 %v3073, %v3072
    %v4244 = vpack.c.b16 %v3075, %v3074
    %v4245 = vpack.c.b16 %v3077, %v3076
    %v4246 = vpack.c.b16 %v3079, %v3078
    %v4247 = vpack.c.b16 %v3081, %v3080
    %v4248 = vpack.c.b16 %v3083, %v3082
    %v4249 = vpack.c.b16 %v3085, %v3084
    %v4250 = vpack.c.b16 %v3087, %v3086
    %v4251 = vpack.c.b16 %v3089, %v3088
    %v4252 = vpack.c.b16 %v3091, %v3090
    %v4253 = vpack.c.b16 %v3093, %v3092
    %v4254 = vpack.c.b16 %v3095, %v3094
    %v4255 = vpack.c.b16 %v3097, %v3096
    %v4256 = vpack.c.b16 %v3099, %v3098
    %v4257 = vpack.c.b16 %v3101, %v3100
    %v4258 = vpack.c.b16 %v3103, %v3102
    %v4259 = vpack.c.b16 %v3105, %v3104
    %v4260 = vpack.c.b16 %v3107, %v3106
    %v4261 = vpack.c.b16 %v3109, %v3108
    %v4262 = vpack.c.b16 %v3111, %v3110
    %v4263 = vpack.c.b16 %v3113, %v3112
    %v4264 = vpack.c.b16 %v3115, %v3114
    %v4265 = vpack.c.b16 %v3117, %v3116
    %v4266 = vpack.c.b16 %v3119, %v3118
    %v4267 = vpack.c.b16 %v3121, %v3120
    %v4268 = vpack.c.b16 %v3123, %v3122
    %v4269 = vpack.c.b16 %v3125, %v3124
    %v4270 = vpack.c.b16 %v3127, %v3126
    %v4271 = vpack.c.b16 %v3129, %v3128
    %v4272 = vpack.c.b16 %v3131, %v3130
    %v4273 = vpack.c.b16 %v3133, %v3132
    %v4274 = vpack.c.b16 %v3135, %v3134
    %v4275 = vpack.c.b16 %v3137, %v3136
    %v4276 = vpack.c.b16 %v3139, %v3138
    %v4277 = vpack.c.b16 %v3141, %v3140
    %v4278 = vpack.c.b16 %v3143, %v3142
    %v4279 = vpack.c.b16 %v3145, %v3144
    %v4280 = vpack.c.b16 %v3147, %v3146
    %v4281 = vpack.c.b16 %v3149, %v3148
    %v4282 = vpack.c.b16 %v3151, %v3150
    %v4283 = vpack.c.b16 %v3153, %v3152
    %v4284 = vpack.c.b16 %v3155, %v3154
    %v4285 = vpack.c.b16 %v3157, %v3156
    %v4286 = vpack.c.b16 %v3159, %v3158
    %v4287 = vpack.c.b16 %v3161, %v3160
    %v4288 = vpack.c.b16 %v3163, %v3162
    %v4289 = vpack.c.b16 %v3165, %v3164
    %v4290 = vpack.c.b16 %v3167, %v3166
    %v4291 = vpack.c.b16 %v3169, %v3168
    %v4292 = vpack.c.b16 %v3171, %v3170
    %v4293 = vpack.c.b16 %v3173, %v3172
    %v4294 = vpack.c.b16 %v3175, %v3174
    %v4295 = vpack.c.b16 %v3177, %v3176
    %v4296 = vpack.c.b16 %v3179, %v3178
    %v4297 = vpack.c.b16 %v3181, %v3180
    %v4298 = vpack.c.b16 %v3183, %v3182
    %v4299 = vpack.c.b16 %v3185, %v3184
    %v4300 = vpack.c.b16 %v3187, %v3186
    %v4301 = vpack.c.b16 %v3189, %v3188
    %v4302 = vpack.c.b16 %v3191, %v3190
    %v4303 = vpack.c.b16 %v3193, %v3192
    %v4304 = vpack.c.b16 %v3195, %v3194
    %v4305 = vpack.c.b16 %v3197, %v3196
    %v4306 = vpack.c.b16 %v3199, %v3198
    %v4307 = vpack.c.b16 %v3201, %v3200
    %v4308 = vpack.c.b16 %v3203, %v3202
    %v4309 = vpack.c.b16 %v3205, %v3204
    %v4310 = vpack.c.b16 %v3207, %v3206
    %v4311 = vpack.c.b16 %v3209, %v3208
    %v4312 = vpack.c.b16 %v3211, %v3210
    %v4313 = vpack.c.b16 %v3213, %v3212
    %v4314 = vpack.c.b16 %v3215, %v3214
    %v4315 = vpack.c.b16 %v3217, %v3216
    %v4316 = vpack.c.b16 %v3219, %v3218
    %v4317 = vpack.c.b16 %v3221, %v3220
    %v4318 = vpack.c.b16 %v3223, %v3222
    %v4319 = vpack.c.b16 %v3225, %v3224
    %v4320 = vpack.c.b16 %v3227, %v3226
    %v4321 = vpack.c.b16 %v3229, %v3228
    %v4322 = vpack.c.b16 %v3231, %v3230
    %v4323 = vpack.c.b16 %v3233, %v3232
    %v4324 = vpack.c.b16 %v3235, %v3234
    %v4325 = vpack.c.b16 %v3237, %v3236
    %v4326 = vpack.c.b16 %v3239, %v3238
    %v4327 = vpack.c.b16 %v3241, %v3240
    %v4328 = vpack.c.b16 %v3243, %v3242
    %v4329 = vpack.c.b16 %v3245, %v3244
    %v4330 = vpack.c.b16 %v3247, %v3246
    %v4331 = vpack.c.b16 %v3249, %v3248
    %v4332 = vpack.c.b16 %v3251, %v3250
    %v4333 = vpack.c.b16 %v3253, %v3252
    %v4334 = vpack.c.b16 %v3255, %v3254
    %v4335 = vpack.c.b16 %v3257, %v3256
    %v4336 = vpack.c.b16 %v3259, %v3258
    %v4337 = vpack.c.b16 %v3261, %v3260
    %v4338 = vpack.c.b16 %v3263, %v3262
    %v4339 = vpack.c.b16 %v3265, %v3264
    %v4340 = vpack.c.b16 %v3267, %v3266
    %v4341 = vpack.c.b16 %v3269, %v3268
    %v4342 = vpack.c.b16 %v3271, %v3270
    %v4343 = vpack.c.b16 %v3273, %v3272
    %v4344 = vpack.c.b16 %v3275, %v3274
    %v4345 = vpack.c.b16 %v3277, %v3276
    %v4346 = vpack.c.b16 %v3279, %v3278
    %v4347 = vpack.c.b16 %v3281, %v3280
    %v4348 = vpack.c.b16 %v3283, %v3282
    %v4349 = vpack.c.b16 %v3285, %v3284
    %v4350 = vpack.c.b16 %v3287, %v3286
    %v4351 = vpack.c.b16 %v3289, %v3288
    %v4352 = vpack.c.b16 %v3291, %v3290
    %v4353 = vpack.c.b16 %v3293, %v3292
    %v4354 = vpack.c.b16 %v3295, %v3294
    %v4355 = vpack.c.b16 %v3297, %v3296
    %v4356 = vpack.c.b16 %v3299, %v3298
    %v4357 = vpack.c.b16 %v3301, %v3300
    %v4358 = vpack.c.b16 %v3303, %v3302
    %v4359 = vpack.c.b16 %v3305, %v3304
    %v4360 = vpack.c.b16 %v3307, %v3306
    %v4361 = vpack.c.b16 %v3309, %v3308
    %v4362 = vpack.c.b16 %v3311, %v3310
    %v4363 = vpack.c.b16 %v3313, %v3312
    %v4364 = vpack.c.b16 %v3315, %v3314
    %v4365 = vpack.c.b16 %v3317, %v3316
    %v4366 = vpack.c.b16 %v3319, %v3318
    %v4367 = vpack.c.b16 %v3321, %v3320
    %v4368 = vpack.c.b16 %v3323, %v3322
    %v4369 = vpack.c.b16 %v3325, %v3324
    %v4370 = vpack.c.b16 %v3327, %v3326
    %v4371 = vpack.c.b16 %v3329, %v3328
    %v4372 = vpack.c.b16 %v3331, %v3330
    %v4373 = vpack.c.b16 %v3333, %v3332
    %v4374 = vpack.c.b16 %v3335, %v3334
    %v4375 = vpack.c.b16 %v3337, %v3336
    %v4376 = vpack.c.b16 %v3339, %v3338
    %v4377 = vpack.c.b16 %v3341, %v3340
    %v4378 = vpack.c.b16 %v3343, %v3342
    %v4379 = vpack.c.b16 %v3345, %v3344
    %v4380 = vpack.c.b16 %v3347, %v3346
    %v4381 = vpack.c.b16 %v3349, %v3348
    %v4382 = vpack.c.b16 %v3351, %v3350
    %v4383 = vpack.c.b16 %v3353, %v3352
    %v4384 = vpack.c.b16 %v3355, %v3354
    %v4385 = vpack.c.b16 %v3357, %v3356
    %v4386 = vpack.c.b16 %v3359, %v3358
    %v4387 = vpack.c.b16 %v3361, %v3360
    %v4388 = vpack.c.b16 %v3363, %v3362
    %v4389 = vpack.c.b16 %v3365, %v3364
    %v4390 = vpack.c.b16 %v3367, %v3366
    %v4391 = vpack.c.b16 %v3369, %v3368
    %v4392 = vpack.c.b16 %v3371, %v3370
    %v4393 = vpack.c.b16 %v3373, %v3372
    %v4394 = vpack.c.b16 %v3375, %v3374
    %v4395 = vpack.c.b16 %v3377, %v3376
    %v4396 = vpack.c.b16 %v3379, %v3378
    %v4397 = vpack.c.b16 %v3381, %v3380
    %v4398 = vpack.c.b16 %v3383, %v3382
    %v4399 = vpack.c.b16 %v3385, %v3384
    %v4400 = vpack.c.b16 %v3387, %v3386
    %v4401 = vpack.c.b16 %v3389, %v3388
    %v4402 = vpack.c.b16 %v3391, %v3390
    %v4403 = vpack.c.b16 %v3393, %v3392
    %v4404 = vpack.c.b16 %v3395, %v3394
    %v4405 = vpack.c.b16 %v3397, %v3396
    %v4406 = vpack.c.b16 %v3399, %v3398
    %v4407 = vpack.c.b16 %v3401, %v3400
    %v4408 = vpack.c.b16 %v3403, %v3402
    %v4409 = vpack.c.b16 %v3405, %v3404
    %v4410 = vpack.c.b16 %v3407, %v3406
    %v4411 = vpack.c.b16 %v3409, %v3408
    %v4412 = vpack.c.b16 %v3411, %v3410
    %v4413 = vpack.c.b16 %v3413, %v3412
    %v4414 = vpack.c.b16 %v3415, %v3414
    %v4415 = vpack.c.b16 %v3417, %v3416
    %v4416 = vpack.c.b16 %v3419, %v3418
    %v4417 = vpack.c.b16 %v3421, %v3420
    %v4418 = vpack.c.b16 %v3423, %v3422
    %v4419 = vpack.c.b16 %v3425, %v3424
    %v4420 = vpack.c.b16 %v3427, %v3426
    %v4421 = vpack.c.b16 %v3429, %v3428
    %v4422 = vpack.c.b16 %v3431, %v3430
    %v4423 = vpack.c.b16 %v3433, %v3432
    %v4424 = vpack.c.b16 %v3435, %v3434
    %v4425 = vpack.c.b16 %v3437, %v3436
    %v4426 = vpack.c.b16 %v3439, %v3438
    %v4427 = vpack.c.b16 %v3441, %v3440
    %v4428 = vpack.c.b16 %v3443, %v3442
    %v4429 = vpack.c.b16 %v3445, %v3444
    %v4430 = vpack.c.b16 %v3447, %v3446
    %v4431 = vpack.c.b16 %v3449, %v3448
    %v4432 = vpack.c.b16 %v3451, %v3450
    %v4433 = vpack.c.b16 %v3453, %v3452
    %v4434 = vpack.c.b16 %v3455, %v3454
    %v4435 = vpack.c.b16 %v3457, %v3456
    %v4436 = vpack.c.b16 %v3459, %v3458
    %v4437 = vpack.c.b16 %v3461, %v3460
    %v4438 = vpack.c.b16 %v3463, %v3462
    %v4439 = vpack.c.b16 %v3465, %v3464
    %v4440 = vpack.c.b16 %v3467, %v3466
    %v4441 = vpack.c.b16 %v3469, %v3468
    %v4442 = vpack.c.b16 %v3471, %v3470
    %v4443 = vpack.c.b16 %v3473, %v3472
    %v4444 = vpack.c.b16 %v3475, %v3474
    %v4445 = vpack.c.b16 %v3477, %v3476
    %v4446 = vpack.c.b16 %v3479, %v3478
    %v4447 = vpack.c.b16 %v3481, %v3480
    %v4448 = vpack.c.b16 %v3483, %v3482
    %v4449 = vpack.c.b16 %v3485, %v3484
    %v4450 = vpack.c.b16 %v3487, %v3486
    %v4451 = vpack.c.b16 %v3489, %v3488
    %v4452 = vpack.c.b16 %v3491, %v3490
    %v4453 = vpack.c.b16 %v3493, %v3492
    %v4454 = vpack.c.b16 %v3495, %v3494
    %v4455 = vpack.c.b16 %v3497, %v3496
    %v4456 = vpack.c.b16 %v3499, %v3498
    %v4457 = vpack.c.b16 %v3501, %v3500
    %v4458 = vpack.c.b16 %v3503, %v3502
    %v4459 = vpack.c.b16 %v3505, %v3504
    %v4460 = vpack.c.b16 %v3507, %v3506
    %v4461 = vpack.c.b16 %v3509, %v3508
    %v4462 = vpack.c.b16 %v3511, %v3510
    %v4463 = vpack.c.b16 %v3513, %v3512
    %v4464 = vpack.c.b16 %v3515, %v3514
    %v4465 = vpack.c.b16 %v3517, %v3516
    %v4466 = vpack.c.b16 %v3519, %v3518
    %v4467 = vpack.c.b16 %v3521, %v3520
    %v4468 = vpack.c.b16 %v3523, %v3522
    %v4469 = vpack.c.b16 %v3525, %v3524
    %v4470 = vpack.c.b16 %v3527, %v3526
    %v4471 = vpack.c.b16 %v3529, %v3528
    %v4472 = vpack.c.b16 %v3531, %v3530
    %v4473 = vpack.c.b16 %v3533, %v3532
    %v4474 = vpack.c.b16 %v3535, %v3534
    %v4475 = vpack.c.b16 %v3537, %v3536
    %v4476 = vpack.c.b16 %v3539, %v3538
    %v4477 = vpack.c.b16 %v3541, %v3540
    %v4478 = vpack.c.b16 %v3543, %v3542
    %v4479 = vpack.c.b16 %v3545, %v3544
    %v4480 = vpack.c.b16 %v3547, %v3546
    %v4481 = vpack.c.b16 %v3549, %v3548
    %v4482 = vpack.c.b16 %v3551, %v3550
    %v4483 = vpack.c.b16 %v3553, %v3552
    %v4484 = vpack.c.b16 %v3555, %v3554
    %v4485 = vpack.c.b16 %v3557, %v3556
    %v4486 = vpack.c.b16 %v3559, %v3558
    %v4487 = vpack.c.b16 %v3561, %v3560
    %v4488 = vpack.c.b16 %v3563, %v3562
    %v4489 = vpack.c.b16 %v3565, %v3564
    %v4490 = vpack.c.b16 %v3567, %v3566
    %v4491 = vpack.c.b16 %v3569, %v3568
    %v4492 = vpack.c.b16 %v3571, %v3570
    %v4493 = vpack.c.b16 %v3573, %v3572
    %v4494 = vpack.c.b16 %v3575, %v3574
    %v4495 = vpack.c.b16 %v3577, %v3576
    %v4496 = vpack.c.b16 %v3579, %v3578
    %v4497 = vpack.c.b16 %v3581, %v3580
    %v4498 = vpack.c.b16 %v3583, %v3582
    %v4499 = vpack.c.b16 %v3585, %v3584
    %v4500 = vpack.c.b16 %v3587, %v3586
    %v4501 = vpack.c.b16 %v3589, %v3588
    %v4502 = vpack.c.b16 %v3591, %v3590
    %v4503 = vpack.c.b16 %v3593, %v3592
    %v4504 = vpack.c.b16 %v3595, %v3594
    %v4505 = vpack.c.b16 %v3597, %v3596
    %v4506 = vpack.c.b16 %v3599, %v3598
    %v4507 = vpack.c.b16 %v3601, %v3600
    %v4508 = vpack.c.b16 %v3603, %v3602
    %v4509 = vpack.c.b16 %v3605, %v3604
    %v4510 = vpack.c.b16 %v3607, %v3606
    %v4511 = vpack.c.b16 %v3609, %v3608
    %v4512 = vpack.c.b16 %v3611, %v3610
    %v4513 = vpack.c.b16 %v3613, %v3612
    %v4514 = vpack.c.b16 %v3615, %v3614
    %v4515 = vpack.c.b16 %v3617, %v3616
    %v4516 = vpack.c.b16 %v3619, %v3618
    %v4517 = vpack.c.b16 %v3621, %v3620
    %v4518 = vpack.c.b16 %v3623, %v3622
    %v4519 = vpack.c.b16 %v3625, %v3624
    %v4520 = vpack.c.b16 %v3627, %v3626
    %v4521 = vpack.c.b16 %v3629, %v3628
    %v4522 = vpack.c.b16 %v3631, %v3630
    %v4523 = vpack.c.b16 %v3633, %v3632
    %v4524 = vpack.c.b16 %v3635, %v3634
    %v4525 = vpack.c.b16 %v3637, %v3636
    %v4526 = vpack.c.b16 %v3639, %v3638
    %v4527 = vpack.c.b16 %v3641, %v3640
    %v4528 = vpack.c.b16 %v3643, %v3642
    %v4529 = vpack.c.b16 %v3645, %v3644
    %v4530 = vpack.c.b16 %v3647, %v3646
    %v4531 = vpack.c.b16 %v3649, %v3648
    %v4532 = vpack.c.b16 %v3651, %v3650
    %v4533 = vpack.c.b16 %v3653, %v3652
    %v4534 = vpack.c.b16 %v3655, %v3654
    %v4535 = vpack.c.b16 %v3657, %v3656
    %v4536 = vpack.c.b16 %v3659, %v3658
    %v4537 = vpack.c.b16 %v3661, %v3660
    %v4538 = vpack.c.b16 %v3663, %v3662
    %v4539 = vpack.c.b16 %v3665, %v3664
    %v4540 = vpack.c.b16 %v3667, %v3666
    %v4541 = vpack.c.b16 %v3669, %v3668
    %v4542 = vpack.c.b16 %v3671, %v3670
    %v4543 = vpack.c.b16 %v3673, %v3672
    %v4544 = vpack.c.b16 %v3675, %v3674
    %v4545 = vpack.c.b16 %v3677, %v3676
    %v4546 = vpack.c.b16 %v3679, %v3678
    %v4547 = vpack.c.b16 %v3681, %v3680
    %v4548 = vpack.c.b16 %v3683, %v3682
    %v4549 = vpack.c.b16 %v3685, %v3684
    %v4550 = vpack.c.b16 %v3687, %v3686
    %v4551 = vpack.c.b16 %v3689, %v3688
    %v4552 = vpack.c.b16 %v3691, %v3690
    %v4553 = vpack.c.b16 %v3693, %v3692
    %v4554 = vpack.c.b16 %v3695, %v3694
    %v4555 = vpack.c.b16 %v3697, %v3696
    %v4556 = vpack.c.b16 %v3699, %v3698
    %v4557 = vpack.c.b16 %v3701, %v3700
    %v4558 = vpack.c.b16 %v3703, %v3702
    %v4559 = vpack.c.b16 %v3705, %v3704
    %v4560 = vpack.c.b16 %v3707, %v3706
    %v4561 = vpack.c.b16 %v3709, %v3708
    %v4562 = vpack.c.b16 %v3711, %v3710
    %v4563 = vpack.c.b16 %v3713, %v3712
    %v4564 = vpack.c.b16 %v3715, %v3714
    %v4565 = vpack.c.b16 %v3717, %v3716
    %v4566 = vpack.c.b16 %v3719, %v3718
    %v4567 = vpack.c.b16 %v3721, %v3720
    %v4568 = vpack.c.b16 %v3723, %v3722
    %v4569 = vpack.c.b16 %v3725, %v3724
    %v4570 = vpack.c.b16 %v3727, %v3726
    %v4571 = vpack.c.b16 %v3729, %v3728
    %v4572 = vpack.c.b16 %v3731, %v3730
    %v4573 = vpack.c.b16 %v3733, %v3732
    %v4574 = vpack.c.b16 %v3735, %v3734
    %v4575 = vpack.c.b16 %v3737, %v3736
    %v4576 = vpack.c.b16 %v3739, %v3738
    %v4577 = vpack.c.b16 %v3741, %v3740
    %v4578 = vpack.c.b16 %v3743, %v3742
    %v4579 = vpack.c.b16 %v3745, %v3744
    %v4580 = vpack.c.b16 %v3747, %v3746
    %v4581 = vpack.c.b16 %v3749, %v3748
    %v4582 = vpack.c.b16 %v3751, %v3750
    %v4583 = vpack.c.b16 %v3753, %v3752
    %v4584 = vpack.c.b16 %v3755, %v3754
    %v4585 = vpack.c.b16 %v3757, %v3756
    %v4586 = vpack.c.b16 %v3759, %v3758
    %v4587 = vpack.c.b16 %v3761, %v3760
    %v4588 = vpack.c.b16 %v3763, %v3762
    %v4589 = vpack.c.b16 %v3765, %v3764
    %v4590 = vpack.c.b16 %v3767, %v3766
    %v4591 = vpack.c.b16 %v3769, %v3768
    %v4592 = vpack.c.b16 %v3771, %v3770
    %v4593 = vpack.c.b16 %v3773, %v3772
    %v4594 = vpack.c.b16 %v3775, %v3774
    %v4595 = vpack.c.b16 %v3777, %v3776
    %v4596 = vpack.c.b16 %v3779, %v3778
    %v4597 = vpack.c.b16 %v3781, %v3780
    %v4598 = vpack.c.b16 %v3783, %v3782
    %v4599 = vpack.c.b16 %v3785, %v3784
    %v4600 = vpack.c.b16 %v3787, %v3786
    %v4601 = vpack.c.b16 %v3789, %v3788
    %v4602 = vpack.c.b16 %v3791, %v3790
    %v4603 = vpack.c.b16 %v3793, %v3792
    %v4604 = vpack.c.b16 %v3795, %v3794
    %v4605 = vpack.c.b16 %v3797, %v3796
    %v4606 = vpack.c.b16 %v3799, %v3798
    %v4607 = vpack.c.b16 %v3801, %v3800
    %v4608 = vpack.c.b16 %v3803, %v3802
    %v4609 = vpack.c.b16 %v3805, %v3804
    %v4610 = vpack.c.b16 %v3807, %v3806
    %v4611 = vpack.c.b16 %v3809, %v3808
    %v4612 = vpack.c.b16 %v3811, %v3810
    %v4613 = vpack.c.b16 %v3813, %v3812
    %v4614 = vpack.c.b16 %v3815, %v3814
    %v4615 = vpack.c.b16 %v3817, %v3816
    %v4616 = vpack.c.b16 %v3819, %v3818
    %v4617 = vpack.c.b16 %v3821, %v3820
    %v4618 = vpack.c.b16 %v3823, %v3822
    %v4619 = vpack.c.b16 %v3825, %v3824
    %v4620 = vpack.c.b16 %v3827, %v3826
    %v4621 = vpack.c.b16 %v3829, %v3828
    %v4622 = vpack.c.b16 %v3831, %v3830
    %v4623 = vpack.c.b16 %v3833, %v3832
    %v4624 = vpack.c.b16 %v3835, %v3834
    %v4625 = vpack.c.b16 %v3837, %v3836
    %v4626 = vpack.c.b16 %v3839, %v3838
    %v4627 = vpack.c.b16 %v3841, %v3840
    %v4628 = vpack.c.b16 %v3843, %v3842
    %v4629 = vpack.c.b16 %v3845, %v3844
    %v4630 = vpack.c.b16 %v3847, %v3846
    %v4631 = vpack.c.b16 %v3849, %v3848
    %v4632 = vpack.c.b16 %v3851, %v3850
    %v4633 = vpack.c.b16 %v3853, %v3852
    %v4634 = vpack.c.b16 %v3855, %v3854
    %v4635 = vpack.c.b16 %v3857, %v3856
    %v4636 = vpack.c.b16 %v3859, %v3858
    %v4637 = vpack.c.b16 %v3861, %v3860
    %v4638 = vpack.c.b16 %v3863, %v3862
    %v4639 = vpack.c.b16 %v3865, %v3864
    %v4640 = vpack.c.b16 %v3867, %v3866
    %v4641 = vpack.c.b16 %v3869, %v3868
    %v4642 = vpack.c.b16 %v3871, %v3870
    %v4643 = vpack.c.b16 %v3873, %v3872
    %v4644 = vpack.c.b16 %v3875, %v3874
    %v4645 = vpack.c.b16 %v3877, %v3876
    %v4646 = vpack.c.b16 %v3879, %v3878
    %v4647 = vpack.c.b16 %v3881, %v3880
    %v4648 = vpack.c.b16 %v3883, %v3882
    %v4649 = vpack.c.b16 %v3885, %v3884
    %v4650 = vpack.c.b16 %v3887, %v3886
    %v4651 = vpack.c.b16 %v3889, %v3888
    %v4652 = vpack.c.b16 %v3891, %v3890
    %v4653 = vpack.c.b16 %v3893, %v3892
    %v4654 = vpack.c.b16 %v3895, %v3894
    %v4655 = vpack.c.b16 %v3897, %v3896
    %v4656 = vpack.c.b16 %v3899, %v3898
    %v4657 = vpack.c.b16 %v3901, %v3900
    %v4658 = vpack.c.b16 %v3903, %v3902
    %v4659 = vpack.c.b16 %v3905, %v3904
    %v4660 = vpack.c.b16 %v3907, %v3906
    %v4661 = vpack.c.b16 %v3909, %v3908
    %v4662 = vpack.c.b16 %v3911, %v3910
    %v4663 = vpack.c.b16 %v3913, %v3912
    %v4664 = vpack.c.b16 %v3915, %v3914
    %v4665 = vpack.c.b16 %v3917, %v3916
    %v4666 = vpack.c.b16 %v3919, %v3918
    %v4667 = vpack.c.b16 %v3921, %v3920
    %v4668 = vpack.c.b16 %v3923, %v3922
    %v4669 = vpack.c.b16 %v3925, %v3924
    %v4670 = vpack.c.b16 %v3927, %v3926
    %v4671 = vpack.c.b16 %v3929, %v3928
    %v4672 = vpack.c.b16 %v3931, %v3930
    %v4673 = vpack.c.b16 %v3933, %v3932
    %v4674 = vpack.c.b16 %v3935, %v3934
    %v4675 = vpack.c.b16 %v3937, %v3936
    %v4676 = vpack.c.b16 %v3939, %v3938
    %v4677 = vpack.c.b16 %v3941, %v3940
    %v4678 = vpack.c.b16 %v3943, %v3942
    %v4679 = vpack.c.b16 %v3945, %v3944
    %v4680 = vpack.c.b16 %v3947, %v3946
    %v4681 = vpack.c.b16 %v3949, %v3948
    %v4682 = vpack.c.b16 %v3951, %v3950
    %v4683 = vpack.c.b16 %v3953, %v3952
    %v4684 = vpack.c.b16 %v3955, %v3954
    %v4685 = vpack.c.b16 %v3957, %v3956
    %v4686 = vpack.c.b16 %v3959, %v3958
    %v4687 = vpack.c.b16 %v3961, %v3960
    %v4688 = vpack.c.b16 %v3963, %v3962
    %v4689 = vpack.c.b16 %v3965, %v3964
    %v4690 = vpack.c.b16 %v3967, %v3966
    %v4691 = vpack.c.b16 %v3969, %v3968
    %v4692 = vpack.c.b16 %v3971, %v3970
    %v4693 = vpack.c.b16 %v3973, %v3972
    %v4694 = vpack.c.b16 %v3975, %v3974
    %v4695 = vpack.c.b16 %v3977, %v3976
    %v4696 = vpack.c.b16 %v3979, %v3978
    %v4697 = vpack.c.b16 %v3981, %v3980
    %v4698 = vpack.c.b16 %v3983, %v3982
    %v4699 = vpack.c.b16 %v3985, %v3984
    %v4700 = vpack.c.b16 %v3987, %v3986
    %v4701 = vpack.c.b16 %v3989, %v3988
    %v4702 = vpack.c.b16 %v3991, %v3990
    %v4703 = vpack.c.b16 %v3993, %v3992
    %v4704 = vpack.c.b16 %v3995, %v3994
    %v4705 = vpack.c.b16 %v3997, %v3996
    %v4706 = vpack.c.b16 %v3999, %v3998
    %v4707 = vpack.c.b16 %v4001, %v4000
    %v4708 = vpack.c.b16 %v4003, %v4002
    %v4709 = vpack.c.b16 %v4005, %v4004
    %v4710 = vpack.c.b16 %v4007, %v4006
    %v4711 = vpack.c.b16 %v4009, %v4008
    %v4712 = vpack.c.b16 %v4011, %v4010
    %v4713 = vpack.c.b16 %v4013, %v4012
    %v4714 = vpack.c.b16 %v4015, %v4014
    %v4715 = vpack.c.b16 %v4017, %v4016
    %v4716 = vpack.c.b16 %v4019, %v4018
    %v4717 = vpack.c.b16 %v4021, %v4020
    %v4718 = vpack.c.b16 %v4023, %v4022
    %v4719 = vpack.c.b16 %v4025, %v4024
    %v4720 = vpack.c.b16 %v4027, %v4026
    %v4721 = vpack.c.b16 %v4029, %v4028
    %v4722 = vpack.c.b16 %v4031, %v4030
    %v4723 = vpack.c.b16 %v4033, %v4032
    %v4724 = vpack.c.b16 %v4035, %v4034
    %v4725 = vpack.c.b16 %v4037, %v4036
    %v4726 = vpack.c.b16 %v4039, %v4038
    %v4727 = vpack.c.b16 %v4041, %v4040
    %v4728 = vpack.c.b16 %v4043, %v4042
    %v4729 = vpack.c.b16 %v4045, %v4044
    %v4730 = vpack.c.b16 %v4047, %v4046
    %v4731 = vpack.c.b16 %v4049, %v4048
    %v4732 = vpack.c.b16 %v4051, %v4050
    %v4733 = vpack.c.b16 %v4053, %v4052
    %v4734 = vpack.c.b16 %v4055, %v4054
    %v4735 = vpack.c.b16 %v4057, %v4056
    %v4736 = vpack.c.b16 %v4059, %v4058
    %v4737 = vpack.c.b16 %v4061, %v4060
    %v4738 = vpack.c.b16 %v4063, %v4062
    %v4739 = vpack.c.b16 %v4065, %v4064
    %v4740 = vpack.c.b16 %v4067, %v4066
    %v4741 = vpack.c.b16 %v4069, %v4068
    %v4742 = vpack.c.b16 %v4071, %v4070
    %v4743 = vpack.c.b16 %v4073, %v4072
    %v4744 = vpack.c.b16 %v4075, %v4074
    %v4745 = vpack.c.b16 %v4077, %v4076
    %v4746 = vpack.c.b16 %v4079, %v4078
    %v4747 = vpack.c.b16 %v4081, %v4080
    %v4748 = vpack.c.b16 %v4083, %v4082
    %v4749 = vpack.c.b16 %v4085, %v4084
    %v4750 = vpack.c.b16 %v4087, %v4086
    %v4751 = vpack.c.b16 %v4089, %v4088
    %v4752 = vpack.c.b16 %v4091, %v4090
    %v4753 = vpack.c.b16 %v4093, %v4092
    %v4754 = vpack.c.b16 %v4095, %v4094
    %v4755 = vpack.c.b16 %v4097, %v4096
    %v4756 = vpack.c.b16 %v4099, %v4098
    %v4757 = vpack.c.b16 %v4101, %v4100
    %v4758 = vpack.c.b16 %v4103, %v4102
    %v4759 = vpack.c.b16 %v4105, %v4104
    %v4760 = vpack.c.b16 %v4107, %v4106
    %v4761 = vpack.c.b16 %v4109, %v4108
    %v4762 = vpack.c.b16 %v4111, %v4110
    %v4763 = vpack.c.b16 %v4113, %v4112
    %v4764 = vpack.c.b16 %v4115, %v4114
    %v4765 = vpack.c.b16 %v4117, %v4116
    %v4766 = vpack.c.b16 %v4119, %v4118
    %v4767 = vpack.c.b16 %v4121, %v4120
    %v4768 = vpack.c.b16 %v4123, %v4122
    %v4769 = vpack.c.b16 %v4125, %v4124
    %v4770 = vpack.c.b16 %v4127, %v4126
    %v4771 = vpack.c.b16 %v4129, %v4128
    %v4772 = vpack.c.b16 %v4131, %v4130
    %v4773 = vpack.c.b16 %v4133, %v4132
    %v4774 = vpack.c.b16 %v4135, %v4134
    %v4775 = vpack.c.b16 %v4137, %v4136
    %v4776 = vpack.c.b16 %v4139, %v4138
    %v4777 = vpack.c.b16 %v4141, %v4140
    %v4778 = vpack.c.b16 %v4143, %v4142
    %v4779 = vpack.c.b16 %v4145, %v4144
    %v4780 = vpack.c.b16 %v4147, %v4146
    %v4781 = vpack.c.b16 %v4149, %v4148
    %v4782 = vpack.c.b16 %v4151, %v4150
    %v4783 = vpack.c.b16 %v4153, %v4152
    %v4784 = vpack.c.b16 %v4155, %v4154
    %v4785 = vpack.c.b16 %v4157, %v4156
    %v4786 = vpack.c.b16 %v4159, %v4158
    %v4787 = vpack.c.b16 %v4161, %v4160
    %v4788 = vpack.c.b16 %v4163, %v4162
    %v4789 = vpack.c.b16 %v4165, %v4164
    %v4790 = vpack.c.b16 %v4167, %v4166
    %v4791 = vpack.c.b16 %v4169, %v4168
    %v4792 = vpack.c.b16 %v4171, %v4170
    %v4793 = vpack.c.b16 %v4173, %v4172
    %v4794 = vpack.c.b16 %v4175, %v4174
    %v4795 = vpack.c.b16 %v4177, %v4176
    %v4796 = vpack.c.b16 %v4179, %v4178
    %v4797 = vpack.c.b16 %v4181, %v4180
    %5414 = vmatprep.subr.bf16.mxu0 0
    %5415 = vmatpush1.bf16.msra.mxu0 %v4182
    %5416 = vmatprep.subr.bf16.mxu0 0
    %5417 = vmatpush1.bf16.msra.mxu0 %v4183
    %5418 = vmatprep.subr.bf16.mxu0 0
    %5419 = vmatpush1.bf16.msra.mxu0 %v4184
    %5420 = vmatprep.subr.bf16.mxu0 0
    %5421 = vmatpush1.bf16.msra.mxu0 %v4185
    %5422 = vmatprep.subr.bf16.mxu0 0
    %5423 = vmatpush1.bf16.msra.mxu0 %v4186
    %5424 = vmatprep.subr.bf16.mxu0 0
    %5425 = vmatpush1.bf16.msra.mxu0 %v4187
    %5426 = vmatprep.subr.bf16.mxu0 0
    %5427 = vmatpush1.bf16.msra.mxu0 %v4188
    %5428 = vmatprep.subr.bf16.mxu0 0
    %5429 = vmatpush1.bf16.msra.mxu0 %v4189
    %5430 = vmatprep.subr.bf16.mxu0 0
    %5431 = vmatpush1.bf16.msra.mxu0 %v4190
    %5432 = vmatprep.subr.bf16.mxu0 0
    %5433 = vmatpush1.bf16.msra.mxu0 %v4191
    %5434 = vmatprep.subr.bf16.mxu0 0
    %5435 = vmatpush1.bf16.msra.mxu0 %v4192
    %5436 = vmatprep.subr.bf16.mxu0 0
    %5437 = vmatpush1.bf16.msra.mxu0 %v4193
    %5438 = vmatprep.subr.bf16.mxu0 0
    %5439 = vmatpush1.bf16.msra.mxu0 %v4194
    %5440 = vmatprep.subr.bf16.mxu0 0
    %5441 = vmatpush1.bf16.msra.mxu0 %v4195
    %5442 = vmatprep.subr.bf16.mxu0 0
    %5443 = vmatpush1.bf16.msra.mxu0 %v4196
    %5444 = vmatprep.subr.bf16.mxu0 0
    %5445 = vmatpush1.bf16.msra.mxu0 %v4197
    %5446 = vmatprep.mubr.bf16.mxu0 %v1565
    %5447 = vmatmul.mubr.bf16.gmra.mrb[0].mxu0 %v1564
    %v5448 = vpop.f32.mrb[0].mxu0
    %v5449 = vadd.f32 0.0, %v5448
    %v5450 = vpop.f32.mrb[0].mxu0
    %v5451 = vpop.f32.mrb[0].mxu0
    %v5452 = vadd.f32 0.0, %v5451
    %v5453 = vpop.f32.mrb[0].mxu0
    %5454 = vdwg.mxu0
    %5455 = vmatprep.subr.bf16.mxu0 0
    %5456 = vmatpush1.bf16.msra.mxu0 %v4198
    %5457 = vmatprep.subr.bf16.mxu0 0
    %5458 = vmatpush1.bf16.msra.mxu0 %v4199
    %5459 = vmatprep.subr.bf16.mxu0 0
    %5460 = vmatpush1.bf16.msra.mxu0 %v4200
    %5461 = vmatprep.subr.bf16.mxu0 0
    %5462 = vmatpush1.bf16.msra.mxu0 %v4201
    %5463 = vmatprep.subr.bf16.mxu0 0
    %5464 = vmatpush1.bf16.msra.mxu0 %v4202
    %5465 = vmatprep.subr.bf16.mxu0 0
    %5466 = vmatpush1.bf16.msra.mxu0 %v4203
    %5467 = vmatprep.subr.bf16.mxu0 0
    %5468 = vmatpush1.bf16.msra.mxu0 %v4204
    %5469 = vmatprep.subr.bf16.mxu0 0
    %5470 = vmatpush1.bf16.msra.mxu0 %v4205
    %5471 = vmatprep.subr.bf16.mxu0 0
    %5472 = vmatpush1.bf16.msra.mxu0 %v4206
    %5473 = vmatprep.subr.bf16.mxu0 0
    %5474 = vmatpush1.bf16.msra.mxu0 %v4207
    %5475 = vmatprep.subr.bf16.mxu0 0
    %5476 = vmatpush1.bf16.msra.mxu0 %v4208
    %5477 = vmatprep.subr.bf16.mxu0 0
    %5478 = vmatpush1.bf16.msra.mxu0 %v4209
    %5479 = vmatprep.subr.bf16.mxu0 0
    %5480 = vmatpush1.bf16.msra.mxu0 %v4210
    %5481 = vmatprep.subr.bf16.mxu0 0
    %5482 = vmatpush1.bf16.msra.mxu0 %v4211
    %5483 = vmatprep.subr.bf16.mxu0 0
    %5484 = vmatpush1.bf16.msra.mxu0 %v4212
    %5485 = vmatprep.subr.bf16.mxu0 0
    %5486 = vmatpush1.bf16.msra.mxu0 %v4213
    %5487 = vmatprep.mubr.bf16.mxu0 %v1567
    %5488 = vmatmul.mubr.bf16.gmra.mrb[0].mxu0 %v1566
    %v5489 = vpop.f32.mrb[0].mxu0
    %v5490 = vadd.f32 %v5449, %v5489
    %v5491 = vpop.f32.mrb[0].mxu0
    %v5492 = vpop.f32.mrb[0].mxu0
    %v5493 = vadd.f32 %v5452, %v5492
    %v5494 = vpop.f32.mrb[0].mxu0
    %5495 = vdwg.mxu0
    %5496 = vmatprep.subr.bf16.mxu0 0
    %5497 = vmatpush1.bf16.msra.mxu0 %v4214
    %5498 = vmatprep.subr.bf16.mxu0 0
    %5499 = vmatpush1.bf16.msra.mxu0 %v4215
    %5500 = vmatprep.subr.bf16.mxu0 0
    %5501 = vmatpush1.bf16.msra.mxu0 %v4216
    %5502 = vmatprep.subr.bf16.mxu0 0
    %5503 = vmatpush1.bf16.msra.mxu0 %v4217
    %5504 = vmatprep.subr.bf16.mxu0 0
    %5505 = vmatpush1.bf16.msra.mxu0 %v4218
    %5506 = vmatprep.subr.bf16.mxu0 0
    %5507 = vmatpush1.bf16.msra.mxu0 %v4219
    %5508 = vmatprep.subr.bf16.mxu0 0
    %5509 = vmatpush1.bf16.msra.mxu0 %v4220
    %5510 = vmatprep.subr.bf16.mxu0 0
    %5511 = vmatpush1.bf16.msra.mxu0 %v4221
    %5512 = vmatprep.subr.bf16.mxu0 0
    %5513 = vmatpush1.bf16.msra.mxu0 %v4222
    %5514 = vmatprep.subr.bf16.mxu0 0
    %5515 = vmatpush1.bf16.msra.mxu0 %v4223
    %5516 = vmatprep.subr.bf16.mxu0 0
    %5517 = vmatpush1.bf16.msra.mxu0 %v4224
    %5518 = vmatprep.subr.bf16.mxu0 0
    %5519 = vmatpush1.bf16.msra.mxu0 %v4225
    %5520 = vmatprep.subr.bf16.mxu0 0
    %5521 = vmatpush1.bf16.msra.mxu0 %v4226
    %5522 = vmatprep.subr.bf16.mxu0 0
    %5523 = vmatpush1.bf16.msra.mxu0 %v4227
    %5524 = vmatprep.subr.bf16.mxu0 0
    %5525 = vmatpush1.bf16.msra.mxu0 %v4228
    %5526 = vmatprep.subr.bf16.mxu0 0
    %5527 = vmatpush1.bf16.msra.mxu0 %v4229
    %5528 = vmatprep.mubr.bf16.mxu0 %v1569
    %5529 = vmatmul.mubr.bf16.gmra.mrb[0].mxu0 %v1568
    %v5530 = vpop.f32.mrb[0].mxu0
    %v5531 = vadd.f32 %v5490, %v5530
    %v5532 = vpop.f32.mrb[0].mxu0
    %v5533 = vpop.f32.mrb[0].mxu0
    %v5534 = vadd.f32 %v5493, %v5533
    %v5535 = vpop.f32.mrb[0].mxu0
    %5536 = vdwg.mxu0
    %5537 = vmatprep.subr.bf16.mxu0 0
    %5538 = vmatpush1.bf16.msra.mxu0 %v4230
    %5539 = vmatprep.subr.bf16.mxu0 0
    %5540 = vmatpush1.bf16.msra.mxu0 %v4231
    %5541 = vmatprep.subr.bf16.mxu0 0
    %5542 = vmatpush1.bf16.msra.mxu0 %v4232
    %5543 = vmatprep.subr.bf16.mxu0 0
    %5544 = vmatpush1.bf16.msra.mxu0 %v4233
    %5545 = vmatprep.subr.bf16.mxu0 0
    %5546 = vmatpush1.bf16.msra.mxu0 %v4234
    %5547 = vmatprep.subr.bf16.mxu0 0
    %5548 = vmatpush1.bf16.msra.mxu0 %v4235
    %5549 = vmatprep.subr.bf16.mxu0 0
    %5550 = vmatpush1.bf16.msra.mxu0 %v4236
    %5551 = vmatprep.subr.bf16.mxu0 0
    %5552 = vmatpush1.bf16.msra.mxu0 %v4237
    %5553 = vmatprep.subr.bf16.mxu0 0
    %5554 = vmatpush1.bf16.msra.mxu0 %v4238
    %5555 = vmatprep.subr.bf16.mxu0 0
    %5556 = vmatpush1.bf16.msra.mxu0 %v4239
    %5557 = vmatprep.subr.bf16.mxu0 0
    %5558 = vmatpush1.bf16.msra.mxu0 %v4240
    %5559 = vmatprep.subr.bf16.mxu0 0
    %5560 = vmatpush1.bf16.msra.mxu0 %v4241
    %5561 = vmatprep.subr.bf16.mxu0 0
    %5562 = vmatpush1.bf16.msra.mxu0 %v4242
    %5563 = vmatprep.subr.bf16.mxu0 0
    %5564 = vmatpush1.bf16.msra.mxu0 %v4243
    %5565 = vmatprep.subr.bf16.mxu0 0
    %5566 = vmatpush1.bf16.msra.mxu0 %v4244
    %5567 = vmatprep.subr.bf16.mxu0 0
    %5568 = vmatpush1.bf16.msra.mxu0 %v4245
    %5569 = vmatprep.mubr.bf16.mxu0 %v1571
    %5570 = vmatmul.mubr.bf16.gmra.mrb[0].mxu0 %v1570
    %v5571 = vpop.f32.mrb[0].mxu0
    %v5572 = vadd.f32 %v5531, %v5571
    %v5573 = vpop.f32.mrb[0].mxu0
    %v5574 = vpop.f32.mrb[0].mxu0
    %v5575 = vadd.f32 %v5534, %v5574
    %v5576 = vpop.f32.mrb[0].mxu0
    %5577 = vdwg.mxu0
    %5578 = vmatprep.subr.bf16.mxu0 0
    %5579 = vmatpush1.bf16.msra.mxu0 %v4246
    %5580 = vmatprep.subr.bf16.mxu0 0
    %5581 = vmatpush1.bf16.msra.mxu0 %v4247
    %5582 = vmatprep.subr.bf16.mxu0 0
    %5583 = vmatpush1.bf16.msra.mxu0 %v4248
    %5584 = vmatprep.subr.bf16.mxu0 0
    %5585 = vmatpush1.bf16.msra.mxu0 %v4249
    %5586 = vmatprep.subr.bf16.mxu0 0
    %5587 = vmatpush1.bf16.msra.mxu0 %v4250
    %5588 = vmatprep.subr.bf16.mxu0 0
    %5589 = vmatpush1.bf16.msra.mxu0 %v4251
    %5590 = vmatprep.subr.bf16.mxu0 0
    %5591 = vmatpush1.bf16.msra.mxu0 %v4252
    %5592 = vmatprep.subr.bf16.mxu0 0
    %5593 = vmatpush1.bf16.msra.mxu0 %v4253
    %5594 = vmatprep.subr.bf16.mxu0 0
    %5595 = vmatpush1.bf16.msra.mxu0 %v4254
    %5596 = vmatprep.subr.bf16.mxu0 0
    %5597 = vmatpush1.bf16.msra.mxu0 %v4255
    %5598 = vmatprep.subr.bf16.mxu0 0
    %5599 = vmatpush1.bf16.msra.mxu0 %v4256
    %5600 = vmatprep.subr.bf16.mxu0 0
    %5601 = vmatpush1.bf16.msra.mxu0 %v4257
    %5602 = vmatprep.subr.bf16.mxu0 0
    %5603 = vmatpush1.bf16.msra.mxu0 %v4258
    %5604 = vmatprep.subr.bf16.mxu0 0
    %5605 = vmatpush1.bf16.msra.mxu0 %v4259
    %5606 = vmatprep.subr.bf16.mxu0 0
    %5607 = vmatpush1.bf16.msra.mxu0 %v4260
    %5608 = vmatprep.subr.bf16.mxu0 0
    %5609 = vmatpush1.bf16.msra.mxu0 %v4261
    %5610 = vmatprep.mubr.bf16.mxu0 %v1573
    %5611 = vmatmul.mubr.bf16.gmra.mrb[0].mxu0 %v1572
    %v5612 = vpop.f32.mrb[0].mxu0
    %v5613 = vadd.f32 %v5572, %v5612
    %v5614 = vpop.f32.mrb[0].mxu0
    %v5615 = vpop.f32.mrb[0].mxu0
    %v5616 = vadd.f32 %v5575, %v5615
    %v5617 = vpop.f32.mrb[0].mxu0
    %5618 = vdwg.mxu0
    %5619 = vmatprep.subr.bf16.mxu0 0
    %5620 = vmatpush1.bf16.msra.mxu0 %v4262
    %5621 = vmatprep.subr.bf16.mxu0 0
    %5622 = vmatpush1.bf16.msra.mxu0 %v4263
    %5623 = vmatprep.subr.bf16.mxu0 0
    %5624 = vmatpush1.bf16.msra.mxu0 %v4264
    %5625 = vmatprep.subr.bf16.mxu0 0
    %5626 = vmatpush1.bf16.msra.mxu0 %v4265
    %5627 = vmatprep.subr.bf16.mxu0 0
    %5628 = vmatpush1.bf16.msra.mxu0 %v4266
    %5629 = vmatprep.subr.bf16.mxu0 0
    %5630 = vmatpush1.bf16.msra.mxu0 %v4267
    %5631 = vmatprep.subr.bf16.mxu0 0
    %5632 = vmatpush1.bf16.msra.mxu0 %v4268
    %5633 = vmatprep.subr.bf16.mxu0 0
    %5634 = vmatpush1.bf16.msra.mxu0 %v4269
    %5635 = vmatprep.subr.bf16.mxu0 0
    %5636 = vmatpush1.bf16.msra.mxu0 %v4270
    %5637 = vmatprep.subr.bf16.mxu0 0
    %5638 = vmatpush1.bf16.msra.mxu0 %v4271
    %5639 = vmatprep.subr.bf16.mxu0 0
    %5640 = vmatpush1.bf16.msra.mxu0 %v4272
    %5641 = vmatprep.subr.bf16.mxu0 0
    %5642 = vmatpush1.bf16.msra.mxu0 %v4273
    %5643 = vmatprep.subr.bf16.mxu0 0
    %5644 = vmatpush1.bf16.msra.mxu0 %v4274
    %5645 = vmatprep.subr.bf16.mxu0 0
    %5646 = vmatpush1.bf16.msra.mxu0 %v4275
    %5647 = vmatprep.subr.bf16.mxu0 0
    %5648 = vmatpush1.bf16.msra.mxu0 %v4276
    %5649 = vmatprep.subr.bf16.mxu0 0
    %5650 = vmatpush1.bf16.msra.mxu0 %v4277
    %5651 = vmatprep.mubr.bf16.mxu0 %v1575
    %5652 = vmatmul.mubr.bf16.gmra.mrb[0].mxu0 %v1574
    %v5653 = vpop.f32.mrb[0].mxu0
    %v5654 = vadd.f32 %v5613, %v5653
    %v5655 = vpop.f32.mrb[0].mxu0
    %v5656 = vpop.f32.mrb[0].mxu0
    %v5657 = vadd.f32 %v5616, %v5656
    %v5658 = vpop.f32.mrb[0].mxu0
    %5659 = vdwg.mxu0
    %5660 = vmatprep.subr.bf16.mxu0 0
    %5661 = vmatpush1.bf16.msra.mxu0 %v4278
    %5662 = vmatprep.subr.bf16.mxu0 0
    %5663 = vmatpush1.bf16.msra.mxu0 %v4279
    %5664 = vmatprep.subr.bf16.mxu0 0
    %5665 = vmatpush1.bf16.msra.mxu0 %v4280
    %5666 = vmatprep.subr.bf16.mxu0 0
    %5667 = vmatpush1.bf16.msra.mxu0 %v4281
    %5668 = vmatprep.subr.bf16.mxu0 0
    %5669 = vmatpush1.bf16.msra.mxu0 %v4282
    %5670 = vmatprep.subr.bf16.mxu0 0
    %5671 = vmatpush1.bf16.msra.mxu0 %v4283
    %5672 = vmatprep.subr.bf16.mxu0 0
    %5673 = vmatpush1.bf16.msra.mxu0 %v4284
    %5674 = vmatprep.subr.bf16.mxu0 0
    %5675 = vmatpush1.bf16.msra.mxu0 %v4285
    %5676 = vmatprep.subr.bf16.mxu0 0
    %5677 = vmatpush1.bf16.msra.mxu0 %v4286
    %5678 = vmatprep.subr.bf16.mxu0 0
    %5679 = vmatpush1.bf16.msra.mxu0 %v4287
    %5680 = vmatprep.subr.bf16.mxu0 0
    %5681 = vmatpush1.bf16.msra.mxu0 %v4288
    %5682 = vmatprep.subr.bf16.mxu0 0
    %5683 = vmatpush1.bf16.msra.mxu0 %v4289
    %5684 = vmatprep.subr.bf16.mxu0 0
    %5685 = vmatpush1.bf16.msra.mxu0 %v4290
    %5686 = vmatprep.subr.bf16.mxu0 0
    %5687 = vmatpush1.bf16.msra.mxu0 %v4291
    %5688 = vmatprep.subr.bf16.mxu0 0
    %5689 = vmatpush1.bf16.msra.mxu0 %v4292
    %5690 = vmatprep.subr.bf16.mxu0 0
    %5691 = vmatpush1.bf16.msra.mxu0 %v4293
    %5692 = vmatprep.mubr.bf16.mxu0 %v1577
    %5693 = vmatmul.mubr.bf16.gmra.mrb[0].mxu0 %v1576
    %v5694 = vpop.f32.mrb[0].mxu0
    %v5695 = vadd.f32 %v5654, %v5694
    %v5696 = vpop.f32.mrb[0].mxu0
    %v5697 = vpop.f32.mrb[0].mxu0
    %v5698 = vadd.f32 %v5657, %v5697
    %v5699 = vpop.f32.mrb[0].mxu0
    %5700 = vdwg.mxu0
    %5701 = vmatprep.subr.bf16.mxu0 0
    %5702 = vmatpush1.bf16.msra.mxu0 %v4294
    %5703 = vmatprep.subr.bf16.mxu0 0
    %5704 = vmatpush1.bf16.msra.mxu0 %v4295
    %5705 = vmatprep.subr.bf16.mxu0 0
    %5706 = vmatpush1.bf16.msra.mxu0 %v4296
    %5707 = vmatprep.subr.bf16.mxu0 0
    %5708 = vmatpush1.bf16.msra.mxu0 %v4297
    %5709 = vmatprep.subr.bf16.mxu0 0
    %5710 = vmatpush1.bf16.msra.mxu0 %v4298
    %5711 = vmatprep.subr.bf16.mxu0 0
    %5712 = vmatpush1.bf16.msra.mxu0 %v4299
    %5713 = vmatprep.subr.bf16.mxu0 0
    %5714 = vmatpush1.bf16.msra.mxu0 %v4300
    %5715 = vmatprep.subr.bf16.mxu0 0
    %5716 = vmatpush1.bf16.msra.mxu0 %v4301
    %5717 = vmatprep.subr.bf16.mxu0 0
    %5718 = vmatpush1.bf16.msra.mxu0 %v4302
    %5719 = vmatprep.subr.bf16.mxu0 0
    %5720 = vmatpush1.bf16.msra.mxu0 %v4303
    %5721 = vmatprep.subr.bf16.mxu0 0
    %5722 = vmatpush1.bf16.msra.mxu0 %v4304
    %5723 = vmatprep.subr.bf16.mxu0 0
    %5724 = vmatpush1.bf16.msra.mxu0 %v4305
    %5725 = vmatprep.subr.bf16.mxu0 0
    %5726 = vmatpush1.bf16.msra.mxu0 %v4306
    %5727 = vmatprep.subr.bf16.mxu0 0
    %5728 = vmatpush1.bf16.msra.mxu0 %v4307
    %5729 = vmatprep.subr.bf16.mxu0 0
    %5730 = vmatpush1.bf16.msra.mxu0 %v4308
    %5731 = vmatprep.subr.bf16.mxu0 0
    %5732 = vmatpush1.bf16.msra.mxu0 %v4309
    %5733 = vmatprep.mubr.bf16.mxu0 %v1579
    %5734 = vmatmul.mubr.bf16.gmra.mrb[0].mxu0 %v1578
    %v5735 = vpop.f32.mrb[0].mxu0
    %v5736 = vadd.f32 %v5695, %v5735
    %v5737 = vpop.f32.mrb[0].mxu0
    %v5738 = vpop.f32.mrb[0].mxu0
    %v5739 = vadd.f32 %v5698, %v5738
    %v5740 = vpop.f32.mrb[0].mxu0
    %5741 = vdwg.mxu0
    %5742 = vmatprep.subr.bf16.mxu0 0
    %5743 = vmatpush1.bf16.msra.mxu0 %v4310
    %5744 = vmatprep.subr.bf16.mxu0 0
    %5745 = vmatpush1.bf16.msra.mxu0 %v4311
    %5746 = vmatprep.subr.bf16.mxu0 0
    %5747 = vmatpush1.bf16.msra.mxu0 %v4312
    %5748 = vmatprep.subr.bf16.mxu0 0
    %5749 = vmatpush1.bf16.msra.mxu0 %v4313
    %5750 = vmatprep.subr.bf16.mxu0 0
    %5751 = vmatpush1.bf16.msra.mxu0 %v4314
    %5752 = vmatprep.subr.bf16.mxu0 0
    %5753 = vmatpush1.bf16.msra.mxu0 %v4315
    %5754 = vmatprep.subr.bf16.mxu0 0
    %5755 = vmatpush1.bf16.msra.mxu0 %v4316
    %5756 = vmatprep.subr.bf16.mxu0 0
    %5757 = vmatpush1.bf16.msra.mxu0 %v4317
    %5758 = vmatprep.subr.bf16.mxu0 0
    %5759 = vmatpush1.bf16.msra.mxu0 %v4318
    %5760 = vmatprep.subr.bf16.mxu0 0
    %5761 = vmatpush1.bf16.msra.mxu0 %v4319
    %5762 = vmatprep.subr.bf16.mxu0 0
    %5763 = vmatpush1.bf16.msra.mxu0 %v4320
    %5764 = vmatprep.subr.bf16.mxu0 0
    %5765 = vmatpush1.bf16.msra.mxu0 %v4321
    %5766 = vmatprep.subr.bf16.mxu0 0
    %5767 = vmatpush1.bf16.msra.mxu0 %v4322
    %5768 = vmatprep.subr.bf16.mxu0 0
    %5769 = vmatpush1.bf16.msra.mxu0 %v4323
    %5770 = vmatprep.subr.bf16.mxu0 0
    %5771 = vmatpush1.bf16.msra.mxu0 %v4324
    %5772 = vmatprep.subr.bf16.mxu0 0
    %5773 = vmatpush1.bf16.msra.mxu0 %v4325
    %5774 = vmatprep.mubr.bf16.mxu0 %v1581
    %5775 = vmatmul.mubr.bf16.gmra.mrb[0].mxu0 %v1580
    %v5776 = vpop.f32.mrb[0].mxu0
    %v5777 = vadd.f32 %v5736, %v5776
    %v5778 = vpop.f32.mrb[0].mxu0
    %v5779 = vpop.f32.mrb[0].mxu0
    %v5780 = vadd.f32 %v5739, %v5779
    %v5781 = vpop.f32.mrb[0].mxu0
    %5782 = vdwg.mxu0
    %5783 = vmatprep.subr.bf16.mxu0 0
    %5784 = vmatpush1.bf16.msra.mxu0 %v4326
    %5785 = vmatprep.subr.bf16.mxu0 0
    %5786 = vmatpush1.bf16.msra.mxu0 %v4327
    %5787 = vmatprep.subr.bf16.mxu0 0
    %5788 = vmatpush1.bf16.msra.mxu0 %v4328
    %5789 = vmatprep.subr.bf16.mxu0 0
    %5790 = vmatpush1.bf16.msra.mxu0 %v4329
    %5791 = vmatprep.subr.bf16.mxu0 0
    %5792 = vmatpush1.bf16.msra.mxu0 %v4330
    %5793 = vmatprep.subr.bf16.mxu0 0
    %5794 = vmatpush1.bf16.msra.mxu0 %v4331
    %5795 = vmatprep.subr.bf16.mxu0 0
    %5796 = vmatpush1.bf16.msra.mxu0 %v4332
    %5797 = vmatprep.subr.bf16.mxu0 0
    %5798 = vmatpush1.bf16.msra.mxu0 %v4333
    %5799 = vmatprep.subr.bf16.mxu0 0
    %5800 = vmatpush1.bf16.msra.mxu0 %v4334
    %5801 = vmatprep.subr.bf16.mxu0 0
    %5802 = vmatpush1.bf16.msra.mxu0 %v4335
    %5803 = vmatprep.subr.bf16.mxu0 0
    %5804 = vmatpush1.bf16.msra.mxu0 %v4336
    %5805 = vmatprep.subr.bf16.mxu0 0
    %5806 = vmatpush1.bf16.msra.mxu0 %v4337
    %5807 = vmatprep.subr.bf16.mxu0 0
    %5808 = vmatpush1.bf16.msra.mxu0 %v4338
    %5809 = vmatprep.subr.bf16.mxu0 0
    %5810 = vmatpush1.bf16.msra.mxu0 %v4339
    %5811 = vmatprep.subr.bf16.mxu0 0
    %5812 = vmatpush1.bf16.msra.mxu0 %v4340
    %5813 = vmatprep.subr.bf16.mxu0 0
    %5814 = vmatpush1.bf16.msra.mxu0 %v4341
    %5815 = vmatprep.mubr.bf16.mxu0 %v1583
    %5816 = vmatmul.mubr.bf16.gmra.mrb[0].mxu0 %v1582
    %v5817 = vpop.f32.mrb[0].mxu0
    %v5818 = vadd.f32 %v5777, %v5817
    %v5819 = vpop.f32.mrb[0].mxu0
    %v5820 = vpop.f32.mrb[0].mxu0
    %v5821 = vadd.f32 %v5780, %v5820
    %v5822 = vpop.f32.mrb[0].mxu0
    %5823 = vdwg.mxu0
    %5824 = vmatprep.subr.bf16.mxu0 0
    %5825 = vmatpush1.bf16.msra.mxu0 %v4342
    %5826 = vmatprep.subr.bf16.mxu0 0
    %5827 = vmatpush1.bf16.msra.mxu0 %v4343
    %5828 = vmatprep.subr.bf16.mxu0 0
    %5829 = vmatpush1.bf16.msra.mxu0 %v4344
    %5830 = vmatprep.subr.bf16.mxu0 0
    %5831 = vmatpush1.bf16.msra.mxu0 %v4345
    %5832 = vmatprep.subr.bf16.mxu0 0
    %5833 = vmatpush1.bf16.msra.mxu0 %v4346
    %5834 = vmatprep.subr.bf16.mxu0 0
    %5835 = vmatpush1.bf16.msra.mxu0 %v4347
    %5836 = vmatprep.subr.bf16.mxu0 0
    %5837 = vmatpush1.bf16.msra.mxu0 %v4348
    %5838 = vmatprep.subr.bf16.mxu0 0
    %5839 = vmatpush1.bf16.msra.mxu0 %v4349
    %5840 = vmatprep.subr.bf16.mxu0 0
    %5841 = vmatpush1.bf16.msra.mxu0 %v4350
    %5842 = vmatprep.subr.bf16.mxu0 0
    %5843 = vmatpush1.bf16.msra.mxu0 %v4351
    %5844 = vmatprep.subr.bf16.mxu0 0
    %5845 = vmatpush1.bf16.msra.mxu0 %v4352
    %5846 = vmatprep.subr.bf16.mxu0 0
    %5847 = vmatpush1.bf16.msra.mxu0 %v4353
    %5848 = vmatprep.subr.bf16.mxu0 0
    %5849 = vmatpush1.bf16.msra.mxu0 %v4354
    %5850 = vmatprep.subr.bf16.mxu0 0
    %5851 = vmatpush1.bf16.msra.mxu0 %v4355
    %5852 = vmatprep.subr.bf16.mxu0 0
    %5853 = vmatpush1.bf16.msra.mxu0 %v4356
    %5854 = vmatprep.subr.bf16.mxu0 0
    %5855 = vmatpush1.bf16.msra.mxu0 %v4357
    %5856 = vmatprep.mubr.bf16.mxu0 %v1585
    %5857 = vmatmul.mubr.bf16.gmra.mrb[0].mxu0 %v1584
    %v5858 = vpop.f32.mrb[0].mxu0
    %v5859 = vadd.f32 %v5818, %v5858
    %v5860 = vpop.f32.mrb[0].mxu0
    %v5861 = vpop.f32.mrb[0].mxu0
    %v5862 = vadd.f32 %v5821, %v5861
    %v5863 = vpop.f32.mrb[0].mxu0
    %5864 = vdwg.mxu0
    %5865 = vmatprep.subr.bf16.mxu0 0
    %5866 = vmatpush1.bf16.msra.mxu0 %v4358
    %5867 = vmatprep.subr.bf16.mxu0 0
    %5868 = vmatpush1.bf16.msra.mxu0 %v4359
    %5869 = vmatprep.subr.bf16.mxu0 0
    %5870 = vmatpush1.bf16.msra.mxu0 %v4360
    %5871 = vmatprep.subr.bf16.mxu0 0
    %5872 = vmatpush1.bf16.msra.mxu0 %v4361
    %5873 = vmatprep.subr.bf16.mxu0 0
    %5874 = vmatpush1.bf16.msra.mxu0 %v4362
    %5875 = vmatprep.subr.bf16.mxu0 0
    %5876 = vmatpush1.bf16.msra.mxu0 %v4363
    %5877 = vmatprep.subr.bf16.mxu0 0
    %5878 = vmatpush1.bf16.msra.mxu0 %v4364
    %5879 = vmatprep.subr.bf16.mxu0 0
    %5880 = vmatpush1.bf16.msra.mxu0 %v4365
    %5881 = vmatprep.subr.bf16.mxu0 0
    %5882 = vmatpush1.bf16.msra.mxu0 %v4366
    %5883 = vmatprep.subr.bf16.mxu0 0
    %5884 = vmatpush1.bf16.msra.mxu0 %v4367
    %5885 = vmatprep.subr.bf16.mxu0 0
    %5886 = vmatpush1.bf16.msra.mxu0 %v4368
    %5887 = vmatprep.subr.bf16.mxu0 0
    %5888 = vmatpush1.bf16.msra.mxu0 %v4369
    %5889 = vmatprep.subr.bf16.mxu0 0
    %5890 = vmatpush1.bf16.msra.mxu0 %v4370
    %5891 = vmatprep.subr.bf16.mxu0 0
    %5892 = vmatpush1.bf16.msra.mxu0 %v4371
    %5893 = vmatprep.subr.bf16.mxu0 0
    %5894 = vmatpush1.bf16.msra.mxu0 %v4372
    %5895 = vmatprep.subr.bf16.mxu0 0
    %5896 = vmatpush1.bf16.msra.mxu0 %v4373
    %5897 = vmatprep.mubr.bf16.mxu0 %v1587
    %5898 = vmatmul.mubr.bf16.gmra.mrb[0].mxu0 %v1586
    %v5899 = vpop.f32.mrb[0].mxu0
    %v5900 = vadd.f32 %v5859, %v5899
    %v5901 = vpop.f32.mrb[0].mxu0
    %v5902 = vpop.f32.mrb[0].mxu0
    %v5903 = vadd.f32 %v5862, %v5902
    %v5904 = vpop.f32.mrb[0].mxu0
    %5905 = vdwg.mxu0
    %5906 = vmatprep.subr.bf16.mxu0 0
    %5907 = vmatpush1.bf16.msra.mxu0 %v4374
    %5908 = vmatprep.subr.bf16.mxu0 0
    %5909 = vmatpush1.bf16.msra.mxu0 %v4375
    %5910 = vmatprep.subr.bf16.mxu0 0
    %5911 = vmatpush1.bf16.msra.mxu0 %v4376
    %5912 = vmatprep.subr.bf16.mxu0 0
    %5913 = vmatpush1.bf16.msra.mxu0 %v4377
    %5914 = vmatprep.subr.bf16.mxu0 0
    %5915 = vmatpush1.bf16.msra.mxu0 %v4378
    %5916 = vmatprep.subr.bf16.mxu0 0
    %5917 = vmatpush1.bf16.msra.mxu0 %v4379
    %5918 = vmatprep.subr.bf16.mxu0 0
    %5919 = vmatpush1.bf16.msra.mxu0 %v4380
    %5920 = vmatprep.subr.bf16.mxu0 0
    %5921 = vmatpush1.bf16.msra.mxu0 %v4381
    %5922 = vmatprep.subr.bf16.mxu0 0
    %5923 = vmatpush1.bf16.msra.mxu0 %v4382
    %5924 = vmatprep.subr.bf16.mxu0 0
    %5925 = vmatpush1.bf16.msra.mxu0 %v4383
    %5926 = vmatprep.subr.bf16.mxu0 0
    %5927 = vmatpush1.bf16.msra.mxu0 %v4384
    %5928 = vmatprep.subr.bf16.mxu0 0
    %5929 = vmatpush1.bf16.msra.mxu0 %v4385
    %5930 = vmatprep.subr.bf16.mxu0 0
    %5931 = vmatpush1.bf16.msra.mxu0 %v4386
    %5932 = vmatprep.subr.bf16.mxu0 0
    %5933 = vmatpush1.bf16.msra.mxu0 %v4387
    %5934 = vmatprep.subr.bf16.mxu0 0
    %5935 = vmatpush1.bf16.msra.mxu0 %v4388
    %5936 = vmatprep.subr.bf16.mxu0 0
    %5937 = vmatpush1.bf16.msra.mxu0 %v4389
    %5938 = vmatprep.mubr.bf16.mxu0 %v1589
    %5939 = vmatmul.mubr.bf16.gmra.mrb[0].mxu0 %v1588
    %v5940 = vpop.f32.mrb[0].mxu0
    %v5941 = vadd.f32 %v5900, %v5940
    %v5942 = vpop.f32.mrb[0].mxu0
    %v5943 = vpop.f32.mrb[0].mxu0
    %v5944 = vadd.f32 %v5903, %v5943
    %v5945 = vpop.f32.mrb[0].mxu0
    %5946 = vdwg.mxu0
    %5947 = vmatprep.subr.bf16.mxu0 0
    %5948 = vmatpush1.bf16.msra.mxu0 %v4390
    %5949 = vmatprep.subr.bf16.mxu0 0
    %5950 = vmatpush1.bf16.msra.mxu0 %v4391
    %5951 = vmatprep.subr.bf16.mxu0 0
    %5952 = vmatpush1.bf16.msra.mxu0 %v4392
    %5953 = vmatprep.subr.bf16.mxu0 0
    %5954 = vmatpush1.bf16.msra.mxu0 %v4393
    %5955 = vmatprep.subr.bf16.mxu0 0
    %5956 = vmatpush1.bf16.msra.mxu0 %v4394
    %5957 = vmatprep.subr.bf16.mxu0 0
    %5958 = vmatpush1.bf16.msra.mxu0 %v4395
    %5959 = vmatprep.subr.bf16.mxu0 0
    %5960 = vmatpush1.bf16.msra.mxu0 %v4396
    %5961 = vmatprep.subr.bf16.mxu0 0
    %5962 = vmatpush1.bf16.msra.mxu0 %v4397
    %5963 = vmatprep.subr.bf16.mxu0 0
    %5964 = vmatpush1.bf16.msra.mxu0 %v4398
    %5965 = vmatprep.subr.bf16.mxu0 0
    %5966 = vmatpush1.bf16.msra.mxu0 %v4399
    %5967 = vmatprep.subr.bf16.mxu0 0
    %5968 = vmatpush1.bf16.msra.mxu0 %v4400
    %5969 = vmatprep.subr.bf16.mxu0 0
    %5970 = vmatpush1.bf16.msra.mxu0 %v4401
    %5971 = vmatprep.subr.bf16.mxu0 0
    %5972 = vmatpush1.bf16.msra.mxu0 %v4402
    %5973 = vmatprep.subr.bf16.mxu0 0
    %5974 = vmatpush1.bf16.msra.mxu0 %v4403
    %5975 = vmatprep.subr.bf16.mxu0 0
    %5976 = vmatpush1.bf16.msra.mxu0 %v4404
    %5977 = vmatprep.subr.bf16.mxu0 0
    %5978 = vmatpush1.bf16.msra.mxu0 %v4405
    %5979 = vmatprep.mubr.bf16.mxu0 %v1591
    %5980 = vmatmul.mubr.bf16.gmra.mrb[0].mxu0 %v1590
    %v5981 = vpop.f32.mrb[0].mxu0
    %v5982 = vadd.f32 %v5941, %v5981
    %v5983 = vpop.f32.mrb[0].mxu0
    %v5984 = vpop.f32.mrb[0].mxu0
    %v5985 = vadd.f32 %v5944, %v5984
    %v5986 = vpop.f32.mrb[0].mxu0
    %5987 = vdwg.mxu0
    %5988 = vmatprep.subr.bf16.mxu0 0
    %5989 = vmatpush1.bf16.msra.mxu0 %v4406
    %5990 = vmatprep.subr.bf16.mxu0 0
    %5991 = vmatpush1.bf16.msra.mxu0 %v4407
    %5992 = vmatprep.subr.bf16.mxu0 0
    %5993 = vmatpush1.bf16.msra.mxu0 %v4408
    %5994 = vmatprep.subr.bf16.mxu0 0
    %5995 = vmatpush1.bf16.msra.mxu0 %v4409
    %5996 = vmatprep.subr.bf16.mxu0 0
    %5997 = vmatpush1.bf16.msra.mxu0 %v4410
    %5998 = vmatprep.subr.bf16.mxu0 0
    %5999 = vmatpush1.bf16.msra.mxu0 %v4411
    %6000 = vmatprep.subr.bf16.mxu0 0
    %6001 = vmatpush1.bf16.msra.mxu0 %v4412
    %6002 = vmatprep.subr.bf16.mxu0 0
    %6003 = vmatpush1.bf16.msra.mxu0 %v4413
    %6004 = vmatprep.subr.bf16.mxu0 0
    %6005 = vmatpush1.bf16.msra.mxu0 %v4414
    %6006 = vmatprep.subr.bf16.mxu0 0
    %6007 = vmatpush1.bf16.msra.mxu0 %v4415
    %6008 = vmatprep.subr.bf16.mxu0 0
    %6009 = vmatpush1.bf16.msra.mxu0 %v4416
    %6010 = vmatprep.subr.bf16.mxu0 0
    %6011 = vmatpush1.bf16.msra.mxu0 %v4417
    %6012 = vmatprep.subr.bf16.mxu0 0
    %6013 = vmatpush1.bf16.msra.mxu0 %v4418
    %6014 = vmatprep.subr.bf16.mxu0 0
    %6015 = vmatpush1.bf16.msra.mxu0 %v4419
    %6016 = vmatprep.subr.bf16.mxu0 0
    %6017 = vmatpush1.bf16.msra.mxu0 %v4420
    %6018 = vmatprep.subr.bf16.mxu0 0
    %6019 = vmatpush1.bf16.msra.mxu0 %v4421
    %6020 = vmatprep.mubr.bf16.mxu0 %v1593
    %6021 = vmatmul.mubr.bf16.gmra.mrb[0].mxu0 %v1592
    %v6022 = vpop.f32.mrb[0].mxu0
    %v6023 = vadd.f32 %v5982, %v6022
    %v6024 = vpop.f32.mrb[0].mxu0
    %v6025 = vpop.f32.mrb[0].mxu0
    %v6026 = vadd.f32 %v5985, %v6025
    %v6027 = vpop.f32.mrb[0].mxu0
    %6028 = vdwg.mxu0
    %6029 = vmatprep.subr.bf16.mxu0 0
    %6030 = vmatpush1.bf16.msra.mxu0 %v4422
    %6031 = vmatprep.subr.bf16.mxu0 0
    %6032 = vmatpush1.bf16.msra.mxu0 %v4423
    %6033 = vmatprep.subr.bf16.mxu0 0
    %6034 = vmatpush1.bf16.msra.mxu0 %v4424
    %6035 = vmatprep.subr.bf16.mxu0 0
    %6036 = vmatpush1.bf16.msra.mxu0 %v4425
    %6037 = vmatprep.subr.bf16.mxu0 0
    %6038 = vmatpush1.bf16.msra.mxu0 %v4426
    %6039 = vmatprep.subr.bf16.mxu0 0
    %6040 = vmatpush1.bf16.msra.mxu0 %v4427
    %6041 = vmatprep.subr.bf16.mxu0 0
    %6042 = vmatpush1.bf16.msra.mxu0 %v4428
    %6043 = vmatprep.subr.bf16.mxu0 0
    %6044 = vmatpush1.bf16.msra.mxu0 %v4429
    %6045 = vmatprep.subr.bf16.mxu0 0
    %6046 = vmatpush1.bf16.msra.mxu0 %v4430
    %6047 = vmatprep.subr.bf16.mxu0 0
    %6048 = vmatpush1.bf16.msra.mxu0 %v4431
    %6049 = vmatprep.subr.bf16.mxu0 0
    %6050 = vmatpush1.bf16.msra.mxu0 %v4432
    %6051 = vmatprep.subr.bf16.mxu0 0
    %6052 = vmatpush1.bf16.msra.mxu0 %v4433
    %6053 = vmatprep.subr.bf16.mxu0 0
    %6054 = vmatpush1.bf16.msra.mxu0 %v4434
    %6055 = vmatprep.subr.bf16.mxu0 0
    %6056 = vmatpush1.bf16.msra.mxu0 %v4435
    %6057 = vmatprep.subr.bf16.mxu0 0
    %6058 = vmatpush1.bf16.msra.mxu0 %v4436
    %6059 = vmatprep.subr.bf16.mxu0 0
    %6060 = vmatpush1.bf16.msra.mxu0 %v4437
    %6061 = vmatprep.mubr.bf16.mxu0 %v1595
    %6062 = vmatmul.mubr.bf16.gmra.mrb[0].mxu0 %v1594
    %v6063 = vpop.f32.mrb[0].mxu0
    %v6064 = vadd.f32 %v6023, %v6063
    %v6065 = vpop.f32.mrb[0].mxu0
    %v6066 = vpop.f32.mrb[0].mxu0
    %v6067 = vadd.f32 %v6026, %v6066
    %v6068 = vpop.f32.mrb[0].mxu0
    %6069 = vdwg.mxu0
    %6070 = vmatprep.subr.bf16.mxu0 0
    %6071 = vmatpush1.bf16.msra.mxu0 %v4438
    %6072 = vmatprep.subr.bf16.mxu0 0
    %6073 = vmatpush1.bf16.msra.mxu0 %v4439
    %6074 = vmatprep.subr.bf16.mxu0 0
    %6075 = vmatpush1.bf16.msra.mxu0 %v4440
    %6076 = vmatprep.subr.bf16.mxu0 0
    %6077 = vmatpush1.bf16.msra.mxu0 %v4441
    %6078 = vmatprep.subr.bf16.mxu0 0
    %6079 = vmatpush1.bf16.msra.mxu0 %v4442
    %6080 = vmatprep.subr.bf16.mxu0 0
    %6081 = vmatpush1.bf16.msra.mxu0 %v4443
    %6082 = vmatprep.subr.bf16.mxu0 0
    %6083 = vmatpush1.bf16.msra.mxu0 %v4444
    %6084 = vmatprep.subr.bf16.mxu0 0
    %6085 = vmatpush1.bf16.msra.mxu0 %v4445
    %6086 = vmatprep.subr.bf16.mxu0 0
    %6087 = vmatpush1.bf16.msra.mxu0 %v4446
    %6088 = vmatprep.subr.bf16.mxu0 0
    %6089 = vmatpush1.bf16.msra.mxu0 %v4447
    %6090 = vmatprep.subr.bf16.mxu0 0
    %6091 = vmatpush1.bf16.msra.mxu0 %v4448
    %6092 = vmatprep.subr.bf16.mxu0 0
    %6093 = vmatpush1.bf16.msra.mxu0 %v4449
    %6094 = vmatprep.subr.bf16.mxu0 0
    %6095 = vmatpush1.bf16.msra.mxu0 %v4450
    %6096 = vmatprep.subr.bf16.mxu0 0
    %6097 = vmatpush1.bf16.msra.mxu0 %v4451
    %6098 = vmatprep.subr.bf16.mxu0 0
    %6099 = vmatpush1.bf16.msra.mxu0 %v4452
    %6100 = vmatprep.subr.bf16.mxu0 0
    %6101 = vmatpush1.bf16.msra.mxu0 %v4453
    %6102 = vmatprep.mubr.bf16.mxu0 %v1597
    %6103 = vmatmul.mubr.bf16.gmra.mrb[0].mxu0 %v1596
    %v6104 = vpop.f32.mrb[0].mxu0
    %v6105 = vadd.f32 %v6064, %v6104
    %v6106 = vpop.f32.mrb[0].mxu0
    %v6107 = vpop.f32.mrb[0].mxu0
    %v6108 = vadd.f32 %v6067, %v6107
    %v6109 = vpop.f32.mrb[0].mxu0
    %6110 = vdwg.mxu0
    %6111 = vmatprep.subr.bf16.mxu0 0
    %6112 = vmatpush1.bf16.msra.mxu0 %v4454
    %6113 = vmatprep.subr.bf16.mxu0 0
    %6114 = vmatpush1.bf16.msra.mxu0 %v4455
    %6115 = vmatprep.subr.bf16.mxu0 0
    %6116 = vmatpush1.bf16.msra.mxu0 %v4456
    %6117 = vmatprep.subr.bf16.mxu0 0
    %6118 = vmatpush1.bf16.msra.mxu0 %v4457
    %6119 = vmatprep.subr.bf16.mxu0 0
    %6120 = vmatpush1.bf16.msra.mxu0 %v4458
    %6121 = vmatprep.subr.bf16.mxu0 0
    %6122 = vmatpush1.bf16.msra.mxu0 %v4459
    %6123 = vmatprep.subr.bf16.mxu0 0
    %6124 = vmatpush1.bf16.msra.mxu0 %v4460
    %6125 = vmatprep.subr.bf16.mxu0 0
    %6126 = vmatpush1.bf16.msra.mxu0 %v4461
    %6127 = vmatprep.subr.bf16.mxu0 0
    %6128 = vmatpush1.bf16.msra.mxu0 %v4462
    %6129 = vmatprep.subr.bf16.mxu0 0
    %6130 = vmatpush1.bf16.msra.mxu0 %v4463
    %6131 = vmatprep.subr.bf16.mxu0 0
    %6132 = vmatpush1.bf16.msra.mxu0 %v4464
    %6133 = vmatprep.subr.bf16.mxu0 0
    %6134 = vmatpush1.bf16.msra.mxu0 %v4465
    %6135 = vmatprep.subr.bf16.mxu0 0
    %6136 = vmatpush1.bf16.msra.mxu0 %v4466
    %6137 = vmatprep.subr.bf16.mxu0 0
    %6138 = vmatpush1.bf16.msra.mxu0 %v4467
    %6139 = vmatprep.subr.bf16.mxu0 0
    %6140 = vmatpush1.bf16.msra.mxu0 %v4468
    %6141 = vmatprep.subr.bf16.mxu0 0
    %6142 = vmatpush1.bf16.msra.mxu0 %v4469
    %6143 = vmatprep.mubr.bf16.mxu0 %v1599
    %6144 = vmatmul.mubr.bf16.gmra.mrb[0].mxu0 %v1598
    %v6145 = vpop.f32.mrb[0].mxu0
    %v6146 = vadd.f32 %v6105, %v6145
    %v6147 = vpop.f32.mrb[0].mxu0
    %v6148 = vpop.f32.mrb[0].mxu0
    %v6149 = vadd.f32 %v6108, %v6148
    %v6150 = vpop.f32.mrb[0].mxu0
    %6151 = vdwg.mxu0
    %6152 = vmatprep.subr.bf16.mxu0 0
    %6153 = vmatpush1.bf16.msra.mxu0 %v4470
    %6154 = vmatprep.subr.bf16.mxu0 0
    %6155 = vmatpush1.bf16.msra.mxu0 %v4471
    %6156 = vmatprep.subr.bf16.mxu0 0
    %6157 = vmatpush1.bf16.msra.mxu0 %v4472
    %6158 = vmatprep.subr.bf16.mxu0 0
    %6159 = vmatpush1.bf16.msra.mxu0 %v4473
    %6160 = vmatprep.subr.bf16.mxu0 0
    %6161 = vmatpush1.bf16.msra.mxu0 %v4474
    %6162 = vmatprep.subr.bf16.mxu0 0
    %6163 = vmatpush1.bf16.msra.mxu0 %v4475
    %6164 = vmatprep.subr.bf16.mxu0 0
    %6165 = vmatpush1.bf16.msra.mxu0 %v4476
    %6166 = vmatprep.subr.bf16.mxu0 0
    %6167 = vmatpush1.bf16.msra.mxu0 %v4477
    %6168 = vmatprep.subr.bf16.mxu0 0
    %6169 = vmatpush1.bf16.msra.mxu0 %v4478
    %6170 = vmatprep.subr.bf16.mxu0 0
    %6171 = vmatpush1.bf16.msra.mxu0 %v4479
    %6172 = vmatprep.subr.bf16.mxu0 0
    %6173 = vmatpush1.bf16.msra.mxu0 %v4480
    %6174 = vmatprep.subr.bf16.mxu0 0
    %6175 = vmatpush1.bf16.msra.mxu0 %v4481
    %6176 = vmatprep.subr.bf16.mxu0 0
    %6177 = vmatpush1.bf16.msra.mxu0 %v4482
    %6178 = vmatprep.subr.bf16.mxu0 0
    %6179 = vmatpush1.bf16.msra.mxu0 %v4483
    %6180 = vmatprep.subr.bf16.mxu0 0
    %6181 = vmatpush1.bf16.msra.mxu0 %v4484
    %6182 = vmatprep.subr.bf16.mxu0 0
    %6183 = vmatpush1.bf16.msra.mxu0 %v4485
    %6184 = vmatprep.mubr.bf16.mxu0 %v1601
    %6185 = vmatmul.mubr.bf16.gmra.mrb[0].mxu0 %v1600
    %v6186 = vpop.f32.mrb[0].mxu0
    %v6187 = vadd.f32 %v6146, %v6186
    %v6188 = vpop.f32.mrb[0].mxu0
    %v6189 = vpop.f32.mrb[0].mxu0
    %v6190 = vadd.f32 %v6149, %v6189
    %v6191 = vpop.f32.mrb[0].mxu0
    %6192 = vdwg.mxu0
    %6193 = vmatprep.subr.bf16.mxu0 0
    %6194 = vmatpush1.bf16.msra.mxu0 %v4486
    %6195 = vmatprep.subr.bf16.mxu0 0
    %6196 = vmatpush1.bf16.msra.mxu0 %v4487
    %6197 = vmatprep.subr.bf16.mxu0 0
    %6198 = vmatpush1.bf16.msra.mxu0 %v4488
    %6199 = vmatprep.subr.bf16.mxu0 0
    %6200 = vmatpush1.bf16.msra.mxu0 %v4489
    %6201 = vmatprep.subr.bf16.mxu0 0
    %6202 = vmatpush1.bf16.msra.mxu0 %v4490
    %6203 = vmatprep.subr.bf16.mxu0 0
    %6204 = vmatpush1.bf16.msra.mxu0 %v4491
    %6205 = vmatprep.subr.bf16.mxu0 0
    %6206 = vmatpush1.bf16.msra.mxu0 %v4492
    %6207 = vmatprep.subr.bf16.mxu0 0
    %6208 = vmatpush1.bf16.msra.mxu0 %v4493
    %6209 = vmatprep.subr.bf16.mxu0 0
    %6210 = vmatpush1.bf16.msra.mxu0 %v4494
    %6211 = vmatprep.subr.bf16.mxu0 0
    %6212 = vmatpush1.bf16.msra.mxu0 %v4495
    %6213 = vmatprep.subr.bf16.mxu0 0
    %6214 = vmatpush1.bf16.msra.mxu0 %v4496
    %6215 = vmatprep.subr.bf16.mxu0 0
    %6216 = vmatpush1.bf16.msra.mxu0 %v4497
    %6217 = vmatprep.subr.bf16.mxu0 0
    %6218 = vmatpush1.bf16.msra.mxu0 %v4498
    %6219 = vmatprep.subr.bf16.mxu0 0
    %6220 = vmatpush1.bf16.msra.mxu0 %v4499
    %6221 = vmatprep.subr.bf16.mxu0 0
    %6222 = vmatpush1.bf16.msra.mxu0 %v4500
    %6223 = vmatprep.subr.bf16.mxu0 0
    %6224 = vmatpush1.bf16.msra.mxu0 %v4501
    %6225 = vmatprep.mubr.bf16.mxu0 %v1603
    %6226 = vmatmul.mubr.bf16.gmra.mrb[0].mxu0 %v1602
    %v6227 = vpop.f32.mrb[0].mxu0
    %v6228 = vadd.f32 %v6187, %v6227
    %v6229 = vpop.f32.mrb[0].mxu0
    %v6230 = vpop.f32.mrb[0].mxu0
    %v6231 = vadd.f32 %v6190, %v6230
    %v6232 = vpop.f32.mrb[0].mxu0
    %6233 = vdwg.mxu0
    %6234 = vmatprep.subr.bf16.mxu0 0
    %6235 = vmatpush1.bf16.msra.mxu0 %v4502
    %6236 = vmatprep.subr.bf16.mxu0 0
    %6237 = vmatpush1.bf16.msra.mxu0 %v4503
    %6238 = vmatprep.subr.bf16.mxu0 0
    %6239 = vmatpush1.bf16.msra.mxu0 %v4504
    %6240 = vmatprep.subr.bf16.mxu0 0
    %6241 = vmatpush1.bf16.msra.mxu0 %v4505
    %6242 = vmatprep.subr.bf16.mxu0 0
    %6243 = vmatpush1.bf16.msra.mxu0 %v4506
    %6244 = vmatprep.subr.bf16.mxu0 0
    %6245 = vmatpush1.bf16.msra.mxu0 %v4507
    %6246 = vmatprep.subr.bf16.mxu0 0
    %6247 = vmatpush1.bf16.msra.mxu0 %v4508
    %6248 = vmatprep.subr.bf16.mxu0 0
    %6249 = vmatpush1.bf16.msra.mxu0 %v4509
    %6250 = vmatprep.subr.bf16.mxu0 0
    %6251 = vmatpush1.bf16.msra.mxu0 %v4510
    %6252 = vmatprep.subr.bf16.mxu0 0
    %6253 = vmatpush1.bf16.msra.mxu0 %v4511
    %6254 = vmatprep.subr.bf16.mxu0 0
    %6255 = vmatpush1.bf16.msra.mxu0 %v4512
    %6256 = vmatprep.subr.bf16.mxu0 0
    %6257 = vmatpush1.bf16.msra.mxu0 %v4513
    %6258 = vmatprep.subr.bf16.mxu0 0
    %6259 = vmatpush1.bf16.msra.mxu0 %v4514
    %6260 = vmatprep.subr.bf16.mxu0 0
    %6261 = vmatpush1.bf16.msra.mxu0 %v4515
    %6262 = vmatprep.subr.bf16.mxu0 0
    %6263 = vmatpush1.bf16.msra.mxu0 %v4516
    %6264 = vmatprep.subr.bf16.mxu0 0
    %6265 = vmatpush1.bf16.msra.mxu0 %v4517
    %6266 = vmatprep.mubr.bf16.mxu0 %v1605
    %6267 = vmatmul.mubr.bf16.gmra.mrb[0].mxu0 %v1604
    %v6268 = vpop.f32.mrb[0].mxu0
    %v6269 = vadd.f32 %v6228, %v6268
    %v6270 = vpop.f32.mrb[0].mxu0
    %v6271 = vpop.f32.mrb[0].mxu0
    %v6272 = vadd.f32 %v6231, %v6271
    %v6273 = vpop.f32.mrb[0].mxu0
    %6274 = vdwg.mxu0
    %6275 = vmatprep.subr.bf16.mxu0 0
    %6276 = vmatpush1.bf16.msra.mxu0 %v4518
    %6277 = vmatprep.subr.bf16.mxu0 0
    %6278 = vmatpush1.bf16.msra.mxu0 %v4519
    %6279 = vmatprep.subr.bf16.mxu0 0
    %6280 = vmatpush1.bf16.msra.mxu0 %v4520
    %6281 = vmatprep.subr.bf16.mxu0 0
    %6282 = vmatpush1.bf16.msra.mxu0 %v4521
    %6283 = vmatprep.subr.bf16.mxu0 0
    %6284 = vmatpush1.bf16.msra.mxu0 %v4522
    %6285 = vmatprep.subr.bf16.mxu0 0
    %6286 = vmatpush1.bf16.msra.mxu0 %v4523
    %6287 = vmatprep.subr.bf16.mxu0 0
    %6288 = vmatpush1.bf16.msra.mxu0 %v4524
    %6289 = vmatprep.subr.bf16.mxu0 0
    %6290 = vmatpush1.bf16.msra.mxu0 %v4525
    %6291 = vmatprep.subr.bf16.mxu0 0
    %6292 = vmatpush1.bf16.msra.mxu0 %v4526
    %6293 = vmatprep.subr.bf16.mxu0 0
    %6294 = vmatpush1.bf16.msra.mxu0 %v4527
    %6295 = vmatprep.subr.bf16.mxu0 0
    %6296 = vmatpush1.bf16.msra.mxu0 %v4528
    %6297 = vmatprep.subr.bf16.mxu0 0
    %6298 = vmatpush1.bf16.msra.mxu0 %v4529
    %6299 = vmatprep.subr.bf16.mxu0 0
    %6300 = vmatpush1.bf16.msra.mxu0 %v4530
    %6301 = vmatprep.subr.bf16.mxu0 0
    %6302 = vmatpush1.bf16.msra.mxu0 %v4531
    %6303 = vmatprep.subr.bf16.mxu0 0
    %6304 = vmatpush1.bf16.msra.mxu0 %v4532
    %6305 = vmatprep.subr.bf16.mxu0 0
    %6306 = vmatpush1.bf16.msra.mxu0 %v4533
    %6307 = vmatprep.mubr.bf16.mxu0 %v1607
    %6308 = vmatmul.mubr.bf16.gmra.mrb[0].mxu0 %v1606
    %v6309 = vpop.f32.mrb[0].mxu0
    %v6310 = vadd.f32 %v6269, %v6309
    %v6311 = vpop.f32.mrb[0].mxu0
    %v6312 = vpop.f32.mrb[0].mxu0
    %v6313 = vadd.f32 %v6272, %v6312
    %v6314 = vpop.f32.mrb[0].mxu0
    %6315 = vdwg.mxu0
    %6316 = vmatprep.subr.bf16.mxu0 0
    %6317 = vmatpush1.bf16.msra.mxu0 %v4534
    %6318 = vmatprep.subr.bf16.mxu0 0
    %6319 = vmatpush1.bf16.msra.mxu0 %v4535
    %6320 = vmatprep.subr.bf16.mxu0 0
    %6321 = vmatpush1.bf16.msra.mxu0 %v4536
    %6322 = vmatprep.subr.bf16.mxu0 0
    %6323 = vmatpush1.bf16.msra.mxu0 %v4537
    %6324 = vmatprep.subr.bf16.mxu0 0
    %6325 = vmatpush1.bf16.msra.mxu0 %v4538
    %6326 = vmatprep.subr.bf16.mxu0 0
    %6327 = vmatpush1.bf16.msra.mxu0 %v4539
    %6328 = vmatprep.subr.bf16.mxu0 0
    %6329 = vmatpush1.bf16.msra.mxu0 %v4540
    %6330 = vmatprep.subr.bf16.mxu0 0
    %6331 = vmatpush1.bf16.msra.mxu0 %v4541
    %6332 = vmatprep.subr.bf16.mxu0 0
    %6333 = vmatpush1.bf16.msra.mxu0 %v4542
    %6334 = vmatprep.subr.bf16.mxu0 0
    %6335 = vmatpush1.bf16.msra.mxu0 %v4543
    %6336 = vmatprep.subr.bf16.mxu0 0
    %6337 = vmatpush1.bf16.msra.mxu0 %v4544
    %6338 = vmatprep.subr.bf16.mxu0 0
    %6339 = vmatpush1.bf16.msra.mxu0 %v4545
    %6340 = vmatprep.subr.bf16.mxu0 0
    %6341 = vmatpush1.bf16.msra.mxu0 %v4546
    %6342 = vmatprep.subr.bf16.mxu0 0
    %6343 = vmatpush1.bf16.msra.mxu0 %v4547
    %6344 = vmatprep.subr.bf16.mxu0 0
    %6345 = vmatpush1.bf16.msra.mxu0 %v4548
    %6346 = vmatprep.subr.bf16.mxu0 0
    %6347 = vmatpush1.bf16.msra.mxu0 %v4549
    %6348 = vmatprep.mubr.bf16.mxu0 %v1609
    %6349 = vmatmul.mubr.bf16.gmra.mrb[0].mxu0 %v1608
    %v6350 = vpop.f32.mrb[0].mxu0
    %v6351 = vadd.f32 %v6310, %v6350
    %v6352 = vpop.f32.mrb[0].mxu0
    %v6353 = vpop.f32.mrb[0].mxu0
    %v6354 = vadd.f32 %v6313, %v6353
    %v6355 = vpop.f32.mrb[0].mxu0
    %6356 = vdwg.mxu0
    %6357 = vmatprep.subr.bf16.mxu0 0
    %6358 = vmatpush1.bf16.msra.mxu0 %v4550
    %6359 = vmatprep.subr.bf16.mxu0 0
    %6360 = vmatpush1.bf16.msra.mxu0 %v4551
    %6361 = vmatprep.subr.bf16.mxu0 0
    %6362 = vmatpush1.bf16.msra.mxu0 %v4552
    %6363 = vmatprep.subr.bf16.mxu0 0
    %6364 = vmatpush1.bf16.msra.mxu0 %v4553
    %6365 = vmatprep.subr.bf16.mxu0 0
    %6366 = vmatpush1.bf16.msra.mxu0 %v4554
    %6367 = vmatprep.subr.bf16.mxu0 0
    %6368 = vmatpush1.bf16.msra.mxu0 %v4555
    %6369 = vmatprep.subr.bf16.mxu0 0
    %6370 = vmatpush1.bf16.msra.mxu0 %v4556
    %6371 = vmatprep.subr.bf16.mxu0 0
    %6372 = vmatpush1.bf16.msra.mxu0 %v4557
    %6373 = vmatprep.subr.bf16.mxu0 0
    %6374 = vmatpush1.bf16.msra.mxu0 %v4558
    %6375 = vmatprep.subr.bf16.mxu0 0
    %6376 = vmatpush1.bf16.msra.mxu0 %v4559
    %6377 = vmatprep.subr.bf16.mxu0 0
    %6378 = vmatpush1.bf16.msra.mxu0 %v4560
    %6379 = vmatprep.subr.bf16.mxu0 0
    %6380 = vmatpush1.bf16.msra.mxu0 %v4561
    %6381 = vmatprep.subr.bf16.mxu0 0
    %6382 = vmatpush1.bf16.msra.mxu0 %v4562
    %6383 = vmatprep.subr.bf16.mxu0 0
    %6384 = vmatpush1.bf16.msra.mxu0 %v4563
    %6385 = vmatprep.subr.bf16.mxu0 0
    %6386 = vmatpush1.bf16.msra.mxu0 %v4564
    %6387 = vmatprep.subr.bf16.mxu0 0
    %6388 = vmatpush1.bf16.msra.mxu0 %v4565
    %6389 = vmatprep.mubr.bf16.mxu0 %v1611
    %6390 = vmatmul.mubr.bf16.gmra.mrb[0].mxu0 %v1610
    %v6391 = vpop.f32.mrb[0].mxu0
    %v6392 = vadd.f32 %v6351, %v6391
    %v6393 = vpop.f32.mrb[0].mxu0
    %v6394 = vpop.f32.mrb[0].mxu0
    %v6395 = vadd.f32 %v6354, %v6394
    %v6396 = vpop.f32.mrb[0].mxu0
    %6397 = vdwg.mxu0
    %6398 = vmatprep.subr.bf16.mxu0 0
    %6399 = vmatpush1.bf16.msra.mxu0 %v4566
    %6400 = vmatprep.subr.bf16.mxu0 0
    %6401 = vmatpush1.bf16.msra.mxu0 %v4567
    %6402 = vmatprep.subr.bf16.mxu0 0
    %6403 = vmatpush1.bf16.msra.mxu0 %v4568
    %6404 = vmatprep.subr.bf16.mxu0 0
    %6405 = vmatpush1.bf16.msra.mxu0 %v4569
    %6406 = vmatprep.subr.bf16.mxu0 0
    %6407 = vmatpush1.bf16.msra.mxu0 %v4570
    %6408 = vmatprep.subr.bf16.mxu0 0
    %6409 = vmatpush1.bf16.msra.mxu0 %v4571
    %6410 = vmatprep.subr.bf16.mxu0 0
    %6411 = vmatpush1.bf16.msra.mxu0 %v4572
    %6412 = vmatprep.subr.bf16.mxu0 0
    %6413 = vmatpush1.bf16.msra.mxu0 %v4573
    %6414 = vmatprep.subr.bf16.mxu0 0
    %6415 = vmatpush1.bf16.msra.mxu0 %v4574
    %6416 = vmatprep.subr.bf16.mxu0 0
    %6417 = vmatpush1.bf16.msra.mxu0 %v4575
    %6418 = vmatprep.subr.bf16.mxu0 0
    %6419 = vmatpush1.bf16.msra.mxu0 %v4576
    %6420 = vmatprep.subr.bf16.mxu0 0
    %6421 = vmatpush1.bf16.msra.mxu0 %v4577
    %6422 = vmatprep.subr.bf16.mxu0 0
    %6423 = vmatpush1.bf16.msra.mxu0 %v4578
    %6424 = vmatprep.subr.bf16.mxu0 0
    %6425 = vmatpush1.bf16.msra.mxu0 %v4579
    %6426 = vmatprep.subr.bf16.mxu0 0
    %6427 = vmatpush1.bf16.msra.mxu0 %v4580
    %6428 = vmatprep.subr.bf16.mxu0 0
    %6429 = vmatpush1.bf16.msra.mxu0 %v4581
    %6430 = vmatprep.mubr.bf16.mxu0 %v1613
    %6431 = vmatmul.mubr.bf16.gmra.mrb[0].mxu0 %v1612
    %v6432 = vpop.f32.mrb[0].mxu0
    %v6433 = vadd.f32 %v6392, %v6432
    %v6434 = vpop.f32.mrb[0].mxu0
    %v6435 = vpop.f32.mrb[0].mxu0
    %v6436 = vadd.f32 %v6395, %v6435
    %v6437 = vpop.f32.mrb[0].mxu0
    %6438 = vdwg.mxu0
    %6439 = vmatprep.subr.bf16.mxu0 0
    %6440 = vmatpush1.bf16.msra.mxu0 %v4582
    %6441 = vmatprep.subr.bf16.mxu0 0
    %6442 = vmatpush1.bf16.msra.mxu0 %v4583
    %6443 = vmatprep.subr.bf16.mxu0 0
    %6444 = vmatpush1.bf16.msra.mxu0 %v4584
    %6445 = vmatprep.subr.bf16.mxu0 0
    %6446 = vmatpush1.bf16.msra.mxu0 %v4585
    %6447 = vmatprep.subr.bf16.mxu0 0
    %6448 = vmatpush1.bf16.msra.mxu0 %v4586
    %6449 = vmatprep.subr.bf16.mxu0 0
    %6450 = vmatpush1.bf16.msra.mxu0 %v4587
    %6451 = vmatprep.subr.bf16.mxu0 0
    %6452 = vmatpush1.bf16.msra.mxu0 %v4588
    %6453 = vmatprep.subr.bf16.mxu0 0
    %6454 = vmatpush1.bf16.msra.mxu0 %v4589
    %6455 = vmatprep.subr.bf16.mxu0 0
    %6456 = vmatpush1.bf16.msra.mxu0 %v4590
    %6457 = vmatprep.subr.bf16.mxu0 0
    %6458 = vmatpush1.bf16.msra.mxu0 %v4591
    %6459 = vmatprep.subr.bf16.mxu0 0
    %6460 = vmatpush1.bf16.msra.mxu0 %v4592
    %6461 = vmatprep.subr.bf16.mxu0 0
    %6462 = vmatpush1.bf16.msra.mxu0 %v4593
    %6463 = vmatprep.subr.bf16.mxu0 0
    %6464 = vmatpush1.bf16.msra.mxu0 %v4594
    %6465 = vmatprep.subr.bf16.mxu0 0
    %6466 = vmatpush1.bf16.msra.mxu0 %v4595
    %6467 = vmatprep.subr.bf16.mxu0 0
    %6468 = vmatpush1.bf16.msra.mxu0 %v4596
    %6469 = vmatprep.subr.bf16.mxu0 0
    %6470 = vmatpush1.bf16.msra.mxu0 %v4597
    %6471 = vmatprep.mubr.bf16.mxu0 %v1615
    %6472 = vmatmul.mubr.bf16.gmra.mrb[0].mxu0 %v1614
    %v6473 = vpop.f32.mrb[0].mxu0
    %v6474 = vadd.f32 %v6433, %v6473
    %v6475 = vpop.f32.mrb[0].mxu0
    %v6476 = vpop.f32.mrb[0].mxu0
    %v6477 = vadd.f32 %v6436, %v6476
    %v6478 = vpop.f32.mrb[0].mxu0
    %6479 = vdwg.mxu0
    %6480 = vmatprep.subr.bf16.mxu0 0
    %6481 = vmatpush1.bf16.msra.mxu0 %v4598
    %6482 = vmatprep.subr.bf16.mxu0 0
    %6483 = vmatpush1.bf16.msra.mxu0 %v4599
    %6484 = vmatprep.subr.bf16.mxu0 0
    %6485 = vmatpush1.bf16.msra.mxu0 %v4600
    %6486 = vmatprep.subr.bf16.mxu0 0
    %6487 = vmatpush1.bf16.msra.mxu0 %v4601
    %6488 = vmatprep.subr.bf16.mxu0 0
    %6489 = vmatpush1.bf16.msra.mxu0 %v4602
    %6490 = vmatprep.subr.bf16.mxu0 0
    %6491 = vmatpush1.bf16.msra.mxu0 %v4603
    %6492 = vmatprep.subr.bf16.mxu0 0
    %6493 = vmatpush1.bf16.msra.mxu0 %v4604
    %6494 = vmatprep.subr.bf16.mxu0 0
    %6495 = vmatpush1.bf16.msra.mxu0 %v4605
    %6496 = vmatprep.subr.bf16.mxu0 0
    %6497 = vmatpush1.bf16.msra.mxu0 %v4606
    %6498 = vmatprep.subr.bf16.mxu0 0
    %6499 = vmatpush1.bf16.msra.mxu0 %v4607
    %6500 = vmatprep.subr.bf16.mxu0 0
    %6501 = vmatpush1.bf16.msra.mxu0 %v4608
    %6502 = vmatprep.subr.bf16.mxu0 0
    %6503 = vmatpush1.bf16.msra.mxu0 %v4609
    %6504 = vmatprep.subr.bf16.mxu0 0
    %6505 = vmatpush1.bf16.msra.mxu0 %v4610
    %6506 = vmatprep.subr.bf16.mxu0 0
    %6507 = vmatpush1.bf16.msra.mxu0 %v4611
    %6508 = vmatprep.subr.bf16.mxu0 0
    %6509 = vmatpush1.bf16.msra.mxu0 %v4612
    %6510 = vmatprep.subr.bf16.mxu0 0
    %6511 = vmatpush1.bf16.msra.mxu0 %v4613
    %6512 = vmatprep.mubr.bf16.mxu0 %v1617
    %6513 = vmatmul.mubr.bf16.gmra.mrb[0].mxu0 %v1616
    %v6514 = vpop.f32.mrb[0].mxu0
    %v6515 = vadd.f32 %v6474, %v6514
    %v6516 = vpop.f32.mrb[0].mxu0
    %v6517 = vpop.f32.mrb[0].mxu0
    %v6518 = vadd.f32 %v6477, %v6517
    %v6519 = vpop.f32.mrb[0].mxu0
    %6520 = vdwg.mxu0
    %6521 = vmatprep.subr.bf16.mxu0 0
    %6522 = vmatpush1.bf16.msra.mxu0 %v4614
    %6523 = vmatprep.subr.bf16.mxu0 0
    %6524 = vmatpush1.bf16.msra.mxu0 %v4615
    %6525 = vmatprep.subr.bf16.mxu0 0
    %6526 = vmatpush1.bf16.msra.mxu0 %v4616
    %6527 = vmatprep.subr.bf16.mxu0 0
    %6528 = vmatpush1.bf16.msra.mxu0 %v4617
    %6529 = vmatprep.subr.bf16.mxu0 0
    %6530 = vmatpush1.bf16.msra.mxu0 %v4618
    %6531 = vmatprep.subr.bf16.mxu0 0
    %6532 = vmatpush1.bf16.msra.mxu0 %v4619
    %6533 = vmatprep.subr.bf16.mxu0 0
    %6534 = vmatpush1.bf16.msra.mxu0 %v4620
    %6535 = vmatprep.subr.bf16.mxu0 0
    %6536 = vmatpush1.bf16.msra.mxu0 %v4621
    %6537 = vmatprep.subr.bf16.mxu0 0
    %6538 = vmatpush1.bf16.msra.mxu0 %v4622
    %6539 = vmatprep.subr.bf16.mxu0 0
    %6540 = vmatpush1.bf16.msra.mxu0 %v4623
    %6541 = vmatprep.subr.bf16.mxu0 0
    %6542 = vmatpush1.bf16.msra.mxu0 %v4624
    %6543 = vmatprep.subr.bf16.mxu0 0
    %6544 = vmatpush1.bf16.msra.mxu0 %v4625
    %6545 = vmatprep.subr.bf16.mxu0 0
    %6546 = vmatpush1.bf16.msra.mxu0 %v4626
    %6547 = vmatprep.subr.bf16.mxu0 0
    %6548 = vmatpush1.bf16.msra.mxu0 %v4627
    %6549 = vmatprep.subr.bf16.mxu0 0
    %6550 = vmatpush1.bf16.msra.mxu0 %v4628
    %6551 = vmatprep.subr.bf16.mxu0 0
    %6552 = vmatpush1.bf16.msra.mxu0 %v4629
    %6553 = vmatprep.mubr.bf16.mxu0 %v1619
    %6554 = vmatmul.mubr.bf16.gmra.mrb[0].mxu0 %v1618
    %v6555 = vpop.f32.mrb[0].mxu0
    %v6556 = vadd.f32 %v6515, %v6555
    %v6557 = vpop.f32.mrb[0].mxu0
    %v6558 = vpop.f32.mrb[0].mxu0
    %v6559 = vadd.f32 %v6518, %v6558
    %v6560 = vpop.f32.mrb[0].mxu0
    %6561 = vdwg.mxu0
    %6562 = vmatprep.subr.bf16.mxu0 0
    %6563 = vmatpush1.bf16.msra.mxu0 %v4630
    %6564 = vmatprep.subr.bf16.mxu0 0
    %6565 = vmatpush1.bf16.msra.mxu0 %v4631
    %6566 = vmatprep.subr.bf16.mxu0 0
    %6567 = vmatpush1.bf16.msra.mxu0 %v4632
    %6568 = vmatprep.subr.bf16.mxu0 0
    %6569 = vmatpush1.bf16.msra.mxu0 %v4633
    %6570 = vmatprep.subr.bf16.mxu0 0
    %6571 = vmatpush1.bf16.msra.mxu0 %v4634
    %6572 = vmatprep.subr.bf16.mxu0 0
    %6573 = vmatpush1.bf16.msra.mxu0 %v4635
    %6574 = vmatprep.subr.bf16.mxu0 0
    %6575 = vmatpush1.bf16.msra.mxu0 %v4636
    %6576 = vmatprep.subr.bf16.mxu0 0
    %6577 = vmatpush1.bf16.msra.mxu0 %v4637
    %6578 = vmatprep.subr.bf16.mxu0 0
    %6579 = vmatpush1.bf16.msra.mxu0 %v4638
    %6580 = vmatprep.subr.bf16.mxu0 0
    %6581 = vmatpush1.bf16.msra.mxu0 %v4639
    %6582 = vmatprep.subr.bf16.mxu0 0
    %6583 = vmatpush1.bf16.msra.mxu0 %v4640
    %6584 = vmatprep.subr.bf16.mxu0 0
    %6585 = vmatpush1.bf16.msra.mxu0 %v4641
    %6586 = vmatprep.subr.bf16.mxu0 0
    %6587 = vmatpush1.bf16.msra.mxu0 %v4642
    %6588 = vmatprep.subr.bf16.mxu0 0
    %6589 = vmatpush1.bf16.msra.mxu0 %v4643
    %6590 = vmatprep.subr.bf16.mxu0 0
    %6591 = vmatpush1.bf16.msra.mxu0 %v4644
    %6592 = vmatprep.subr.bf16.mxu0 0
    %6593 = vmatpush1.bf16.msra.mxu0 %v4645
    %6594 = vmatprep.mubr.bf16.mxu0 %v1621
    %6595 = vmatmul.mubr.bf16.gmra.mrb[0].mxu0 %v1620
    %v6596 = vpop.f32.mrb[0].mxu0
    %v6597 = vadd.f32 %v6556, %v6596
    %v6598 = vpop.f32.mrb[0].mxu0
    %v6599 = vpop.f32.mrb[0].mxu0
    %v6600 = vadd.f32 %v6559, %v6599
    %v6601 = vpop.f32.mrb[0].mxu0
    %6602 = vdwg.mxu0
    %6603 = vmatprep.subr.bf16.mxu0 0
    %6604 = vmatpush1.bf16.msra.mxu0 %v4646
    %6605 = vmatprep.subr.bf16.mxu0 0
    %6606 = vmatpush1.bf16.msra.mxu0 %v4647
    %6607 = vmatprep.subr.bf16.mxu0 0
    %6608 = vmatpush1.bf16.msra.mxu0 %v4648
    %6609 = vmatprep.subr.bf16.mxu0 0
    %6610 = vmatpush1.bf16.msra.mxu0 %v4649
    %6611 = vmatprep.subr.bf16.mxu0 0
    %6612 = vmatpush1.bf16.msra.mxu0 %v4650
    %6613 = vmatprep.subr.bf16.mxu0 0
    %6614 = vmatpush1.bf16.msra.mxu0 %v4651
    %6615 = vmatprep.subr.bf16.mxu0 0
    %6616 = vmatpush1.bf16.msra.mxu0 %v4652
    %6617 = vmatprep.subr.bf16.mxu0 0
    %6618 = vmatpush1.bf16.msra.mxu0 %v4653
    %6619 = vmatprep.subr.bf16.mxu0 0
    %6620 = vmatpush1.bf16.msra.mxu0 %v4654
    %6621 = vmatprep.subr.bf16.mxu0 0
    %6622 = vmatpush1.bf16.msra.mxu0 %v4655
    %6623 = vmatprep.subr.bf16.mxu0 0
    %6624 = vmatpush1.bf16.msra.mxu0 %v4656
    %6625 = vmatprep.subr.bf16.mxu0 0
    %6626 = vmatpush1.bf16.msra.mxu0 %v4657
    %6627 = vmatprep.subr.bf16.mxu0 0
    %6628 = vmatpush1.bf16.msra.mxu0 %v4658
    %6629 = vmatprep.subr.bf16.mxu0 0
    %6630 = vmatpush1.bf16.msra.mxu0 %v4659
    %6631 = vmatprep.subr.bf16.mxu0 0
    %6632 = vmatpush1.bf16.msra.mxu0 %v4660
    %6633 = vmatprep.subr.bf16.mxu0 0
    %6634 = vmatpush1.bf16.msra.mxu0 %v4661
    %6635 = vmatprep.mubr.bf16.mxu0 %v1623
    %6636 = vmatmul.mubr.bf16.gmra.mrb[0].mxu0 %v1622
    %v6637 = vpop.f32.mrb[0].mxu0
    %v6638 = vadd.f32 %v6597, %v6637
    %v6639 = vpop.f32.mrb[0].mxu0
    %v6640 = vpop.f32.mrb[0].mxu0
    %v6641 = vadd.f32 %v6600, %v6640
    %v6642 = vpop.f32.mrb[0].mxu0
    %6643 = vdwg.mxu0
    %6644 = vmatprep.subr.bf16.mxu0 0
    %6645 = vmatpush1.bf16.msra.mxu0 %v4662
    %6646 = vmatprep.subr.bf16.mxu0 0
    %6647 = vmatpush1.bf16.msra.mxu0 %v4663
    %6648 = vmatprep.subr.bf16.mxu0 0
    %6649 = vmatpush1.bf16.msra.mxu0 %v4664
    %6650 = vmatprep.subr.bf16.mxu0 0
    %6651 = vmatpush1.bf16.msra.mxu0 %v4665
    %6652 = vmatprep.subr.bf16.mxu0 0
    %6653 = vmatpush1.bf16.msra.mxu0 %v4666
    %6654 = vmatprep.subr.bf16.mxu0 0
    %6655 = vmatpush1.bf16.msra.mxu0 %v4667
    %6656 = vmatprep.subr.bf16.mxu0 0
    %6657 = vmatpush1.bf16.msra.mxu0 %v4668
    %6658 = vmatprep.subr.bf16.mxu0 0
    %6659 = vmatpush1.bf16.msra.mxu0 %v4669
    %6660 = vmatprep.subr.bf16.mxu0 0
    %6661 = vmatpush1.bf16.msra.mxu0 %v4670
    %6662 = vmatprep.subr.bf16.mxu0 0
    %6663 = vmatpush1.bf16.msra.mxu0 %v4671
    %6664 = vmatprep.subr.bf16.mxu0 0
    %6665 = vmatpush1.bf16.msra.mxu0 %v4672
    %6666 = vmatprep.subr.bf16.mxu0 0
    %6667 = vmatpush1.bf16.msra.mxu0 %v4673
    %6668 = vmatprep.subr.bf16.mxu0 0
    %6669 = vmatpush1.bf16.msra.mxu0 %v4674
    %6670 = vmatprep.subr.bf16.mxu0 0
    %6671 = vmatpush1.bf16.msra.mxu0 %v4675
    %6672 = vmatprep.subr.bf16.mxu0 0
    %6673 = vmatpush1.bf16.msra.mxu0 %v4676
    %6674 = vmatprep.subr.bf16.mxu0 0
    %6675 = vmatpush1.bf16.msra.mxu0 %v4677
    %6676 = vmatprep.mubr.bf16.mxu0 %v1625
    %6677 = vmatmul.mubr.bf16.gmra.mrb[0].mxu0 %v1624
    %v6678 = vpop.f32.mrb[0].mxu0
    %v6679 = vadd.f32 %v6638, %v6678
    %v6680 = vpop.f32.mrb[0].mxu0
    %v6681 = vpop.f32.mrb[0].mxu0
    %v6682 = vadd.f32 %v6641, %v6681
    %v6683 = vpop.f32.mrb[0].mxu0
    %6684 = vdwg.mxu0
    %6685 = vmatprep.subr.bf16.mxu0 0
    %6686 = vmatpush1.bf16.msra.mxu0 %v4678
    %6687 = vmatprep.subr.bf16.mxu0 0
    %6688 = vmatpush1.bf16.msra.mxu0 %v4679
    %6689 = vmatprep.subr.bf16.mxu0 0
    %6690 = vmatpush1.bf16.msra.mxu0 %v4680
    %6691 = vmatprep.subr.bf16.mxu0 0
    %6692 = vmatpush1.bf16.msra.mxu0 %v4681
    %6693 = vmatprep.subr.bf16.mxu0 0
    %6694 = vmatpush1.bf16.msra.mxu0 %v4682
    %6695 = vmatprep.subr.bf16.mxu0 0
    %6696 = vmatpush1.bf16.msra.mxu0 %v4683
    %6697 = vmatprep.subr.bf16.mxu0 0
    %6698 = vmatpush1.bf16.msra.mxu0 %v4684
    %6699 = vmatprep.subr.bf16.mxu0 0
    %6700 = vmatpush1.bf16.msra.mxu0 %v4685
    %6701 = vmatprep.subr.bf16.mxu0 0
    %6702 = vmatpush1.bf16.msra.mxu0 %v4686
    %6703 = vmatprep.subr.bf16.mxu0 0
    %6704 = vmatpush1.bf16.msra.mxu0 %v4687
    %6705 = vmatprep.subr.bf16.mxu0 0
    %6706 = vmatpush1.bf16.msra.mxu0 %v4688
    %6707 = vmatprep.subr.bf16.mxu0 0
    %6708 = vmatpush1.bf16.msra.mxu0 %v4689
    %6709 = vmatprep.subr.bf16.mxu0 0
    %6710 = vmatpush1.bf16.msra.mxu0 %v4690
    %6711 = vmatprep.subr.bf16.mxu0 0
    %6712 = vmatpush1.bf16.msra.mxu0 %v4691
    %6713 = vmatprep.subr.bf16.mxu0 0
    %6714 = vmatpush1.bf16.msra.mxu0 %v4692
    %6715 = vmatprep.subr.bf16.mxu0 0
    %6716 = vmatpush1.bf16.msra.mxu0 %v4693
    %6717 = vmatprep.mubr.bf16.mxu0 %v1627
    %6718 = vmatmul.mubr.bf16.gmra.mrb[0].mxu0 %v1626
    %v6719 = vpop.f32.mrb[0].mxu0
    %v6720 = vadd.f32 %v6679, %v6719
    %v6721 = vpop.f32.mrb[0].mxu0
    %v6722 = vpop.f32.mrb[0].mxu0
    %v6723 = vadd.f32 %v6682, %v6722
    %v6724 = vpop.f32.mrb[0].mxu0
    %6725 = vdwg.mxu0
    %6726 = vmatprep.subr.bf16.mxu0 0
    %6727 = vmatpush1.bf16.msra.mxu0 %v4694
    %6728 = vmatprep.subr.bf16.mxu0 0
    %6729 = vmatpush1.bf16.msra.mxu0 %v4695
    %6730 = vmatprep.subr.bf16.mxu0 0
    %6731 = vmatpush1.bf16.msra.mxu0 %v4696
    %6732 = vmatprep.subr.bf16.mxu0 0
    %6733 = vmatpush1.bf16.msra.mxu0 %v4697
    %6734 = vmatprep.subr.bf16.mxu0 0
    %6735 = vmatpush1.bf16.msra.mxu0 %v4698
    %6736 = vmatprep.subr.bf16.mxu0 0
    %6737 = vmatpush1.bf16.msra.mxu0 %v4699
    %6738 = vmatprep.subr.bf16.mxu0 0
    %6739 = vmatpush1.bf16.msra.mxu0 %v4700
    %6740 = vmatprep.subr.bf16.mxu0 0
    %6741 = vmatpush1.bf16.msra.mxu0 %v4701
    %6742 = vmatprep.subr.bf16.mxu0 0
    %6743 = vmatpush1.bf16.msra.mxu0 %v4702
    %6744 = vmatprep.subr.bf16.mxu0 0
    %6745 = vmatpush1.bf16.msra.mxu0 %v4703
    %6746 = vmatprep.subr.bf16.mxu0 0
    %6747 = vmatpush1.bf16.msra.mxu0 %v4704
    %6748 = vmatprep.subr.bf16.mxu0 0
    %6749 = vmatpush1.bf16.msra.mxu0 %v4705
    %6750 = vmatprep.subr.bf16.mxu0 0
    %6751 = vmatpush1.bf16.msra.mxu0 %v4706
    %6752 = vmatprep.subr.bf16.mxu0 0
    %6753 = vmatpush1.bf16.msra.mxu0 %v4707
    %6754 = vmatprep.subr.bf16.mxu0 0
    %6755 = vmatpush1.bf16.msra.mxu0 %v4708
    %6756 = vmatprep.subr.bf16.mxu0 0
    %6757 = vmatpush1.bf16.msra.mxu0 %v4709
    %6758 = vmatprep.mubr.bf16.mxu0 %v1629
    %6759 = vmatmul.mubr.bf16.gmra.mrb[0].mxu0 %v1628
    %v6760 = vpop.f32.mrb[0].mxu0
    %v6761 = vadd.f32 %v6720, %v6760
    %v6762 = vpop.f32.mrb[0].mxu0
    %v6763 = vpop.f32.mrb[0].mxu0
    %v6764 = vadd.f32 %v6723, %v6763
    %v6765 = vpop.f32.mrb[0].mxu0
    %6766 = vdwg.mxu0
    %6767 = vmatprep.subr.bf16.mxu0 0
    %6768 = vmatpush1.bf16.msra.mxu0 %v4710
    %6769 = vmatprep.subr.bf16.mxu0 0
    %6770 = vmatpush1.bf16.msra.mxu0 %v4711
    %6771 = vmatprep.subr.bf16.mxu0 0
    %6772 = vmatpush1.bf16.msra.mxu0 %v4712
    %6773 = vmatprep.subr.bf16.mxu0 0
    %6774 = vmatpush1.bf16.msra.mxu0 %v4713
    %6775 = vmatprep.subr.bf16.mxu0 0
    %6776 = vmatpush1.bf16.msra.mxu0 %v4714
    %6777 = vmatprep.subr.bf16.mxu0 0
    %6778 = vmatpush1.bf16.msra.mxu0 %v4715
    %6779 = vmatprep.subr.bf16.mxu0 0
    %6780 = vmatpush1.bf16.msra.mxu0 %v4716
    %6781 = vmatprep.subr.bf16.mxu0 0
    %6782 = vmatpush1.bf16.msra.mxu0 %v4717
    %6783 = vmatprep.subr.bf16.mxu0 0
    %6784 = vmatpush1.bf16.msra.mxu0 %v4718
    %6785 = vmatprep.subr.bf16.mxu0 0
    %6786 = vmatpush1.bf16.msra.mxu0 %v4719
    %6787 = vmatprep.subr.bf16.mxu0 0
    %6788 = vmatpush1.bf16.msra.mxu0 %v4720
    %6789 = vmatprep.subr.bf16.mxu0 0
    %6790 = vmatpush1.bf16.msra.mxu0 %v4721
    %6791 = vmatprep.subr.bf16.mxu0 0
    %6792 = vmatpush1.bf16.msra.mxu0 %v4722
    %6793 = vmatprep.subr.bf16.mxu0 0
    %6794 = vmatpush1.bf16.msra.mxu0 %v4723
    %6795 = vmatprep.subr.bf16.mxu0 0
    %6796 = vmatpush1.bf16.msra.mxu0 %v4724
    %6797 = vmatprep.subr.bf16.mxu0 0
    %6798 = vmatpush1.bf16.msra.mxu0 %v4725
    %6799 = vmatprep.mubr.bf16.mxu0 %v1631
    %6800 = vmatmul.mubr.bf16.gmra.mrb[0].mxu0 %v1630
    %v6801 = vpop.f32.mrb[0].mxu0
    %v6802 = vadd.f32 %v6761, %v6801
    %v6803 = vpop.f32.mrb[0].mxu0
    %v6804 = vpop.f32.mrb[0].mxu0
    %v6805 = vadd.f32 %v6764, %v6804
    %v6806 = vpop.f32.mrb[0].mxu0
    %6807 = vdwg.mxu0
    %6808 = vmatprep.subr.bf16.mxu0 0
    %6809 = vmatpush1.bf16.msra.mxu0 %v4726
    %6810 = vmatprep.subr.bf16.mxu0 0
    %6811 = vmatpush1.bf16.msra.mxu0 %v4727
    %6812 = vmatprep.subr.bf16.mxu0 0
    %6813 = vmatpush1.bf16.msra.mxu0 %v4728
    %6814 = vmatprep.subr.bf16.mxu0 0
    %6815 = vmatpush1.bf16.msra.mxu0 %v4729
    %6816 = vmatprep.subr.bf16.mxu0 0
    %6817 = vmatpush1.bf16.msra.mxu0 %v4730
    %6818 = vmatprep.subr.bf16.mxu0 0
    %6819 = vmatpush1.bf16.msra.mxu0 %v4731
    %6820 = vmatprep.subr.bf16.mxu0 0
    %6821 = vmatpush1.bf16.msra.mxu0 %v4732
    %6822 = vmatprep.subr.bf16.mxu0 0
    %6823 = vmatpush1.bf16.msra.mxu0 %v4733
    %6824 = vmatprep.subr.bf16.mxu0 0
    %6825 = vmatpush1.bf16.msra.mxu0 %v4734
    %6826 = vmatprep.subr.bf16.mxu0 0
    %6827 = vmatpush1.bf16.msra.mxu0 %v4735
    %6828 = vmatprep.subr.bf16.mxu0 0
    %6829 = vmatpush1.bf16.msra.mxu0 %v4736
    %6830 = vmatprep.subr.bf16.mxu0 0
    %6831 = vmatpush1.bf16.msra.mxu0 %v4737
    %6832 = vmatprep.subr.bf16.mxu0 0
    %6833 = vmatpush1.bf16.msra.mxu0 %v4738
    %6834 = vmatprep.subr.bf16.mxu0 0
    %6835 = vmatpush1.bf16.msra.mxu0 %v4739
    %6836 = vmatprep.subr.bf16.mxu0 0
    %6837 = vmatpush1.bf16.msra.mxu0 %v4740
    %6838 = vmatprep.subr.bf16.mxu0 0
    %6839 = vmatpush1.bf16.msra.mxu0 %v4741
    %6840 = vmatprep.mubr.bf16.mxu0 %v1633
    %6841 = vmatmul.mubr.bf16.gmra.mrb[0].mxu0 %v1632
    %v6842 = vpop.f32.mrb[0].mxu0
    %v6843 = vadd.f32 %v6802, %v6842
    %v6844 = vpop.f32.mrb[0].mxu0
    %v6845 = vpop.f32.mrb[0].mxu0
    %v6846 = vadd.f32 %v6805, %v6845
    %v6847 = vpop.f32.mrb[0].mxu0
    %6848 = vdwg.mxu0
    %6849 = vmatprep.subr.bf16.mxu0 0
    %6850 = vmatpush1.bf16.msra.mxu0 %v4742
    %6851 = vmatprep.subr.bf16.mxu0 0
    %6852 = vmatpush1.bf16.msra.mxu0 %v4743
    %6853 = vmatprep.subr.bf16.mxu0 0
    %6854 = vmatpush1.bf16.msra.mxu0 %v4744
    %6855 = vmatprep.subr.bf16.mxu0 0
    %6856 = vmatpush1.bf16.msra.mxu0 %v4745
    %6857 = vmatprep.subr.bf16.mxu0 0
    %6858 = vmatpush1.bf16.msra.mxu0 %v4746
    %6859 = vmatprep.subr.bf16.mxu0 0
    %6860 = vmatpush1.bf16.msra.mxu0 %v4747
    %6861 = vmatprep.subr.bf16.mxu0 0
    %6862 = vmatpush1.bf16.msra.mxu0 %v4748
    %6863 = vmatprep.subr.bf16.mxu0 0
    %6864 = vmatpush1.bf16.msra.mxu0 %v4749
    %6865 = vmatprep.subr.bf16.mxu0 0
    %6866 = vmatpush1.bf16.msra.mxu0 %v4750
    %6867 = vmatprep.subr.bf16.mxu0 0
    %6868 = vmatpush1.bf16.msra.mxu0 %v4751
    %6869 = vmatprep.subr.bf16.mxu0 0
    %6870 = vmatpush1.bf16.msra.mxu0 %v4752
    %6871 = vmatprep.subr.bf16.mxu0 0
    %6872 = vmatpush1.bf16.msra.mxu0 %v4753
    %6873 = vmatprep.subr.bf16.mxu0 0
    %6874 = vmatpush1.bf16.msra.mxu0 %v4754
    %6875 = vmatprep.subr.bf16.mxu0 0
    %6876 = vmatpush1.bf16.msra.mxu0 %v4755
    %6877 = vmatprep.subr.bf16.mxu0 0
    %6878 = vmatpush1.bf16.msra.mxu0 %v4756
    %6879 = vmatprep.subr.bf16.mxu0 0
    %6880 = vmatpush1.bf16.msra.mxu0 %v4757
    %6881 = vmatprep.mubr.bf16.mxu0 %v1635
    %6882 = vmatmul.mubr.bf16.gmra.mrb[0].mxu0 %v1634
    %v6883 = vpop.f32.mrb[0].mxu0
    %v6884 = vadd.f32 %v6843, %v6883
    %v6885 = vpop.f32.mrb[0].mxu0
    %v6886 = vpop.f32.mrb[0].mxu0
    %v6887 = vadd.f32 %v6846, %v6886
    %v6888 = vpop.f32.mrb[0].mxu0
    %6889 = vdwg.mxu0
    %6890 = vmatprep.subr.bf16.mxu0 0
    %6891 = vmatpush1.bf16.msra.mxu0 %v4758
    %6892 = vmatprep.subr.bf16.mxu0 0
    %6893 = vmatpush1.bf16.msra.mxu0 %v4759
    %6894 = vmatprep.subr.bf16.mxu0 0
    %6895 = vmatpush1.bf16.msra.mxu0 %v4760
    %6896 = vmatprep.subr.bf16.mxu0 0
    %6897 = vmatpush1.bf16.msra.mxu0 %v4761
    %6898 = vmatprep.subr.bf16.mxu0 0
    %6899 = vmatpush1.bf16.msra.mxu0 %v4762
    %6900 = vmatprep.subr.bf16.mxu0 0
    %6901 = vmatpush1.bf16.msra.mxu0 %v4763
    %6902 = vmatprep.subr.bf16.mxu0 0
    %6903 = vmatpush1.bf16.msra.mxu0 %v4764
    %6904 = vmatprep.subr.bf16.mxu0 0
    %6905 = vmatpush1.bf16.msra.mxu0 %v4765
    %6906 = vmatprep.subr.bf16.mxu0 0
    %6907 = vmatpush1.bf16.msra.mxu0 %v4766
    %6908 = vmatprep.subr.bf16.mxu0 0
    %6909 = vmatpush1.bf16.msra.mxu0 %v4767
    %6910 = vmatprep.subr.bf16.mxu0 0
    %6911 = vmatpush1.bf16.msra.mxu0 %v4768
    %6912 = vmatprep.subr.bf16.mxu0 0
    %6913 = vmatpush1.bf16.msra.mxu0 %v4769
    %6914 = vmatprep.subr.bf16.mxu0 0
    %6915 = vmatpush1.bf16.msra.mxu0 %v4770
    %6916 = vmatprep.subr.bf16.mxu0 0
    %6917 = vmatpush1.bf16.msra.mxu0 %v4771
    %6918 = vmatprep.subr.bf16.mxu0 0
    %6919 = vmatpush1.bf16.msra.mxu0 %v4772
    %6920 = vmatprep.subr.bf16.mxu0 0
    %6921 = vmatpush1.bf16.msra.mxu0 %v4773
    %6922 = vmatprep.mubr.bf16.mxu0 %v1637
    %6923 = vmatmul.mubr.bf16.gmra.mrb[0].mxu0 %v1636
    %v6924 = vpop.f32.mrb[0].mxu0
    %v6925 = vadd.f32 %v6884, %v6924
    %v6926 = vpop.f32.mrb[0].mxu0
    %v6927 = vpop.f32.mrb[0].mxu0
    %v6928 = vadd.f32 %v6887, %v6927
    %v6929 = vpop.f32.mrb[0].mxu0
    %6930 = vdwg.mxu0
    %6931 = vmatprep.subr.bf16.mxu0 0
    %6932 = vmatpush1.bf16.msra.mxu0 %v4774
    %6933 = vmatprep.subr.bf16.mxu0 0
    %6934 = vmatpush1.bf16.msra.mxu0 %v4775
    %6935 = vmatprep.subr.bf16.mxu0 0
    %6936 = vmatpush1.bf16.msra.mxu0 %v4776
    %6937 = vmatprep.subr.bf16.mxu0 0
    %6938 = vmatpush1.bf16.msra.mxu0 %v4777
    %6939 = vmatprep.subr.bf16.mxu0 0
    %6940 = vmatpush1.bf16.msra.mxu0 %v4778
    %6941 = vmatprep.subr.bf16.mxu0 0
    %6942 = vmatpush1.bf16.msra.mxu0 %v4779
    %6943 = vmatprep.subr.bf16.mxu0 0
    %6944 = vmatpush1.bf16.msra.mxu0 %v4780
    %6945 = vmatprep.subr.bf16.mxu0 0
    %6946 = vmatpush1.bf16.msra.mxu0 %v4781
    %6947 = vmatprep.subr.bf16.mxu0 0
    %6948 = vmatpush1.bf16.msra.mxu0 %v4782
    %6949 = vmatprep.subr.bf16.mxu0 0
    %6950 = vmatpush1.bf16.msra.mxu0 %v4783
    %6951 = vmatprep.subr.bf16.mxu0 0
    %6952 = vmatpush1.bf16.msra.mxu0 %v4784
    %6953 = vmatprep.subr.bf16.mxu0 0
    %6954 = vmatpush1.bf16.msra.mxu0 %v4785
    %6955 = vmatprep.subr.bf16.mxu0 0
    %6956 = vmatpush1.bf16.msra.mxu0 %v4786
    %6957 = vmatprep.subr.bf16.mxu0 0
    %6958 = vmatpush1.bf16.msra.mxu0 %v4787
    %6959 = vmatprep.subr.bf16.mxu0 0
    %6960 = vmatpush1.bf16.msra.mxu0 %v4788
    %6961 = vmatprep.subr.bf16.mxu0 0
    %6962 = vmatpush1.bf16.msra.mxu0 %v4789
    %6963 = vmatprep.mubr.bf16.mxu0 %v1639
    %6964 = vmatmul.mubr.bf16.gmra.mrb[0].mxu0 %v1638
    %v6965 = vpop.f32.mrb[0].mxu0
    %v6966 = vadd.f32 %v6925, %v6965
    %v6967 = vpop.f32.mrb[0].mxu0
    %v6968 = vpop.f32.mrb[0].mxu0
    %v6969 = vadd.f32 %v6928, %v6968
    %v6970 = vpop.f32.mrb[0].mxu0
    %6971 = vdwg.mxu0
    %6972 = vmatprep.subr.bf16.mxu0 0
    %6973 = vmatpush1.bf16.msra.mxu0 %v4790
    %6974 = vmatprep.subr.bf16.mxu0 0
    %6975 = vmatpush1.bf16.msra.mxu0 %v4791
    %6976 = vmatprep.subr.bf16.mxu0 0
    %6977 = vmatpush1.bf16.msra.mxu0 %v4792
    %6978 = vmatprep.subr.bf16.mxu0 0
    %6979 = vmatpush1.bf16.msra.mxu0 %v4793
    %6980 = vmatprep.subr.bf16.mxu0 0
    %6981 = vmatpush1.bf16.msra.mxu0 %v4794
    %6982 = vmatprep.subr.bf16.mxu0 0
    %6983 = vmatpush1.bf16.msra.mxu0 %v4795
    %6984 = vmatprep.subr.bf16.mxu0 0
    %6985 = vmatpush1.bf16.msra.mxu0 %v4796
    %6986 = vmatprep.subr.bf16.mxu0 0
    %6987 = vmatpush1.bf16.msra.mxu0 %v4797
    %6988 = vmatprep.subr.bf16.mxu0 0
    %6989 = vmatpush1.bf16.msra.mxu0 0
    %6990 = vmatprep.subr.bf16.mxu0 0
    %6991 = vmatpush1.bf16.msra.mxu0 0
    %6992 = vmatprep.subr.bf16.mxu0 0
    %6993 = vmatpush1.bf16.msra.mxu0 0
    %6994 = vmatprep.subr.bf16.mxu0 0
    %6995 = vmatpush1.bf16.msra.mxu0 0
    %6996 = vmatprep.subr.bf16.mxu0 0
    %6997 = vmatpush1.bf16.msra.mxu0 0
    %6998 = vmatprep.subr.bf16.mxu0 0
    %6999 = vmatpush1.bf16.msra.mxu0 0
    %7000 = vmatprep.subr.bf16.mxu0 0
    %7001 = vmatpush1.bf16.msra.mxu0 0
    %7002 = vmatprep.subr.bf16.mxu0 0
    %7003 = vmatpush1.bf16.msra.mxu0 0
    %7004 = vmatprep.mubr.bf16.mxu0 0
    %7005 = vmatmul.mubr.bf16.gmra.mrb[0].mxu0 %v1640
    %v7006 = vpop.f32.mrb[0].mxu0
    %v7007 = vadd.f32 %v6966, %v7006
    %v7008 = vpop.f32.mrb[0].mxu0
    %v7009 = vpop.f32.mrb[0].mxu0
    %v7010 = vadd.f32 %v6969, %v7009
    %v7011 = vpop.f32.mrb[0].mxu0
    %7012 = vdwg.mxu0
    %v7013 = vld [vmem:[%s3] sm:$0xff]
    %v7014 = vlaneseq
    %v7015 = vshrl.u32 %v7014, 7
    %v7016 = vsub.s32 0, %v7015
    %v7017 = vrot.slane %v7013, %v7016
    %v7018 = vadd.f32 %v7007, %v7017
    %v7019 = vlaneseq
    %v7020 = vshrl.u32 %v7019, 7
    %v7021 = vsub.s32 1, %v7020
    %v7022 = vrot.slane %v7013, %v7021
    %7024 = vrot.lane.b32.xlu0 %v7022, 32
    %v7025 = vpop.permute.xlu0 %7024
    %v7027 = vadd.f32 %v7010, %v7025
    %7029 = vrot.lane.b32.xlu0 %v7018, 32
    %v7030 = vpop.permute.xlu0 %7029
    %v7031 = vld [vmem:[%s2] sm:$0xff]
    %v7032 = vld [vmem:[%s2 + $0x8] sm:$0xff]
    %v7033 = vld [vmem:[%s2 + $0x10] sm:$0xff]
    %v7034 = vld [vmem:[%s2 + $0x18] sm:$0xff]
    %7036 = vrot.lane.b32.xlu0 %v7027, 96
    %v7037 = vpop.permute.xlu0 %7036
    %7038 = vrot.lane.b32.xlu0 %v7030, 96
    %v7039 = vpop.permute.xlu0 %7038
    %vm7040 = vcmask 261120
    %v7041 = vsel %vm7040, %v7037, 0
    %v7043 = vsel %vm7040, %v7039, 0
    %7045 = vmatprep.subr.mxu0 0.0
    %7046 = vmatpush1.msra.mxu0 %v7031
    %7047 = vmatprep.subr.mxu0 0.0
    %7048 = vmatpush1.msra.mxu0 %v7032
    %7049 = vmatprep.subr.mxu0 0.0
    %7050 = vmatpush1.msra.mxu0 %v7033
    %7051 = vmatprep.subr.mxu0 0.0
    %7052 = vmatpush1.msra.mxu0 %v7034
    %7053 = vmatprep.subr.mxu0 0.0
    %7054 = vmatpush1.msra.mxu0 0.0
    %7055 = vmatprep.subr.mxu0 0.0
    %7056 = vmatpush1.msra.mxu0 0.0
    %7057 = vmatprep.subr.mxu0 0.0
    %7058 = vmatpush1.msra.mxu0 0.0
    %7059 = vmatprep.subr.mxu0 0.0
    %7060 = vmatpush1.msra.mxu0 0.0
    %7061 = vmatprep.subr.mxu0 0.0
    %7062 = vmatpush1.msra.mxu0 0.0
    %7063 = vmatprep.subr.mxu0 0.0
    %7064 = vmatpush1.msra.mxu0 0.0
    %7065 = vmatprep.subr.mxu0 0.0
    %7066 = vmatpush1.msra.mxu0 0.0
    %7067 = vmatprep.subr.mxu0 0.0
    %7068 = vmatpush1.msra.mxu0 0.0
    %7069 = vmatprep.subr.mxu0 0.0
    %7070 = vmatpush1.msra.mxu0 0.0
    %7071 = vmatprep.subr.mxu0 0.0
    %7072 = vmatpush1.msra.mxu0 0.0
    %7073 = vmatprep.subr.mxu0 0.0
    %7074 = vmatpush1.msra.mxu0 0.0
    %7075 = vmatprep.subr.mxu0 0.0
    %7076 = vmatpush1.msra.mxu0 0.0
    %7077 = vmatprep.subr.mxu0 0.0
    %7078 = vmatpush1.msra.mxu0 0.0
    %7079 = vmatprep.subr.mxu0 0.0
    %7080 = vmatpush1.msra.mxu0 0.0
    %7081 = vmatprep.subr.mxu0 0.0
    %7082 = vmatpush1.msra.mxu0 0.0
    %7083 = vmatprep.subr.mxu0 0.0
    %7084 = vmatpush1.msra.mxu0 0.0
    %7085 = vmatprep.subr.mxu0 0.0
    %7086 = vmatpush1.msra.mxu0 0.0
    %7087 = vmatprep.subr.mxu0 0.0
    %7088 = vmatpush1.msra.mxu0 0.0
    %7089 = vmatprep.subr.mxu0 0.0
    %7090 = vmatpush1.msra.mxu0 0.0
    %7091 = vmatprep.subr.mxu0 0.0
    %7092 = vmatpush1.msra.mxu0 0.0
    %7093 = vmatprep.subr.mxu0 0.0
    %7094 = vmatpush1.msra.mxu0 0.0
    %7095 = vmatprep.subr.mxu0 0.0
    %7096 = vmatpush1.msra.mxu0 0.0
    %7097 = vmatprep.subr.mxu0 0.0
    %7098 = vmatpush1.msra.mxu0 0.0
    %7099 = vmatprep.subr.mxu0 0.0
    %7100 = vmatpush1.msra.mxu0 0.0
    %7101 = vmatprep.subr.mxu0 0.0
    %7102 = vmatpush1.msra.mxu0 0.0
    %7103 = vmatprep.subr.mxu0 0.0
    %7104 = vmatpush1.msra.mxu0 0.0
    %7105 = vmatprep.subr.mxu0 0.0
    %7106 = vmatpush1.msra.mxu0 0.0
    %7107 = vmatprep.subr.mxu0 0.0
    %7108 = vmatpush1.msra.mxu0 0.0
    %7109 = vmatprep.mubr.f32.mxu0 0.0
    %7110 = vmatmul.mubr.f32.gmra.mrb[0].mxu0 %v7041
    %v7111 = vpop.f32.mrb[0].mxu0
    %v7112 = vadd.f32 0.0, %v7111
    %v7113 = vpop.f32.mrb[0].mxu0
    %7114 = vmatprep.mubr.f32.mxu0 0.0
    %7115 = vmatmul.mubr.f32.gmra.mrb[0].mxu0 %v7043
    %v7116 = vpop.f32.mrb[0].mxu0
    %v7117 = vadd.f32 0.0, %v7116
    %v7118 = vpop.f32.mrb[0].mxu0
    %7119 = vdwg.mxu0
    %v7120 = vlaneseq
    %v7121 = vshrl.u32 %v7120, 7
    %v7122 = vsub.s32 2, %v7121
    %v7123 = vrot.slane %v7013, %v7122
    %v7124 = vadd.f32 %v7112, %v7123
    %v7125 = vadd.f32 %v7117, %v7123
    %v7126 = vlaneseq
    %v7127 = vshrl.u32 %v7126, 7
    %v7128 = vsub.s32 3, %v7127
    %v7129 = vrot.slane %v7013, %v7128
    %7131 = vrot.lane.b32.xlu0 %v7129, 32
    %v7132 = vpop.permute.xlu0 %7131
    %v7134 = vadd.f32 %v7112, %v7132
    %v7135 = vadd.f32 %v7117, %v7132
    %v7136 = vlaneseq
    %v7137 = vshrl.u32 %v7136, 7
    %v7138 = vsub.s32 4, %v7137
    %v7139 = vrot.slane %v7013, %v7138
    %7141 = vrot.lane.b32.xlu0 %v7139, 64
    %v7142 = vpop.permute.xlu0 %7141
    %v7144 = vadd.f32 %v7112, %v7142
    %v7145 = vadd.f32 %v7117, %v7142
    %7148 = vrot.lane.b32.xlu0 %v7134, 96
    %v7149 = vpop.permute.xlu0 %7148
    %7150 = vrot.lane.b32.xlu0 %v7135, 96
    %v7151 = vpop.permute.xlu0 %7150
    %v7154 = vmul.f32 %v7124, %v7149
    %v7155 = vmul.f32 %v7125, %v7151
    %v7156 = vsel %vm7040, %v7154, 0.0
    %7157 = vadd.xlane.f32.xlu0 %v7156
    %v7158 = vpop.xlane.xlu0 %7157
    %v7159 = vsel %vm7040, %v7155, 0.0
    %7160 = vadd.xlane.f32.xlu0 %v7159
    %v7161 = vpop.xlane.xlu0 %7160
    %v7162 = vmul.f32 %v7158, 0.16666667
    %v7163 = vmul.f32 %v7161, 0.16666667
    %v7164 = vmax.f32 %v7162, %v7163
    %v7165 = vsub.f32 %v7162, %v7164
    %v7166 = vmul.f32 %v7165, 1.442695
    %v7167 = vpow.pop %v7166
    %v7168 = vsub.f32 %v7163, %v7164
    %v7169 = vmul.f32 %v7168, 1.442695
    %v7170 = vpow.pop %v7169
    %v7171 = vadd.f32 %v7167, %v7170
    %v7172 = vrcp.pop %v7171
    %v7173 = vmul.f32 %v7167, %v7172
    %v7174 = vmul.f32 %v7173, %v7144
    %v7175 = vmul.f32 %v7170, %v7172
    %v7176 = vmul.f32 %v7175, %v7145
    %v7177 = vadd.f32 %v7174, %v7176
    %v7178 = vlaneseq
    %v7179 = vshrl.u32 %v7178, 7
    %v7180 = vsub.s32 5, %v7179
    %v7181 = vrot.slane %v7013, %v7180
    %7183 = vrot.lane.b32.xlu0 %v7177, 64
    %v7184 = vpop.permute.xlu0 %7183
    %7189 = vrot.lane.b32.xlu0 %v7031, 32
    %v7190 = vpop.permute.xlu0 %7189
    %7191 = vrot.lane.b32.xlu0 %v7032, 32
    %v7192 = vpop.permute.xlu0 %7191
    %7193 = vrot.lane.b32.xlu0 %v7033, 32
    %v7194 = vpop.permute.xlu0 %7193
    %7195 = vrot.lane.b32.xlu0 %v7034, 32
    %v7196 = vpop.permute.xlu0 %7195
    %v7201 = vsel %vm7040, %v7184, 0
    %7203 = vmatprep.subr.mxu0 0.0
    %7204 = vmatpush1.msra.mxu0 %v7190
    %7205 = vmatprep.subr.mxu0 0.0
    %7206 = vmatpush1.msra.mxu0 %v7192
    %7207 = vmatprep.subr.mxu0 0.0
    %7208 = vmatpush1.msra.mxu0 %v7194
    %7209 = vmatprep.subr.mxu0 0.0
    %7210 = vmatpush1.msra.mxu0 %v7196
    %7211 = vmatprep.subr.mxu0 0.0
    %7212 = vmatpush1.msra.mxu0 0.0
    %7213 = vmatprep.subr.mxu0 0.0
    %7214 = vmatpush1.msra.mxu0 0.0
    %7215 = vmatprep.subr.mxu0 0.0
    %7216 = vmatpush1.msra.mxu0 0.0
    %7217 = vmatprep.subr.mxu0 0.0
    %7218 = vmatpush1.msra.mxu0 0.0
    %7219 = vmatprep.subr.mxu0 0.0
    %7220 = vmatpush1.msra.mxu0 0.0
    %7221 = vmatprep.subr.mxu0 0.0
    %7222 = vmatpush1.msra.mxu0 0.0
    %7223 = vmatprep.subr.mxu0 0.0
    %7224 = vmatpush1.msra.mxu0 0.0
    %7225 = vmatprep.subr.mxu0 0.0
    %7226 = vmatpush1.msra.mxu0 0.0
    %7227 = vmatprep.subr.mxu0 0.0
    %7228 = vmatpush1.msra.mxu0 0.0
    %7229 = vmatprep.subr.mxu0 0.0
    %7230 = vmatpush1.msra.mxu0 0.0
    %7231 = vmatprep.subr.mxu0 0.0
    %7232 = vmatpush1.msra.mxu0 0.0
    %7233 = vmatprep.subr.mxu0 0.0
    %7234 = vmatpush1.msra.mxu0 0.0
    %7235 = vmatprep.subr.mxu0 0.0
    %7236 = vmatpush1.msra.mxu0 0.0
    %7237 = vmatprep.subr.mxu0 0.0
    %7238 = vmatpush1.msra.mxu0 0.0
    %7239 = vmatprep.subr.mxu0 0.0
    %7240 = vmatpush1.msra.mxu0 0.0
    %7241 = vmatprep.subr.mxu0 0.0
    %7242 = vmatpush1.msra.mxu0 0.0
    %7243 = vmatprep.subr.mxu0 0.0
    %7244 = vmatpush1.msra.mxu0 0.0
    %7245 = vmatprep.subr.mxu0 0.0
    %7246 = vmatpush1.msra.mxu0 0.0
    %7247 = vmatprep.subr.mxu0 0.0
    %7248 = vmatpush1.msra.mxu0 0.0
    %7249 = vmatprep.subr.mxu0 0.0
    %7250 = vmatpush1.msra.mxu0 0.0
    %7251 = vmatprep.subr.mxu0 0.0
    %7252 = vmatpush1.msra.mxu0 0.0
    %7253 = vmatprep.subr.mxu0 0.0
    %7254 = vmatpush1.msra.mxu0 0.0
    %7255 = vmatprep.subr.mxu0 0.0
    %7256 = vmatpush1.msra.mxu0 0.0
    %7257 = vmatprep.subr.mxu0 0.0
    %7258 = vmatpush1.msra.mxu0 0.0
    %7259 = vmatprep.subr.mxu0 0.0
    %7260 = vmatpush1.msra.mxu0 0.0
    %7261 = vmatprep.subr.mxu0 0.0
    %7262 = vmatpush1.msra.mxu0 0.0
    %7263 = vmatprep.subr.mxu0 0.0
    %7264 = vmatpush1.msra.mxu0 0.0
    %7265 = vmatprep.subr.mxu0 0.0
    %7266 = vmatpush1.msra.mxu0 0.0
    %7267 = vmatprep.mubr.f32.mxu0 0.0
    %7268 = vmatmul.mubr.f32.gmra.mrb[0].mxu0 %v7201
    %v7269 = vpop.f32.mrb[0].mxu0
    %v7270 = vadd.f32 %v7181, %v7269
    %v7271 = vpop.f32.mrb[0].mxu0
    %7272 = vdwg.mxu0
    %v7273 = vmax.f32 %v7270, 0.0
    %v7274 = vlaneseq
    %v7275 = vshrl.u32 %v7274, 7
    %v7276 = vsub.s32 6, %v7275
    %v7277 = vrot.slane %v7013, %v7276
    %7278 = vrot.lane.b32.xlu0 %v7031, 16
    %v7279 = vpop.permute.xlu0 %7278
    %7280 = vrot.lane.b32.xlu0 %v7032, 16
    %v7281 = vpop.permute.xlu0 %7280
    %vm7284 = vcmask 130048
    %v7286 = vsel %vm7284, %v7273, 0
    %7288 = vmatprep.subr.mxu0 0.0
    %7289 = vmatpush1.msra.mxu0 %v7279
    %7290 = vmatprep.subr.mxu0 0.0
    %7291 = vmatpush1.msra.mxu0 %v7281
    %7292 = vmatprep.subr.mxu0 0.0
    %7293 = vmatpush1.msra.mxu0 0.0
    %7294 = vmatprep.subr.mxu0 0.0
    %7295 = vmatpush1.msra.mxu0 0.0
    %7296 = vmatprep.subr.mxu0 0.0
    %7297 = vmatpush1.msra.mxu0 0.0
    %7298 = vmatprep.subr.mxu0 0.0
    %7299 = vmatpush1.msra.mxu0 0.0
    %7300 = vmatprep.subr.mxu0 0.0
    %7301 = vmatpush1.msra.mxu0 0.0
    %7302 = vmatprep.subr.mxu0 0.0
    %7303 = vmatpush1.msra.mxu0 0.0
    %7304 = vmatprep.subr.mxu0 0.0
    %7305 = vmatpush1.msra.mxu0 0.0
    %7306 = vmatprep.subr.mxu0 0.0
    %7307 = vmatpush1.msra.mxu0 0.0
    %7308 = vmatprep.subr.mxu0 0.0
    %7309 = vmatpush1.msra.mxu0 0.0
    %7310 = vmatprep.subr.mxu0 0.0
    %7311 = vmatpush1.msra.mxu0 0.0
    %7312 = vmatprep.subr.mxu0 0.0
    %7313 = vmatpush1.msra.mxu0 0.0
    %7314 = vmatprep.subr.mxu0 0.0
    %7315 = vmatpush1.msra.mxu0 0.0
    %7316 = vmatprep.subr.mxu0 0.0
    %7317 = vmatpush1.msra.mxu0 0.0
    %7318 = vmatprep.subr.mxu0 0.0
    %7319 = vmatpush1.msra.mxu0 0.0
    %7320 = vmatprep.subr.mxu0 0.0
    %7321 = vmatpush1.msra.mxu0 0.0
    %7322 = vmatprep.subr.mxu0 0.0
    %7323 = vmatpush1.msra.mxu0 0.0
    %7324 = vmatprep.subr.mxu0 0.0
    %7325 = vmatpush1.msra.mxu0 0.0
    %7326 = vmatprep.subr.mxu0 0.0
    %7327 = vmatpush1.msra.mxu0 0.0
    %7328 = vmatprep.subr.mxu0 0.0
    %7329 = vmatpush1.msra.mxu0 0.0
    %7330 = vmatprep.subr.mxu0 0.0
    %7331 = vmatpush1.msra.mxu0 0.0
    %7332 = vmatprep.subr.mxu0 0.0
    %7333 = vmatpush1.msra.mxu0 0.0
    %7334 = vmatprep.subr.mxu0 0.0
    %7335 = vmatpush1.msra.mxu0 0.0
    %7336 = vmatprep.subr.mxu0 0.0
    %7337 = vmatpush1.msra.mxu0 0.0
    %7338 = vmatprep.subr.mxu0 0.0
    %7339 = vmatpush1.msra.mxu0 0.0
    %7340 = vmatprep.subr.mxu0 0.0
    %7341 = vmatpush1.msra.mxu0 0.0
    %7342 = vmatprep.subr.mxu0 0.0
    %7343 = vmatpush1.msra.mxu0 0.0
    %7344 = vmatprep.subr.mxu0 0.0
    %7345 = vmatpush1.msra.mxu0 0.0
    %7346 = vmatprep.subr.mxu0 0.0
    %7347 = vmatpush1.msra.mxu0 0.0
    %7348 = vmatprep.subr.mxu0 0.0
    %7349 = vmatpush1.msra.mxu0 0.0
    %7350 = vmatprep.subr.mxu0 0.0
    %7351 = vmatpush1.msra.mxu0 0.0
    %7352 = vmatprep.mubr.f32.mxu0 0.0
    %7353 = vmatmul.mubr.f32.gmra.mrb[0].mxu0 %v7286
    %v7354 = vpop.f32.mrb[0].mxu0
    %v7355 = vadd.f32 %v7277, %v7354
    %v7356 = vpop.f32.mrb[0].mxu0
    %7357 = vdwg.mxu0
    %v7358 = vmax.f32 %v7355, 0.0
    %v7359 = vlaneseq
    %v7360 = vshrl.u32 %v7359, 7
    %v7361 = vsub.s32 7, %v7360
    %v7362 = vrot.slane %v7013, %v7361
    %v7363 = vmul.f32 %v7358, %v7362
    %v7364 = vsel %vm7284, %v7363, 0.0
    %7365 = vadd.xlane.f32.xlu0 %v7364
    %v7366 = vpop.xlane.xlu0 %7365
    %v7367 = vld [vmem:[%s4] sm:$0xff]
    %v7368 = vadd.f32 %v7367, %v7366
    %v7369 = vsub.f32 0.0, %v7368
    %v7370 = vmul.f32 %v7369, 1.442695
    %v7371 = vpow.pop %v7370
    %v7372 = vadd.f32 %v7371, 1.0
    %v7373 = vrcp.pop %v7372
    %v7374 = vmul.f32 1.0, %v7373
    %7377 = vrot.lane.b32.xlu0 %v7374, 32
    %v7378 = vpop.permute.xlu0 %7377
    %v7380 = vsel %vm7040, %v7184, %v7378
    %vm7381 = vcmask 269312
    %v7382 = vsel %vm7381, %v7380, 0.0
    %7383 = vst [vmem:[#allocation2] sm:$0xff] %v7382
    // Predicated region
    $region22: #{tpu_custom_call.1} parent=1 // pred_check
      _
    $region23: #{tpu_custom_call.1} parent=1 // pred_check_branch
      %7385 = sbr.rel (0) target = $region25
    $region24: #{tpu_custom_call.1} parent=1 // pred_region
      %s7387 = ssub.s32 128, 128
      %7388 = vsyncadd [#allocation3], %s7387
      %s7390 = sshll.u32 [#allocation2], 4
      %s7391 = int_to_ptr.vmem [resolvable:$true] %s7390
      %7393 = dma.vmem_to_hbm [thread:$0]  %s7391, 128, %s5, [#allocation3]
    $region25: #{tpu_custom_call.1} parent=1 // pred_fallthru
      _
    // Predicated region
    $region26: #{tpu_custom_call.1} parent=1 // pred_check
      _
    $region27: #{tpu_custom_call.1} parent=1 // pred_check_branch
      %7395 = sbr.rel (0) target = $region29
    $region28: #{tpu_custom_call.1} parent=1 // pred_region
      %7396 = dma.done [#allocation3], 128
    $region29: #{tpu_custom_call.1} parent=1 // pred_fallthru
      _
    %7397 = vsyncpa [#allocation3], 1

</llo_original>
